<compile_context>
chip_gen: v6e
topology: v6e:2x2x1
jax: 0.10.0
libtpu: 0.0.40
codegen_flags: <defaults>
</compile_context>

<pallas_src>
import functools

import numpy as np
import jax
import jax.numpy as jnp
from jax import lax
from jax.experimental import pallas as pl
from jax.experimental.pallas import tpu as pltpu

_SUB = 8      # sublanes
_LANE = 128   # lanes


def _vmem_limit_bytes():
    """Per-generation scoped-VMEM limit (v5e/v6e: 100 MiB, v7x / unknown: 56 MiB)."""
    try:
        cap = int(getattr(pltpu.get_tpu_info(), "vmem_capacity_bytes", 0))
    except Exception:
        cap = 0
    if cap >= (128 << 20):
        return 100 << 20          # v5e / v6e: 128 MiB physical -> generous headroom
    return 56 << 20               # v7x (64 MiB per TensorCore) or unknown: stay safe


# ---------------------------------------------------------------------------
# Pallas kernel: one grid step processes `block_b` samples (fori_loop) and
# writes a single (1, block_b) row of similarity-differences.
# Hypervectors are laid out as (8, Dl) tiles (Dl = Dp // 8) so every elementwise
# op uses full (8,128) vregs and every level gather is a leading-axis load.
# ---------------------------------------------------------------------------
def _hdc_kernel(idx_ref,                                    # SMEM: flat (Bp*T*C,) level indices
                motion_ref, hr_ref, sgn_ref, thr_ref, cdiff_ref,   # VMEM grid-invariant tables
                o_ref,                                      # (1, block_b): maj . (c1n - c0n)
                *, seq_len, num_channels, block_b):
    i = pl.program_id(0)
    C = num_channels
    n_motion = C - 1                                        # 6 motion channels + 1 HR channel

    # ---- hoisted loop invariants (~C + 3 live vregs at Dl = 128) ----
    sgn = [sgn_ref[c] for c in range(C)]                    # each (8, Dl): 1 - 2*key_c
    thr7 = thr_ref[...]                                     # (8, Dl): C/2 - sum_c key_c
    cdiff = cdiff_ref[...]                                  # (8, Dl): c1_norm - c0_norm
    zero = jnp.zeros_like(thr7)
    t_maj = jnp.float32(seq_len)
    col = lax.broadcasted_iota(jnp.int32, (1, block_b), 1)  # sample slots within the block

    def sample_body(s, sims):
        base_b = (i * block_b + s) * (seq_len * C)          # one base offset per sample

        def body_t(t, acc):
            base = base_b + t * C                           # single base per timestep
            # sum_c |lvl_c - key_c| > C/2  <=>  sum_c lvl_c*(1-2*key_c) > C/2 - sum_c key_c
            cnt = motion_ref[idx_ref[base]] * sgn[0]
            for c in range(1, n_motion):                    # static unroll over motion channels
                cnt = cnt + motion_ref[idx_ref[base + c]] * sgn[c]
            cnt = cnt + hr_ref[idx_ref[base + n_motion]] * sgn[n_motion]
            # BSC majority over the 7 bound hypervectors (7 is odd -> no ties)
            return acc + (cnt > thr7).astype(jnp.float32)

        acc = lax.fori_loop(0, seq_len, body_t, zero, unroll=True)

        # majority over T as a 0/1 mask (hard_quantize hv = 2*maj - 1 is folded into the wrapper)
        # TODO(synk): torchhd BSC multibundle randomizes ties for even T; ties here resolve
        #             deterministically (use odd T for bit-exact parity).
        maj = (acc + acc > t_maj).astype(jnp.float32)       # (8, Dl)

        d = maj * cdiff                                     # padded lanes: maj*0 -> contribute 0
        d = jnp.sum(jnp.sum(d, axis=1, keepdims=True), axis=0, keepdims=True)   # (1, 1)
        return jnp.where(col == s, d, sims)                 # register accumulate, no per-sample store

    o_ref[...] = lax.fori_loop(0, block_b, sample_body,
                               jnp.zeros((1, block_b), jnp.float32))


# ---------------------------------------------------------------------------
# Wrapper: level-index computation, layout packing, pallas_call, probability.
# ---------------------------------------------------------------------------
def hdc_forward(x, motion_tab, hr_tab, keys, centroid, *, block_b=32):
    B, T, C = x.shape
    D = motion_tab.shape[1]
    Lm, Lh = motion_tab.shape[0], hr_tab.shape[0]

    Dp = pl.cdiv(D, _SUB * _LANE) * (_SUB * _LANE)          # pad HD dim to multiple of 1024
    Dl = Dp // _SUB

    # torchhd embeddings.Level: value -> index = round(linear map), then clamp.
    motion = x[:, :, :C - 1]
    hr = x[:, :, C - 1]
    idx_m = jnp.clip(jnp.round((motion + 3.0) * (Lm - 1) / 6.0), 0, Lm - 1).astype(jnp.int32)
    idx_h = jnp.clip(jnp.round((hr - 50.0) * (Lh - 1) / 150.0), 0, Lh - 1).astype(jnp.int32)

    # block the batch; keep >= 2 grid steps when possible so v7x's two TCs both get work
    block_b = max(8, min(block_b, 8 * pl.cdiv(pl.cdiv(B, 2), 8)))
    Bp = pl.cdiv(B, block_b) * block_b
    nb = Bp // block_b
    pad_b = Bp - B

    # interleave the 7 channel indices per (sample, timestep) into ONE flat SMEM array
    # (padded samples gather row 0; their results are discarded below)
    idx_all = jnp.concatenate([idx_m, idx_h[..., None]], axis=-1)        # (B, T, C)
    idx_flat = jnp.pad(idx_all, ((0, pad_b), (0, 0), (0, 0))).reshape(-1)

    def pad_reshape(a):                                      # (N, D) f32 -> (N, 8, Dl)
        a = jnp.pad(a.astype(jnp.float32), ((0, 0), (0, Dp - D)))
        return a.reshape(a.shape[0], _SUB, Dl)

    keys_f = keys.astype(jnp.float32)
    motion_r = pad_reshape(motion_tab)                                        # (Lm, 8, Dl)
    hr_r = pad_reshape(hr_tab)                                                # (Lh, 8, Dl)
    sgn_r = pad_reshape(1.0 - 2.0 * keys_f)                                   # (C, 8, Dl)
    thr_r = pad_reshape(C * 0.5 - jnp.sum(keys_f, axis=0, keepdims=True))[0]  # (8, Dl)
    cn = centroid.astype(jnp.float32)
    cn = cn / jnp.maximum(jnp.linalg.norm(cn, axis=1, keepdims=True), 1e-12)
    cdiff = cn[1] - cn[0]
    cdiff_r = pad_reshape(cdiff[None, :])[0]                                  # (8, Dl)
    csum_diff = jnp.sum(cdiff)                                                # scalar

    kernel = functools.partial(_hdc_kernel, seq_len=T, num_channels=C, block_b=block_b)

    def call(single_buffer_tables):
        if single_buffer_tables:
            # grid-invariant blocks: single-buffer them (no point double-buffering a
            # block whose index_map never changes)
            tbl = lambda shape, imap: pl.BlockSpec(shape, imap, pipeline_mode=pl.Buffered(1))
        else:
            tbl = lambda shape, imap: pl.BlockSpec(shape, imap)
        grid_spec = pltpu.PrefetchScalarGridSpec(
            num_scalar_prefetch=1,                           # interleaved level indices -> SMEM
            grid=(nb,),
            in_specs=[
                tbl((Lm, _SUB, Dl), lambda i, *_: (0, 0, 0)),   # motion level table
                tbl((Lh, _SUB, Dl), lambda i, *_: (0, 0, 0)),   # hr level table
                tbl((C, _SUB, Dl), lambda i, *_: (0, 0, 0)),    # per-channel signs
                tbl((_SUB, Dl), lambda i, *_: (0, 0)),          # channel-majority threshold
                tbl((_SUB, Dl), lambda i, *_: (0, 0)),          # normalized centroid difference
            ],
            out_specs=pl.BlockSpec((1, block_b), lambda i, *_: (i, 0)),  # one row per grid step
        )
        return pl.pallas_call(
            kernel,
            out_shape=jax.ShapeDtypeStruct((nb, block_b), jnp.float32),
            grid_spec=grid_spec,
            compiler_params=pltpu.CompilerParams(
                dimension_semantics=("parallel",),           # megacore-shardable batch axis
                vmem_limit_bytes=_vmem_limit_bytes()),
        )(idx_flat, motion_r, hr_r, sgn_r, thr_r, cdiff_r)

    try:
        m = call(True)       # single-buffered tables (preferred)
    except Exception:
        m = call(False)      # fallback: JAX without BlockSpec.pipeline_mode support

    m = m.reshape(-1)[:B]
    # probs[:, 1] = softmax([s0, s1])[1] = sigmoid(s1 - s0)
    # with hv = 2*maj - 1:  s1 - s0 = 2 * (maj . (c1n - c0n)) - sum(c1n - c0n)
    return jax.nn.sigmoid(2.0 * m - csum_diff)


# ---------------------------------------------------------------------------
# Pure-JAX reference (literal softmax path) for a correctness check.
# ---------------------------------------------------------------------------
def reference_forward(x, motion_tab, hr_tab, keys, centroid):
    B, T, C = x.shape
    Lm, Lh = motion_tab.shape[0], hr_tab.shape[0]
    motion = x[:, :, :C - 1]
    hr = x[:, :, C - 1]
    idx_m = jnp.clip(jnp.round((motion + 3.0) * (Lm - 1) / 6.0), 0, Lm - 1).astype(jnp.int32)
    idx_h = jnp.clip(jnp.round((hr - 50.0) * (Lh - 1) / 150.0), 0, Lh - 1).astype(jnp.int32)
    enc_m = motion_tab[idx_m]                                # (B, T, 6, D)
    enc_h = hr_tab[idx_h][:, :, None, :]                     # (B, T, 1, D)
    enc = jnp.concatenate([enc_m, enc_h], axis=2)            # (B, T, 7, D)
    bound = jnp.abs(enc - keys[None, None, :, :])            # XOR with keys
    maj7 = (bound.sum(axis=2) > C * 0.5).astype(jnp.float32)         # (B, T, D)
    majT = (2.0 * maj7.sum(axis=1) > T).astype(jnp.float32)          # (B, D)
    hv = 2.0 * majT - 1.0                                    # hard_quantize
    cnrm = centroid / jnp.maximum(jnp.linalg.norm(centroid, axis=1, keepdims=True), 1e-12)
    sim = hv @ cnrm.T
    probs = jax.nn.softmax(sim, axis=1)
    return probs[:, 1]


# ---------------------------------------------------------------------------
# Deterministic synthetic parameter construction.
# ---------------------------------------------------------------------------
def make_level_hvs(key, num_levels, dim):
    """BSC Level-style hypervectors: correlated levels via per-dim flip thresholds."""
    kb, kt = jax.random.split(key)
    base = jax.random.bernoulli(kb, 0.5, (dim,))
    thresh = jax.random.randint(kt, (dim,), 0, num_levels + 1)
    flip = jnp.arange(num_levels)[:, None] >= thresh[None, :]
    return jnp.logical_xor(base[None, :], flip).astype(jnp.float32)


if __name__ == "__main__":
    # small shapes: batch=2, seq=9 (odd -> no majority ties), channels=7, HD dim=1024
    B, T, C, D = 2, 9, 7, 1024
    L_MOTION, L_HR = 3000, 200                               # module-specified level counts

    key = jax.random.PRNGKey(0)
    k1, k2, k3, k4, k5, k6 = jax.random.split(key, 6)
    motion_tab = make_level_hvs(k1, L_MOTION, D)                         # Level(3000, D)
    hr_tab = make_level_hvs(k2, L_HR, D)                                 # Level(200, D)
    keys = jax.random.bernoulli(k3, 0.5, (C, D)).astype(jnp.float32)     # Random(7, D), BSC
    # torchhd Centroid zero-inits; use deterministic random weights for a non-degenerate demo
    centroid = jax.random.normal(k4, (2, D), jnp.float32)

    x_motion = jax.random.uniform(k5, (B, T, C - 1), minval=-3.0, maxval=3.0)
    x_hr = jax.random.uniform(k6, (B, T, 1), minval=50.0, maxval=200.0)
    x = jnp.concatenate([x_motion, x_hr], axis=-1).astype(jnp.float32)

    out = jax.block_until_ready(hdc_forward(x, motion_tab, hr_tab, keys, centroid))
    ref = jax.block_until_ready(reference_forward(x, motion_tab, hr_tab, keys, centroid))

    if not np.allclose(np.asarray(out), np.asarray(ref), atol=1e-5):
        raise AssertionError(f"kernel/ref mismatch: {out} vs {ref}")
    print("KERNEL_OK")
</pallas_src>

<mosaic_0001>
module attributes {stable_mosaic.version = 11 : i64} {
  func.func @_hdc_kernel(%arg0: i32, %arg1: memref<504xi32, #tpu.memory_space<smem>>, %arg2: memref<3000x8x128xf32, #tpu.memory_space<vmem>>, %arg3: memref<200x8x128xf32, #tpu.memory_space<vmem>>, %arg4: memref<7x8x128xf32, #tpu.memory_space<vmem>>, %arg5: memref<8x128xf32, #tpu.memory_space<vmem>>, %arg6: memref<8x128xf32, #tpu.memory_space<vmem>>, %arg7: memref<1x8xf32, #tpu.memory_space<vmem>>) attributes {dimension_semantics = [#tpu.dimension_semantics<parallel>], iteration_bounds = array<i64: 1>, scalar_prefetch = 1 : i64, scratch_operands = 0 : i64, tpu.core_type = #tpu.core_type<tc>, window_params = [{pipeline_mode = #tpu.pipeline_mode<synchronous>, transform_indices = @transform_0, window_bounds = array<i64: 3000, 8, 128>}, {pipeline_mode = #tpu.pipeline_mode<synchronous>, transform_indices = @transform_1, window_bounds = array<i64: 200, 8, 128>}, {pipeline_mode = #tpu.pipeline_mode<synchronous>, transform_indices = @transform_2, window_bounds = array<i64: 7, 8, 128>}, {pipeline_mode = #tpu.pipeline_mode<synchronous>, transform_indices = @transform_3, window_bounds = array<i64: 8, 128>}, {pipeline_mode = #tpu.pipeline_mode<synchronous>, transform_indices = @transform_4, window_bounds = array<i64: 8, 128>}, {transform_indices = @transform_5, window_bounds = array<i64: 1, 8>}]} {
    %c0 = arith.constant 0 : index
    %c0_0 = arith.constant 0 : index
    %c0_1 = arith.constant 0 : index
    %0 = vector.load %arg4[%c0, %c0_0, %c0_1] : memref<7x8x128xf32, #tpu.memory_space<vmem>>, vector<1x8x128xf32>
    %1 = vector.shape_cast %0 : vector<1x8x128xf32> to vector<8x128xf32>
    %c1 = arith.constant 1 : index
    %c0_2 = arith.constant 0 : index
    %c0_3 = arith.constant 0 : index
    %2 = vector.load %arg4[%c1, %c0_2, %c0_3] : memref<7x8x128xf32, #tpu.memory_space<vmem>>, vector<1x8x128xf32>
    %3 = vector.shape_cast %2 : vector<1x8x128xf32> to vector<8x128xf32>
    %c2 = arith.constant 2 : index
    %c0_4 = arith.constant 0 : index
    %c0_5 = arith.constant 0 : index
    %4 = vector.load %arg4[%c2, %c0_4, %c0_5] : memref<7x8x128xf32, #tpu.memory_space<vmem>>, vector<1x8x128xf32>
    %5 = vector.shape_cast %4 : vector<1x8x128xf32> to vector<8x128xf32>
    %c3 = arith.constant 3 : index
    %c0_6 = arith.constant 0 : index
    %c0_7 = arith.constant 0 : index
    %6 = vector.load %arg4[%c3, %c0_6, %c0_7] : memref<7x8x128xf32, #tpu.memory_space<vmem>>, vector<1x8x128xf32>
    %7 = vector.shape_cast %6 : vector<1x8x128xf32> to vector<8x128xf32>
    %c4 = arith.constant 4 : index
    %c0_8 = arith.constant 0 : index
    %c0_9 = arith.constant 0 : index
    %8 = vector.load %arg4[%c4, %c0_8, %c0_9] : memref<7x8x128xf32, #tpu.memory_space<vmem>>, vector<1x8x128xf32>
    %9 = vector.shape_cast %8 : vector<1x8x128xf32> to vector<8x128xf32>
    %c5 = arith.constant 5 : index
    %c0_10 = arith.constant 0 : index
    %c0_11 = arith.constant 0 : index
    %10 = vector.load %arg4[%c5, %c0_10, %c0_11] : memref<7x8x128xf32, #tpu.memory_space<vmem>>, vector<1x8x128xf32>
    %11 = vector.shape_cast %10 : vector<1x8x128xf32> to vector<8x128xf32>
    %c6 = arith.constant 6 : index
    %c0_12 = arith.constant 0 : index
    %c0_13 = arith.constant 0 : index
    %12 = vector.load %arg4[%c6, %c0_12, %c0_13] : memref<7x8x128xf32, #tpu.memory_space<vmem>>, vector<1x8x128xf32>
    %13 = vector.shape_cast %12 : vector<1x8x128xf32> to vector<8x128xf32>
    %c0_14 = arith.constant 0 : index
    %c0_15 = arith.constant 0 : index
    %14 = vector.load %arg5[%c0_14, %c0_15] : memref<8x128xf32, #tpu.memory_space<vmem>>, vector<8x128xf32>
    %c0_16 = arith.constant 0 : index
    %c0_17 = arith.constant 0 : index
    %15 = vector.load %arg6[%c0_16, %c0_17] : memref<8x128xf32, #tpu.memory_space<vmem>>, vector<8x128xf32>
    %cst = arith.constant 0.000000e+00 : f32
    %16 = vector.broadcast %cst : f32 to vector<8x128xf32>
    %17 = tpu.iota {dimensions = array<i32: 1>} : vector<1x8xi32>
    %cst_18 = arith.constant 0.000000e+00 : f32
    %18 = vector.broadcast %cst_18 : f32 to vector<1x8xf32>
    %cst_19 = arith.constant 9.000000e+00 : f32
    %c0_i32 = arith.constant 0 : i32
    %c8_i32 = arith.constant 8 : i32
    %19 = arith.addi %c0_i32, %c8_i32 : i32
    %c1_i32 = arith.constant 1 : i32
    %20 = scf.for %arg8 = %c0_i32 to %19 step %c1_i32 iter_args(%arg9 = %18) -> (vector<1x8xf32>)  : i32 {
      %c8_i32_23 = arith.constant 8 : i32
      %22 = arith.muli %arg0, %c8_i32_23 : i32
      %23 = arith.addi %22, %arg8 : i32
      %c63_i32 = arith.constant 63 : i32
      %24 = arith.muli %23, %c63_i32 : i32
      %c0_i32_24 = arith.constant 0 : i32
      %c7_i32 = arith.constant 7 : i32
      %25 = arith.muli %c0_i32_24, %c7_i32 : i32
      %26 = arith.addi %24, %25 : i32
      %27 = arith.index_cast %26 : i32 to index
      %28 = memref.load %arg1[%27] : memref<504xi32, #tpu.memory_space<smem>>
      %29 = arith.index_cast %28 : i32 to index
      %c0_25 = arith.constant 0 : index
      %c0_26 = arith.constant 0 : index
      %30 = vector.load %arg2[%29, %c0_25, %c0_26] : memref<3000x8x128xf32, #tpu.memory_space<vmem>>, vector<1x8x128xf32>
      %31 = vector.shape_cast %30 : vector<1x8x128xf32> to vector<8x128xf32>
      %32 = arith.mulf %31, %1 : vector<8x128xf32>
      %c1_i32_27 = arith.constant 1 : i32
      %33 = arith.addi %26, %c1_i32_27 : i32
      %34 = arith.index_cast %33 : i32 to index
      %35 = memref.load %arg1[%34] : memref<504xi32, #tpu.memory_space<smem>>
      %36 = arith.index_cast %35 : i32 to index
      %c0_28 = arith.constant 0 : index
      %c0_29 = arith.constant 0 : index
      %37 = vector.load %arg2[%36, %c0_28, %c0_29] : memref<3000x8x128xf32, #tpu.memory_space<vmem>>, vector<1x8x128xf32>
      %38 = vector.shape_cast %37 : vector<1x8x128xf32> to vector<8x128xf32>
      %39 = arith.mulf %38, %3 : vector<8x128xf32>
      %40 = arith.addf %32, %39 : vector<8x128xf32>
      %c2_i32 = arith.constant 2 : i32
      %41 = arith.addi %26, %c2_i32 : i32
      %42 = arith.index_cast %41 : i32 to index
      %43 = memref.load %arg1[%42] : memref<504xi32, #tpu.memory_space<smem>>
      %44 = arith.index_cast %43 : i32 to index
      %c0_30 = arith.constant 0 : index
      %c0_31 = arith.constant 0 : index
      %45 = vector.load %arg2[%44, %c0_30, %c0_31] : memref<3000x8x128xf32, #tpu.memory_space<vmem>>, vector<1x8x128xf32>
      %46 = vector.shape_cast %45 : vector<1x8x128xf32> to vector<8x128xf32>
      %47 = arith.mulf %46, %5 : vector<8x128xf32>
      %48 = arith.addf %40, %47 : vector<8x128xf32>
      %c3_i32 = arith.constant 3 : i32
      %49 = arith.addi %26, %c3_i32 : i32
      %50 = arith.index_cast %49 : i32 to index
      %51 = memref.load %arg1[%50] : memref<504xi32, #tpu.memory_space<smem>>
      %52 = arith.index_cast %51 : i32 to index
      %c0_32 = arith.constant 0 : index
      %c0_33 = arith.constant 0 : index
      %53 = vector.load %arg2[%52, %c0_32, %c0_33] : memref<3000x8x128xf32, #tpu.memory_space<vmem>>, vector<1x8x128xf32>
      %54 = vector.shape_cast %53 : vector<1x8x128xf32> to vector<8x128xf32>
      %55 = arith.mulf %54, %7 : vector<8x128xf32>
      %56 = arith.addf %48, %55 : vector<8x128xf32>
      %c4_i32 = arith.constant 4 : i32
      %57 = arith.addi %26, %c4_i32 : i32
      %58 = arith.index_cast %57 : i32 to index
      %59 = memref.load %arg1[%58] : memref<504xi32, #tpu.memory_space<smem>>
      %60 = arith.index_cast %59 : i32 to index
      %c0_34 = arith.constant 0 : index
      %c0_35 = arith.constant 0 : index
      %61 = vector.load %arg2[%60, %c0_34, %c0_35] : memref<3000x8x128xf32, #tpu.memory_space<vmem>>, vector<1x8x128xf32>
      %62 = vector.shape_cast %61 : vector<1x8x128xf32> to vector<8x128xf32>
      %63 = arith.mulf %62, %9 : vector<8x128xf32>
      %64 = arith.addf %56, %63 : vector<8x128xf32>
      %c5_i32 = arith.constant 5 : i32
      %65 = arith.addi %26, %c5_i32 : i32
      %66 = arith.index_cast %65 : i32 to index
      %67 = memref.load %arg1[%66] : memref<504xi32, #tpu.memory_space<smem>>
      %68 = arith.index_cast %67 : i32 to index
      %c0_36 = arith.constant 0 : index
      %c0_37 = arith.constant 0 : index
      %69 = vector.load %arg2[%68, %c0_36, %c0_37] : memref<3000x8x128xf32, #tpu.memory_space<vmem>>, vector<1x8x128xf32>
      %70 = vector.shape_cast %69 : vector<1x8x128xf32> to vector<8x128xf32>
      %71 = arith.mulf %70, %11 : vector<8x128xf32>
      %72 = arith.addf %64, %71 : vector<8x128xf32>
      %c6_i32 = arith.constant 6 : i32
      %73 = arith.addi %26, %c6_i32 : i32
      %74 = arith.index_cast %73 : i32 to index
      %75 = memref.load %arg1[%74] : memref<504xi32, #tpu.memory_space<smem>>
      %76 = arith.index_cast %75 : i32 to index
      %c0_38 = arith.constant 0 : index
      %c0_39 = arith.constant 0 : index
      %77 = vector.load %arg3[%76, %c0_38, %c0_39] : memref<200x8x128xf32, #tpu.memory_space<vmem>>, vector<1x8x128xf32>
      %78 = vector.shape_cast %77 : vector<1x8x128xf32> to vector<8x128xf32>
      %79 = arith.mulf %78, %13 : vector<8x128xf32>
      %80 = arith.addf %72, %79 : vector<8x128xf32>
      %81 = arith.cmpf ogt, %80, %14 : vector<8x128xf32>
      %82 = arith.extui %81 : vector<8x128xi1> to vector<8x128xi32>
      %83 = arith.sitofp %82 : vector<8x128xi32> to vector<8x128xf32>
      %84 = arith.addf %16, %83 : vector<8x128xf32>
      %c1_i32_40 = arith.constant 1 : i32
      %c7_i32_41 = arith.constant 7 : i32
      %85 = arith.muli %c1_i32_40, %c7_i32_41 : i32
      %86 = arith.addi %24, %85 : i32
      %87 = arith.index_cast %86 : i32 to index
      %88 = memref.load %arg1[%87] : memref<504xi32, #tpu.memory_space<smem>>
      %89 = arith.index_cast %88 : i32 to index
      %c0_42 = arith.constant 0 : index
      %c0_43 = arith.constant 0 : index
      %90 = vector.load %arg2[%89, %c0_42, %c0_43] : memref<3000x8x128xf32, #tpu.memory_space<vmem>>, vector<1x8x128xf32>
      %91 = vector.shape_cast %90 : vector<1x8x128xf32> to vector<8x128xf32>
      %92 = arith.mulf %91, %1 : vector<8x128xf32>
      %c1_i32_44 = arith.constant 1 : i32
      %93 = arith.addi %86, %c1_i32_44 : i32
      %94 = arith.index_cast %93 : i32 to index
      %95 = memref.load %arg1[%94] : memref<504xi32, #tpu.memory_space<smem>>
      %96 = arith.index_cast %95 : i32 to index
      %c0_45 = arith.constant 0 : index
      %c0_46 = arith.constant 0 : index
      %97 = vector.load %arg2[%96, %c0_45, %c0_46] : memref<3000x8x128xf32, #tpu.memory_space<vmem>>, vector<1x8x128xf32>
      %98 = vector.shape_cast %97 : vector<1x8x128xf32> to vector<8x128xf32>
      %99 = arith.mulf %98, %3 : vector<8x128xf32>
      %100 = arith.addf %92, %99 : vector<8x128xf32>
      %c2_i32_47 = arith.constant 2 : i32
      %101 = arith.addi %86, %c2_i32_47 : i32
      %102 = arith.index_cast %101 : i32 to index
      %103 = memref.load %arg1[%102] : memref<504xi32, #tpu.memory_space<smem>>
      %104 = arith.index_cast %103 : i32 to index
      %c0_48 = arith.constant 0 : index
      %c0_49 = arith.constant 0 : index
      %105 = vector.load %arg2[%104, %c0_48, %c0_49] : memref<3000x8x128xf32, #tpu.memory_space<vmem>>, vector<1x8x128xf32>
      %106 = vector.shape_cast %105 : vector<1x8x128xf32> to vector<8x128xf32>
      %107 = arith.mulf %106, %5 : vector<8x128xf32>
      %108 = arith.addf %100, %107 : vector<8x128xf32>
      %c3_i32_50 = arith.constant 3 : i32
      %109 = arith.addi %86, %c3_i32_50 : i32
      %110 = arith.index_cast %109 : i32 to index
      %111 = memref.load %arg1[%110] : memref<504xi32, #tpu.memory_space<smem>>
      %112 = arith.index_cast %111 : i32 to index
      %c0_51 = arith.constant 0 : index
      %c0_52 = arith.constant 0 : index
      %113 = vector.load %arg2[%112, %c0_51, %c0_52] : memref<3000x8x128xf32, #tpu.memory_space<vmem>>, vector<1x8x128xf32>
      %114 = vector.shape_cast %113 : vector<1x8x128xf32> to vector<8x128xf32>
      %115 = arith.mulf %114, %7 : vector<8x128xf32>
      %116 = arith.addf %108, %115 : vector<8x128xf32>
      %c4_i32_53 = arith.constant 4 : i32
      %117 = arith.addi %86, %c4_i32_53 : i32
      %118 = arith.index_cast %117 : i32 to index
      %119 = memref.load %arg1[%118] : memref<504xi32, #tpu.memory_space<smem>>
      %120 = arith.index_cast %119 : i32 to index
      %c0_54 = arith.constant 0 : index
      %c0_55 = arith.constant 0 : index
      %121 = vector.load %arg2[%120, %c0_54, %c0_55] : memref<3000x8x128xf32, #tpu.memory_space<vmem>>, vector<1x8x128xf32>
      %122 = vector.shape_cast %121 : vector<1x8x128xf32> to vector<8x128xf32>
      %123 = arith.mulf %122, %9 : vector<8x128xf32>
      %124 = arith.addf %116, %123 : vector<8x128xf32>
      %c5_i32_56 = arith.constant 5 : i32
      %125 = arith.addi %86, %c5_i32_56 : i32
      %126 = arith.index_cast %125 : i32 to index
      %127 = memref.load %arg1[%126] : memref<504xi32, #tpu.memory_space<smem>>
      %128 = arith.index_cast %127 : i32 to index
      %c0_57 = arith.constant 0 : index
      %c0_58 = arith.constant 0 : index
      %129 = vector.load %arg2[%128, %c0_57, %c0_58] : memref<3000x8x128xf32, #tpu.memory_space<vmem>>, vector<1x8x128xf32>
      %130 = vector.shape_cast %129 : vector<1x8x128xf32> to vector<8x128xf32>
      %131 = arith.mulf %130, %11 : vector<8x128xf32>
      %132 = arith.addf %124, %131 : vector<8x128xf32>
      %c6_i32_59 = arith.constant 6 : i32
      %133 = arith.addi %86, %c6_i32_59 : i32
      %134 = arith.index_cast %133 : i32 to index
      %135 = memref.load %arg1[%134] : memref<504xi32, #tpu.memory_space<smem>>
      %136 = arith.index_cast %135 : i32 to index
      %c0_60 = arith.constant 0 : index
      %c0_61 = arith.constant 0 : index
      %137 = vector.load %arg3[%136, %c0_60, %c0_61] : memref<200x8x128xf32, #tpu.memory_space<vmem>>, vector<1x8x128xf32>
      %138 = vector.shape_cast %137 : vector<1x8x128xf32> to vector<8x128xf32>
      %139 = arith.mulf %138, %13 : vector<8x128xf32>
      %140 = arith.addf %132, %139 : vector<8x128xf32>
      %141 = arith.cmpf ogt, %140, %14 : vector<8x128xf32>
      %142 = arith.extui %141 : vector<8x128xi1> to vector<8x128xi32>
      %143 = arith.sitofp %142 : vector<8x128xi32> to vector<8x128xf32>
      %144 = arith.addf %84, %143 : vector<8x128xf32>
      %c2_i32_62 = arith.constant 2 : i32
      %c7_i32_63 = arith.constant 7 : i32
      %145 = arith.muli %c2_i32_62, %c7_i32_63 : i32
      %146 = arith.addi %24, %145 : i32
      %147 = arith.index_cast %146 : i32 to index
      %148 = memref.load %arg1[%147] : memref<504xi32, #tpu.memory_space<smem>>
      %149 = arith.index_cast %148 : i32 to index
      %c0_64 = arith.constant 0 : index
      %c0_65 = arith.constant 0 : index
      %150 = vector.load %arg2[%149, %c0_64, %c0_65] : memref<3000x8x128xf32, #tpu.memory_space<vmem>>, vector<1x8x128xf32>
      %151 = vector.shape_cast %150 : vector<1x8x128xf32> to vector<8x128xf32>
      %152 = arith.mulf %151, %1 : vector<8x128xf32>
      %c1_i32_66 = arith.constant 1 : i32
      %153 = arith.addi %146, %c1_i32_66 : i32
      %154 = arith.index_cast %153 : i32 to index
      %155 = memref.load %arg1[%154] : memref<504xi32, #tpu.memory_space<smem>>
      %156 = arith.index_cast %155 : i32 to index
      %c0_67 = arith.constant 0 : index
      %c0_68 = arith.constant 0 : index
      %157 = vector.load %arg2[%156, %c0_67, %c0_68] : memref<3000x8x128xf32, #tpu.memory_space<vmem>>, vector<1x8x128xf32>
      %158 = vector.shape_cast %157 : vector<1x8x128xf32> to vector<8x128xf32>
      %159 = arith.mulf %158, %3 : vector<8x128xf32>
      %160 = arith.addf %152, %159 : vector<8x128xf32>
      %c2_i32_69 = arith.constant 2 : i32
      %161 = arith.addi %146, %c2_i32_69 : i32
      %162 = arith.index_cast %161 : i32 to index
      %163 = memref.load %arg1[%162] : memref<504xi32, #tpu.memory_space<smem>>
      %164 = arith.index_cast %163 : i32 to index
      %c0_70 = arith.constant 0 : index
      %c0_71 = arith.constant 0 : index
      %165 = vector.load %arg2[%164, %c0_70, %c0_71] : memref<3000x8x128xf32, #tpu.memory_space<vmem>>, vector<1x8x128xf32>
      %166 = vector.shape_cast %165 : vector<1x8x128xf32> to vector<8x128xf32>
      %167 = arith.mulf %166, %5 : vector<8x128xf32>
      %168 = arith.addf %160, %167 : vector<8x128xf32>
      %c3_i32_72 = arith.constant 3 : i32
      %169 = arith.addi %146, %c3_i32_72 : i32
      %170 = arith.index_cast %169 : i32 to index
      %171 = memref.load %arg1[%170] : memref<504xi32, #tpu.memory_space<smem>>
      %172 = arith.index_cast %171 : i32 to index
      %c0_73 = arith.constant 0 : index
      %c0_74 = arith.constant 0 : index
      %173 = vector.load %arg2[%172, %c0_73, %c0_74] : memref<3000x8x128xf32, #tpu.memory_space<vmem>>, vector<1x8x128xf32>
      %174 = vector.shape_cast %173 : vector<1x8x128xf32> to vector<8x128xf32>
      %175 = arith.mulf %174, %7 : vector<8x128xf32>
      %176 = arith.addf %168, %175 : vector<8x128xf32>
      %c4_i32_75 = arith.constant 4 : i32
      %177 = arith.addi %146, %c4_i32_75 : i32
      %178 = arith.index_cast %177 : i32 to index
      %179 = memref.load %arg1[%178] : memref<504xi32, #tpu.memory_space<smem>>
      %180 = arith.index_cast %179 : i32 to index
      %c0_76 = arith.constant 0 : index
      %c0_77 = arith.constant 0 : index
      %181 = vector.load %arg2[%180, %c0_76, %c0_77] : memref<3000x8x128xf32, #tpu.memory_space<vmem>>, vector<1x8x128xf32>
      %182 = vector.shape_cast %181 : vector<1x8x128xf32> to vector<8x128xf32>
      %183 = arith.mulf %182, %9 : vector<8x128xf32>
      %184 = arith.addf %176, %183 : vector<8x128xf32>
      %c5_i32_78 = arith.constant 5 : i32
      %185 = arith.addi %146, %c5_i32_78 : i32
      %186 = arith.index_cast %185 : i32 to index
      %187 = memref.load %arg1[%186] : memref<504xi32, #tpu.memory_space<smem>>
      %188 = arith.index_cast %187 : i32 to index
      %c0_79 = arith.constant 0 : index
      %c0_80 = arith.constant 0 : index
      %189 = vector.load %arg2[%188, %c0_79, %c0_80] : memref<3000x8x128xf32, #tpu.memory_space<vmem>>, vector<1x8x128xf32>
      %190 = vector.shape_cast %189 : vector<1x8x128xf32> to vector<8x128xf32>
      %191 = arith.mulf %190, %11 : vector<8x128xf32>
      %192 = arith.addf %184, %191 : vector<8x128xf32>
      %c6_i32_81 = arith.constant 6 : i32
      %193 = arith.addi %146, %c6_i32_81 : i32
      %194 = arith.index_cast %193 : i32 to index
      %195 = memref.load %arg1[%194] : memref<504xi32, #tpu.memory_space<smem>>
      %196 = arith.index_cast %195 : i32 to index
      %c0_82 = arith.constant 0 : index
      %c0_83 = arith.constant 0 : index
      %197 = vector.load %arg3[%196, %c0_82, %c0_83] : memref<200x8x128xf32, #tpu.memory_space<vmem>>, vector<1x8x128xf32>
      %198 = vector.shape_cast %197 : vector<1x8x128xf32> to vector<8x128xf32>
      %199 = arith.mulf %198, %13 : vector<8x128xf32>
      %200 = arith.addf %192, %199 : vector<8x128xf32>
      %201 = arith.cmpf ogt, %200, %14 : vector<8x128xf32>
      %202 = arith.extui %201 : vector<8x128xi1> to vector<8x128xi32>
      %203 = arith.sitofp %202 : vector<8x128xi32> to vector<8x128xf32>
      %204 = arith.addf %144, %203 : vector<8x128xf32>
      %c3_i32_84 = arith.constant 3 : i32
      %c7_i32_85 = arith.constant 7 : i32
      %205 = arith.muli %c3_i32_84, %c7_i32_85 : i32
      %206 = arith.addi %24, %205 : i32
      %207 = arith.index_cast %206 : i32 to index
      %208 = memref.load %arg1[%207] : memref<504xi32, #tpu.memory_space<smem>>
      %209 = arith.index_cast %208 : i32 to index
      %c0_86 = arith.constant 0 : index
      %c0_87 = arith.constant 0 : index
      %210 = vector.load %arg2[%209, %c0_86, %c0_87] : memref<3000x8x128xf32, #tpu.memory_space<vmem>>, vector<1x8x128xf32>
      %211 = vector.shape_cast %210 : vector<1x8x128xf32> to vector<8x128xf32>
      %212 = arith.mulf %211, %1 : vector<8x128xf32>
      %c1_i32_88 = arith.constant 1 : i32
      %213 = arith.addi %206, %c1_i32_88 : i32
      %214 = arith.index_cast %213 : i32 to index
      %215 = memref.load %arg1[%214] : memref<504xi32, #tpu.memory_space<smem>>
      %216 = arith.index_cast %215 : i32 to index
      %c0_89 = arith.constant 0 : index
      %c0_90 = arith.constant 0 : index
      %217 = vector.load %arg2[%216, %c0_89, %c0_90] : memref<3000x8x128xf32, #tpu.memory_space<vmem>>, vector<1x8x128xf32>
      %218 = vector.shape_cast %217 : vector<1x8x128xf32> to vector<8x128xf32>
      %219 = arith.mulf %218, %3 : vector<8x128xf32>
      %220 = arith.addf %212, %219 : vector<8x128xf32>
      %c2_i32_91 = arith.constant 2 : i32
      %221 = arith.addi %206, %c2_i32_91 : i32
      %222 = arith.index_cast %221 : i32 to index
      %223 = memref.load %arg1[%222] : memref<504xi32, #tpu.memory_space<smem>>
      %224 = arith.index_cast %223 : i32 to index
      %c0_92 = arith.constant 0 : index
      %c0_93 = arith.constant 0 : index
      %225 = vector.load %arg2[%224, %c0_92, %c0_93] : memref<3000x8x128xf32, #tpu.memory_space<vmem>>, vector<1x8x128xf32>
      %226 = vector.shape_cast %225 : vector<1x8x128xf32> to vector<8x128xf32>
      %227 = arith.mulf %226, %5 : vector<8x128xf32>
      %228 = arith.addf %220, %227 : vector<8x128xf32>
      %c3_i32_94 = arith.constant 3 : i32
      %229 = arith.addi %206, %c3_i32_94 : i32
      %230 = arith.index_cast %229 : i32 to index
      %231 = memref.load %arg1[%230] : memref<504xi32, #tpu.memory_space<smem>>
      %232 = arith.index_cast %231 : i32 to index
      %c0_95 = arith.constant 0 : index
      %c0_96 = arith.constant 0 : index
      %233 = vector.load %arg2[%232, %c0_95, %c0_96] : memref<3000x8x128xf32, #tpu.memory_space<vmem>>, vector<1x8x128xf32>
      %234 = vector.shape_cast %233 : vector<1x8x128xf32> to vector<8x128xf32>
      %235 = arith.mulf %234, %7 : vector<8x128xf32>
      %236 = arith.addf %228, %235 : vector<8x128xf32>
      %c4_i32_97 = arith.constant 4 : i32
      %237 = arith.addi %206, %c4_i32_97 : i32
      %238 = arith.index_cast %237 : i32 to index
      %239 = memref.load %arg1[%238] : memref<504xi32, #tpu.memory_space<smem>>
      %240 = arith.index_cast %239 : i32 to index
      %c0_98 = arith.constant 0 : index
      %c0_99 = arith.constant 0 : index
      %241 = vector.load %arg2[%240, %c0_98, %c0_99] : memref<3000x8x128xf32, #tpu.memory_space<vmem>>, vector<1x8x128xf32>
      %242 = vector.shape_cast %241 : vector<1x8x128xf32> to vector<8x128xf32>
      %243 = arith.mulf %242, %9 : vector<8x128xf32>
      %244 = arith.addf %236, %243 : vector<8x128xf32>
      %c5_i32_100 = arith.constant 5 : i32
      %245 = arith.addi %206, %c5_i32_100 : i32
      %246 = arith.index_cast %245 : i32 to index
      %247 = memref.load %arg1[%246] : memref<504xi32, #tpu.memory_space<smem>>
      %248 = arith.index_cast %247 : i32 to index
      %c0_101 = arith.constant 0 : index
      %c0_102 = arith.constant 0 : index
      %249 = vector.load %arg2[%248, %c0_101, %c0_102] : memref<3000x8x128xf32, #tpu.memory_space<vmem>>, vector<1x8x128xf32>
      %250 = vector.shape_cast %249 : vector<1x8x128xf32> to vector<8x128xf32>
      %251 = arith.mulf %250, %11 : vector<8x128xf32>
      %252 = arith.addf %244, %251 : vector<8x128xf32>
      %c6_i32_103 = arith.constant 6 : i32
      %253 = arith.addi %206, %c6_i32_103 : i32
      %254 = arith.index_cast %253 : i32 to index
      %255 = memref.load %arg1[%254] : memref<504xi32, #tpu.memory_space<smem>>
      %256 = arith.index_cast %255 : i32 to index
      %c0_104 = arith.constant 0 : index
      %c0_105 = arith.constant 0 : index
      %257 = vector.load %arg3[%256, %c0_104, %c0_105] : memref<200x8x128xf32, #tpu.memory_space<vmem>>, vector<1x8x128xf32>
      %258 = vector.shape_cast %257 : vector<1x8x128xf32> to vector<8x128xf32>
      %259 = arith.mulf %258, %13 : vector<8x128xf32>
      %260 = arith.addf %252, %259 : vector<8x128xf32>
      %261 = arith.cmpf ogt, %260, %14 : vector<8x128xf32>
      %262 = arith.extui %261 : vector<8x128xi1> to vector<8x128xi32>
      %263 = arith.sitofp %262 : vector<8x128xi32> to vector<8x128xf32>
      %264 = arith.addf %204, %263 : vector<8x128xf32>
      %c4_i32_106 = arith.constant 4 : i32
      %c7_i32_107 = arith.constant 7 : i32
      %265 = arith.muli %c4_i32_106, %c7_i32_107 : i32
      %266 = arith.addi %24, %265 : i32
      %267 = arith.index_cast %266 : i32 to index
      %268 = memref.load %arg1[%267] : memref<504xi32, #tpu.memory_space<smem>>
      %269 = arith.index_cast %268 : i32 to index
      %c0_108 = arith.constant 0 : index
      %c0_109 = arith.constant 0 : index
      %270 = vector.load %arg2[%269, %c0_108, %c0_109] : memref<3000x8x128xf32, #tpu.memory_space<vmem>>, vector<1x8x128xf32>
      %271 = vector.shape_cast %270 : vector<1x8x128xf32> to vector<8x128xf32>
      %272 = arith.mulf %271, %1 : vector<8x128xf32>
      %c1_i32_110 = arith.constant 1 : i32
      %273 = arith.addi %266, %c1_i32_110 : i32
      %274 = arith.index_cast %273 : i32 to index
      %275 = memref.load %arg1[%274] : memref<504xi32, #tpu.memory_space<smem>>
      %276 = arith.index_cast %275 : i32 to index
      %c0_111 = arith.constant 0 : index
      %c0_112 = arith.constant 0 : index
      %277 = vector.load %arg2[%276, %c0_111, %c0_112] : memref<3000x8x128xf32, #tpu.memory_space<vmem>>, vector<1x8x128xf32>
      %278 = vector.shape_cast %277 : vector<1x8x128xf32> to vector<8x128xf32>
      %279 = arith.mulf %278, %3 : vector<8x128xf32>
      %280 = arith.addf %272, %279 : vector<8x128xf32>
      %c2_i32_113 = arith.constant 2 : i32
      %281 = arith.addi %266, %c2_i32_113 : i32
      %282 = arith.index_cast %281 : i32 to index
      %283 = memref.load %arg1[%282] : memref<504xi32, #tpu.memory_space<smem>>
      %284 = arith.index_cast %283 : i32 to index
      %c0_114 = arith.constant 0 : index
      %c0_115 = arith.constant 0 : index
      %285 = vector.load %arg2[%284, %c0_114, %c0_115] : memref<3000x8x128xf32, #tpu.memory_space<vmem>>, vector<1x8x128xf32>
      %286 = vector.shape_cast %285 : vector<1x8x128xf32> to vector<8x128xf32>
      %287 = arith.mulf %286, %5 : vector<8x128xf32>
      %288 = arith.addf %280, %287 : vector<8x128xf32>
      %c3_i32_116 = arith.constant 3 : i32
      %289 = arith.addi %266, %c3_i32_116 : i32
      %290 = arith.index_cast %289 : i32 to index
      %291 = memref.load %arg1[%290] : memref<504xi32, #tpu.memory_space<smem>>
      %292 = arith.index_cast %291 : i32 to index
      %c0_117 = arith.constant 0 : index
      %c0_118 = arith.constant 0 : index
      %293 = vector.load %arg2[%292, %c0_117, %c0_118] : memref<3000x8x128xf32, #tpu.memory_space<vmem>>, vector<1x8x128xf32>
      %294 = vector.shape_cast %293 : vector<1x8x128xf32> to vector<8x128xf32>
      %295 = arith.mulf %294, %7 : vector<8x128xf32>
      %296 = arith.addf %288, %295 : vector<8x128xf32>
      %c4_i32_119 = arith.constant 4 : i32
      %297 = arith.addi %266, %c4_i32_119 : i32
      %298 = arith.index_cast %297 : i32 to index
      %299 = memref.load %arg1[%298] : memref<504xi32, #tpu.memory_space<smem>>
      %300 = arith.index_cast %299 : i32 to index
      %c0_120 = arith.constant 0 : index
      %c0_121 = arith.constant 0 : index
      %301 = vector.load %arg2[%300, %c0_120, %c0_121] : memref<3000x8x128xf32, #tpu.memory_space<vmem>>, vector<1x8x128xf32>
      %302 = vector.shape_cast %301 : vector<1x8x128xf32> to vector<8x128xf32>
      %303 = arith.mulf %302, %9 : vector<8x128xf32>
      %304 = arith.addf %296, %303 : vector<8x128xf32>
      %c5_i32_122 = arith.constant 5 : i32
      %305 = arith.addi %266, %c5_i32_122 : i32
      %306 = arith.index_cast %305 : i32 to index
      %307 = memref.load %arg1[%306] : memref<504xi32, #tpu.memory_space<smem>>
      %308 = arith.index_cast %307 : i32 to index
      %c0_123 = arith.constant 0 : index
      %c0_124 = arith.constant 0 : index
      %309 = vector.load %arg2[%308, %c0_123, %c0_124] : memref<3000x8x128xf32, #tpu.memory_space<vmem>>, vector<1x8x128xf32>
      %310 = vector.shape_cast %309 : vector<1x8x128xf32> to vector<8x128xf32>
      %311 = arith.mulf %310, %11 : vector<8x128xf32>
      %312 = arith.addf %304, %311 : vector<8x128xf32>
      %c6_i32_125 = arith.constant 6 : i32
      %313 = arith.addi %266, %c6_i32_125 : i32
      %314 = arith.index_cast %313 : i32 to index
      %315 = memref.load %arg1[%314] : memref<504xi32, #tpu.memory_space<smem>>
      %316 = arith.index_cast %315 : i32 to index
      %c0_126 = arith.constant 0 : index
      %c0_127 = arith.constant 0 : index
      %317 = vector.load %arg3[%316, %c0_126, %c0_127] : memref<200x8x128xf32, #tpu.memory_space<vmem>>, vector<1x8x128xf32>
      %318 = vector.shape_cast %317 : vector<1x8x128xf32> to vector<8x128xf32>
      %319 = arith.mulf %318, %13 : vector<8x128xf32>
      %320 = arith.addf %312, %319 : vector<8x128xf32>
      %321 = arith.cmpf ogt, %320, %14 : vector<8x128xf32>
      %322 = arith.extui %321 : vector<8x128xi1> to vector<8x128xi32>
      %323 = arith.sitofp %322 : vector<8x128xi32> to vector<8x128xf32>
      %324 = arith.addf %264, %323 : vector<8x128xf32>
      %c5_i32_128 = arith.constant 5 : i32
      %c7_i32_129 = arith.constant 7 : i32
      %325 = arith.muli %c5_i32_128, %c7_i32_129 : i32
      %326 = arith.addi %24, %325 : i32
      %327 = arith.index_cast %326 : i32 to index
      %328 = memref.load %arg1[%327] : memref<504xi32, #tpu.memory_space<smem>>
      %329 = arith.index_cast %328 : i32 to index
      %c0_130 = arith.constant 0 : index
      %c0_131 = arith.constant 0 : index
      %330 = vector.load %arg2[%329, %c0_130, %c0_131] : memref<3000x8x128xf32, #tpu.memory_space<vmem>>, vector<1x8x128xf32>
      %331 = vector.shape_cast %330 : vector<1x8x128xf32> to vector<8x128xf32>
      %332 = arith.mulf %331, %1 : vector<8x128xf32>
      %c1_i32_132 = arith.constant 1 : i32
      %333 = arith.addi %326, %c1_i32_132 : i32
      %334 = arith.index_cast %333 : i32 to index
      %335 = memref.load %arg1[%334] : memref<504xi32, #tpu.memory_space<smem>>
      %336 = arith.index_cast %335 : i32 to index
      %c0_133 = arith.constant 0 : index
      %c0_134 = arith.constant 0 : index
      %337 = vector.load %arg2[%336, %c0_133, %c0_134] : memref<3000x8x128xf32, #tpu.memory_space<vmem>>, vector<1x8x128xf32>
      %338 = vector.shape_cast %337 : vector<1x8x128xf32> to vector<8x128xf32>
      %339 = arith.mulf %338, %3 : vector<8x128xf32>
      %340 = arith.addf %332, %339 : vector<8x128xf32>
      %c2_i32_135 = arith.constant 2 : i32
      %341 = arith.addi %326, %c2_i32_135 : i32
      %342 = arith.index_cast %341 : i32 to index
      %343 = memref.load %arg1[%342] : memref<504xi32, #tpu.memory_space<smem>>
      %344 = arith.index_cast %343 : i32 to index
      %c0_136 = arith.constant 0 : index
      %c0_137 = arith.constant 0 : index
      %345 = vector.load %arg2[%344, %c0_136, %c0_137] : memref<3000x8x128xf32, #tpu.memory_space<vmem>>, vector<1x8x128xf32>
      %346 = vector.shape_cast %345 : vector<1x8x128xf32> to vector<8x128xf32>
      %347 = arith.mulf %346, %5 : vector<8x128xf32>
      %348 = arith.addf %340, %347 : vector<8x128xf32>
      %c3_i32_138 = arith.constant 3 : i32
      %349 = arith.addi %326, %c3_i32_138 : i32
      %350 = arith.index_cast %349 : i32 to index
      %351 = memref.load %arg1[%350] : memref<504xi32, #tpu.memory_space<smem>>
      %352 = arith.index_cast %351 : i32 to index
      %c0_139 = arith.constant 0 : index
      %c0_140 = arith.constant 0 : index
      %353 = vector.load %arg2[%352, %c0_139, %c0_140] : memref<3000x8x128xf32, #tpu.memory_space<vmem>>, vector<1x8x128xf32>
      %354 = vector.shape_cast %353 : vector<1x8x128xf32> to vector<8x128xf32>
      %355 = arith.mulf %354, %7 : vector<8x128xf32>
      %356 = arith.addf %348, %355 : vector<8x128xf32>
      %c4_i32_141 = arith.constant 4 : i32
      %357 = arith.addi %326, %c4_i32_141 : i32
      %358 = arith.index_cast %357 : i32 to index
      %359 = memref.load %arg1[%358] : memref<504xi32, #tpu.memory_space<smem>>
      %360 = arith.index_cast %359 : i32 to index
      %c0_142 = arith.constant 0 : index
      %c0_143 = arith.constant 0 : index
      %361 = vector.load %arg2[%360, %c0_142, %c0_143] : memref<3000x8x128xf32, #tpu.memory_space<vmem>>, vector<1x8x128xf32>
      %362 = vector.shape_cast %361 : vector<1x8x128xf32> to vector<8x128xf32>
      %363 = arith.mulf %362, %9 : vector<8x128xf32>
      %364 = arith.addf %356, %363 : vector<8x128xf32>
      %c5_i32_144 = arith.constant 5 : i32
      %365 = arith.addi %326, %c5_i32_144 : i32
      %366 = arith.index_cast %365 : i32 to index
      %367 = memref.load %arg1[%366] : memref<504xi32, #tpu.memory_space<smem>>
      %368 = arith.index_cast %367 : i32 to index
      %c0_145 = arith.constant 0 : index
      %c0_146 = arith.constant 0 : index
      %369 = vector.load %arg2[%368, %c0_145, %c0_146] : memref<3000x8x128xf32, #tpu.memory_space<vmem>>, vector<1x8x128xf32>
      %370 = vector.shape_cast %369 : vector<1x8x128xf32> to vector<8x128xf32>
      %371 = arith.mulf %370, %11 : vector<8x128xf32>
      %372 = arith.addf %364, %371 : vector<8x128xf32>
      %c6_i32_147 = arith.constant 6 : i32
      %373 = arith.addi %326, %c6_i32_147 : i32
      %374 = arith.index_cast %373 : i32 to index
      %375 = memref.load %arg1[%374] : memref<504xi32, #tpu.memory_space<smem>>
      %376 = arith.index_cast %375 : i32 to index
      %c0_148 = arith.constant 0 : index
      %c0_149 = arith.constant 0 : index
      %377 = vector.load %arg3[%376, %c0_148, %c0_149] : memref<200x8x128xf32, #tpu.memory_space<vmem>>, vector<1x8x128xf32>
      %378 = vector.shape_cast %377 : vector<1x8x128xf32> to vector<8x128xf32>
      %379 = arith.mulf %378, %13 : vector<8x128xf32>
      %380 = arith.addf %372, %379 : vector<8x128xf32>
      %381 = arith.cmpf ogt, %380, %14 : vector<8x128xf32>
      %382 = arith.extui %381 : vector<8x128xi1> to vector<8x128xi32>
      %383 = arith.sitofp %382 : vector<8x128xi32> to vector<8x128xf32>
      %384 = arith.addf %324, %383 : vector<8x128xf32>
      %c6_i32_150 = arith.constant 6 : i32
      %c7_i32_151 = arith.constant 7 : i32
      %385 = arith.muli %c6_i32_150, %c7_i32_151 : i32
      %386 = arith.addi %24, %385 : i32
      %387 = arith.index_cast %386 : i32 to index
      %388 = memref.load %arg1[%387] : memref<504xi32, #tpu.memory_space<smem>>
      %389 = arith.index_cast %388 : i32 to index
      %c0_152 = arith.constant 0 : index
      %c0_153 = arith.constant 0 : index
      %390 = vector.load %arg2[%389, %c0_152, %c0_153] : memref<3000x8x128xf32, #tpu.memory_space<vmem>>, vector<1x8x128xf32>
      %391 = vector.shape_cast %390 : vector<1x8x128xf32> to vector<8x128xf32>
      %392 = arith.mulf %391, %1 : vector<8x128xf32>
      %c1_i32_154 = arith.constant 1 : i32
      %393 = arith.addi %386, %c1_i32_154 : i32
      %394 = arith.index_cast %393 : i32 to index
      %395 = memref.load %arg1[%394] : memref<504xi32, #tpu.memory_space<smem>>
      %396 = arith.index_cast %395 : i32 to index
      %c0_155 = arith.constant 0 : index
      %c0_156 = arith.constant 0 : index
      %397 = vector.load %arg2[%396, %c0_155, %c0_156] : memref<3000x8x128xf32, #tpu.memory_space<vmem>>, vector<1x8x128xf32>
      %398 = vector.shape_cast %397 : vector<1x8x128xf32> to vector<8x128xf32>
      %399 = arith.mulf %398, %3 : vector<8x128xf32>
      %400 = arith.addf %392, %399 : vector<8x128xf32>
      %c2_i32_157 = arith.constant 2 : i32
      %401 = arith.addi %386, %c2_i32_157 : i32
      %402 = arith.index_cast %401 : i32 to index
      %403 = memref.load %arg1[%402] : memref<504xi32, #tpu.memory_space<smem>>
      %404 = arith.index_cast %403 : i32 to index
      %c0_158 = arith.constant 0 : index
      %c0_159 = arith.constant 0 : index
      %405 = vector.load %arg2[%404, %c0_158, %c0_159] : memref<3000x8x128xf32, #tpu.memory_space<vmem>>, vector<1x8x128xf32>
      %406 = vector.shape_cast %405 : vector<1x8x128xf32> to vector<8x128xf32>
      %407 = arith.mulf %406, %5 : vector<8x128xf32>
      %408 = arith.addf %400, %407 : vector<8x128xf32>
      %c3_i32_160 = arith.constant 3 : i32
      %409 = arith.addi %386, %c3_i32_160 : i32
      %410 = arith.index_cast %409 : i32 to index
      %411 = memref.load %arg1[%410] : memref<504xi32, #tpu.memory_space<smem>>
      %412 = arith.index_cast %411 : i32 to index
      %c0_161 = arith.constant 0 : index
      %c0_162 = arith.constant 0 : index
      %413 = vector.load %arg2[%412, %c0_161, %c0_162] : memref<3000x8x128xf32, #tpu.memory_space<vmem>>, vector<1x8x128xf32>
      %414 = vector.shape_cast %413 : vector<1x8x128xf32> to vector<8x128xf32>
      %415 = arith.mulf %414, %7 : vector<8x128xf32>
      %416 = arith.addf %408, %415 : vector<8x128xf32>
      %c4_i32_163 = arith.constant 4 : i32
      %417 = arith.addi %386, %c4_i32_163 : i32
      %418 = arith.index_cast %417 : i32 to index
      %419 = memref.load %arg1[%418] : memref<504xi32, #tpu.memory_space<smem>>
      %420 = arith.index_cast %419 : i32 to index
      %c0_164 = arith.constant 0 : index
      %c0_165 = arith.constant 0 : index
      %421 = vector.load %arg2[%420, %c0_164, %c0_165] : memref<3000x8x128xf32, #tpu.memory_space<vmem>>, vector<1x8x128xf32>
      %422 = vector.shape_cast %421 : vector<1x8x128xf32> to vector<8x128xf32>
      %423 = arith.mulf %422, %9 : vector<8x128xf32>
      %424 = arith.addf %416, %423 : vector<8x128xf32>
      %c5_i32_166 = arith.constant 5 : i32
      %425 = arith.addi %386, %c5_i32_166 : i32
      %426 = arith.index_cast %425 : i32 to index
      %427 = memref.load %arg1[%426] : memref<504xi32, #tpu.memory_space<smem>>
      %428 = arith.index_cast %427 : i32 to index
      %c0_167 = arith.constant 0 : index
      %c0_168 = arith.constant 0 : index
      %429 = vector.load %arg2[%428, %c0_167, %c0_168] : memref<3000x8x128xf32, #tpu.memory_space<vmem>>, vector<1x8x128xf32>
      %430 = vector.shape_cast %429 : vector<1x8x128xf32> to vector<8x128xf32>
      %431 = arith.mulf %430, %11 : vector<8x128xf32>
      %432 = arith.addf %424, %431 : vector<8x128xf32>
      %c6_i32_169 = arith.constant 6 : i32
      %433 = arith.addi %386, %c6_i32_169 : i32
      %434 = arith.index_cast %433 : i32 to index
      %435 = memref.load %arg1[%434] : memref<504xi32, #tpu.memory_space<smem>>
      %436 = arith.index_cast %435 : i32 to index
      %c0_170 = arith.constant 0 : index
      %c0_171 = arith.constant 0 : index
      %437 = vector.load %arg3[%436, %c0_170, %c0_171] : memref<200x8x128xf32, #tpu.memory_space<vmem>>, vector<1x8x128xf32>
      %438 = vector.shape_cast %437 : vector<1x8x128xf32> to vector<8x128xf32>
      %439 = arith.mulf %438, %13 : vector<8x128xf32>
      %440 = arith.addf %432, %439 : vector<8x128xf32>
      %441 = arith.cmpf ogt, %440, %14 : vector<8x128xf32>
      %442 = arith.extui %441 : vector<8x128xi1> to vector<8x128xi32>
      %443 = arith.sitofp %442 : vector<8x128xi32> to vector<8x128xf32>
      %444 = arith.addf %384, %443 : vector<8x128xf32>
      %c7_i32_172 = arith.constant 7 : i32
      %c7_i32_173 = arith.constant 7 : i32
      %445 = arith.muli %c7_i32_172, %c7_i32_173 : i32
      %446 = arith.addi %24, %445 : i32
      %447 = arith.index_cast %446 : i32 to index
      %448 = memref.load %arg1[%447] : memref<504xi32, #tpu.memory_space<smem>>
      %449 = arith.index_cast %448 : i32 to index
      %c0_174 = arith.constant 0 : index
      %c0_175 = arith.constant 0 : index
      %450 = vector.load %arg2[%449, %c0_174, %c0_175] : memref<3000x8x128xf32, #tpu.memory_space<vmem>>, vector<1x8x128xf32>
      %451 = vector.shape_cast %450 : vector<1x8x128xf32> to vector<8x128xf32>
      %452 = arith.mulf %451, %1 : vector<8x128xf32>
      %c1_i32_176 = arith.constant 1 : i32
      %453 = arith.addi %446, %c1_i32_176 : i32
      %454 = arith.index_cast %453 : i32 to index
      %455 = memref.load %arg1[%454] : memref<504xi32, #tpu.memory_space<smem>>
      %456 = arith.index_cast %455 : i32 to index
      %c0_177 = arith.constant 0 : index
      %c0_178 = arith.constant 0 : index
      %457 = vector.load %arg2[%456, %c0_177, %c0_178] : memref<3000x8x128xf32, #tpu.memory_space<vmem>>, vector<1x8x128xf32>
      %458 = vector.shape_cast %457 : vector<1x8x128xf32> to vector<8x128xf32>
      %459 = arith.mulf %458, %3 : vector<8x128xf32>
      %460 = arith.addf %452, %459 : vector<8x128xf32>
      %c2_i32_179 = arith.constant 2 : i32
      %461 = arith.addi %446, %c2_i32_179 : i32
      %462 = arith.index_cast %461 : i32 to index
      %463 = memref.load %arg1[%462] : memref<504xi32, #tpu.memory_space<smem>>
      %464 = arith.index_cast %463 : i32 to index
      %c0_180 = arith.constant 0 : index
      %c0_181 = arith.constant 0 : index
      %465 = vector.load %arg2[%464, %c0_180, %c0_181] : memref<3000x8x128xf32, #tpu.memory_space<vmem>>, vector<1x8x128xf32>
      %466 = vector.shape_cast %465 : vector<1x8x128xf32> to vector<8x128xf32>
      %467 = arith.mulf %466, %5 : vector<8x128xf32>
      %468 = arith.addf %460, %467 : vector<8x128xf32>
      %c3_i32_182 = arith.constant 3 : i32
      %469 = arith.addi %446, %c3_i32_182 : i32
      %470 = arith.index_cast %469 : i32 to index
      %471 = memref.load %arg1[%470] : memref<504xi32, #tpu.memory_space<smem>>
      %472 = arith.index_cast %471 : i32 to index
      %c0_183 = arith.constant 0 : index
      %c0_184 = arith.constant 0 : index
      %473 = vector.load %arg2[%472, %c0_183, %c0_184] : memref<3000x8x128xf32, #tpu.memory_space<vmem>>, vector<1x8x128xf32>
      %474 = vector.shape_cast %473 : vector<1x8x128xf32> to vector<8x128xf32>
      %475 = arith.mulf %474, %7 : vector<8x128xf32>
      %476 = arith.addf %468, %475 : vector<8x128xf32>
      %c4_i32_185 = arith.constant 4 : i32
      %477 = arith.addi %446, %c4_i32_185 : i32
      %478 = arith.index_cast %477 : i32 to index
      %479 = memref.load %arg1[%478] : memref<504xi32, #tpu.memory_space<smem>>
      %480 = arith.index_cast %479 : i32 to index
      %c0_186 = arith.constant 0 : index
      %c0_187 = arith.constant 0 : index
      %481 = vector.load %arg2[%480, %c0_186, %c0_187] : memref<3000x8x128xf32, #tpu.memory_space<vmem>>, vector<1x8x128xf32>
      %482 = vector.shape_cast %481 : vector<1x8x128xf32> to vector<8x128xf32>
      %483 = arith.mulf %482, %9 : vector<8x128xf32>
      %484 = arith.addf %476, %483 : vector<8x128xf32>
      %c5_i32_188 = arith.constant 5 : i32
      %485 = arith.addi %446, %c5_i32_188 : i32
      %486 = arith.index_cast %485 : i32 to index
      %487 = memref.load %arg1[%486] : memref<504xi32, #tpu.memory_space<smem>>
      %488 = arith.index_cast %487 : i32 to index
      %c0_189 = arith.constant 0 : index
      %c0_190 = arith.constant 0 : index
      %489 = vector.load %arg2[%488, %c0_189, %c0_190] : memref<3000x8x128xf32, #tpu.memory_space<vmem>>, vector<1x8x128xf32>
      %490 = vector.shape_cast %489 : vector<1x8x128xf32> to vector<8x128xf32>
      %491 = arith.mulf %490, %11 : vector<8x128xf32>
      %492 = arith.addf %484, %491 : vector<8x128xf32>
      %c6_i32_191 = arith.constant 6 : i32
      %493 = arith.addi %446, %c6_i32_191 : i32
      %494 = arith.index_cast %493 : i32 to index
      %495 = memref.load %arg1[%494] : memref<504xi32, #tpu.memory_space<smem>>
      %496 = arith.index_cast %495 : i32 to index
      %c0_192 = arith.constant 0 : index
      %c0_193 = arith.constant 0 : index
      %497 = vector.load %arg3[%496, %c0_192, %c0_193] : memref<200x8x128xf32, #tpu.memory_space<vmem>>, vector<1x8x128xf32>
      %498 = vector.shape_cast %497 : vector<1x8x128xf32> to vector<8x128xf32>
      %499 = arith.mulf %498, %13 : vector<8x128xf32>
      %500 = arith.addf %492, %499 : vector<8x128xf32>
      %501 = arith.cmpf ogt, %500, %14 : vector<8x128xf32>
      %502 = arith.extui %501 : vector<8x128xi1> to vector<8x128xi32>
      %503 = arith.sitofp %502 : vector<8x128xi32> to vector<8x128xf32>
      %504 = arith.addf %444, %503 : vector<8x128xf32>
      %c8_i32_194 = arith.constant 8 : i32
      %c7_i32_195 = arith.constant 7 : i32
      %505 = arith.muli %c8_i32_194, %c7_i32_195 : i32
      %506 = arith.addi %24, %505 : i32
      %507 = arith.index_cast %506 : i32 to index
      %508 = memref.load %arg1[%507] : memref<504xi32, #tpu.memory_space<smem>>
      %509 = arith.index_cast %508 : i32 to index
      %c0_196 = arith.constant 0 : index
      %c0_197 = arith.constant 0 : index
      %510 = vector.load %arg2[%509, %c0_196, %c0_197] : memref<3000x8x128xf32, #tpu.memory_space<vmem>>, vector<1x8x128xf32>
      %511 = vector.shape_cast %510 : vector<1x8x128xf32> to vector<8x128xf32>
      %512 = arith.mulf %511, %1 : vector<8x128xf32>
      %c1_i32_198 = arith.constant 1 : i32
      %513 = arith.addi %506, %c1_i32_198 : i32
      %514 = arith.index_cast %513 : i32 to index
      %515 = memref.load %arg1[%514] : memref<504xi32, #tpu.memory_space<smem>>
      %516 = arith.index_cast %515 : i32 to index
      %c0_199 = arith.constant 0 : index
      %c0_200 = arith.constant 0 : index
      %517 = vector.load %arg2[%516, %c0_199, %c0_200] : memref<3000x8x128xf32, #tpu.memory_space<vmem>>, vector<1x8x128xf32>
      %518 = vector.shape_cast %517 : vector<1x8x128xf32> to vector<8x128xf32>
      %519 = arith.mulf %518, %3 : vector<8x128xf32>
      %520 = arith.addf %512, %519 : vector<8x128xf32>
      %c2_i32_201 = arith.constant 2 : i32
      %521 = arith.addi %506, %c2_i32_201 : i32
      %522 = arith.index_cast %521 : i32 to index
      %523 = memref.load %arg1[%522] : memref<504xi32, #tpu.memory_space<smem>>
      %524 = arith.index_cast %523 : i32 to index
      %c0_202 = arith.constant 0 : index
      %c0_203 = arith.constant 0 : index
      %525 = vector.load %arg2[%524, %c0_202, %c0_203] : memref<3000x8x128xf32, #tpu.memory_space<vmem>>, vector<1x8x128xf32>
      %526 = vector.shape_cast %525 : vector<1x8x128xf32> to vector<8x128xf32>
      %527 = arith.mulf %526, %5 : vector<8x128xf32>
      %528 = arith.addf %520, %527 : vector<8x128xf32>
      %c3_i32_204 = arith.constant 3 : i32
      %529 = arith.addi %506, %c3_i32_204 : i32
      %530 = arith.index_cast %529 : i32 to index
      %531 = memref.load %arg1[%530] : memref<504xi32, #tpu.memory_space<smem>>
      %532 = arith.index_cast %531 : i32 to index
      %c0_205 = arith.constant 0 : index
      %c0_206 = arith.constant 0 : index
      %533 = vector.load %arg2[%532, %c0_205, %c0_206] : memref<3000x8x128xf32, #tpu.memory_space<vmem>>, vector<1x8x128xf32>
      %534 = vector.shape_cast %533 : vector<1x8x128xf32> to vector<8x128xf32>
      %535 = arith.mulf %534, %7 : vector<8x128xf32>
      %536 = arith.addf %528, %535 : vector<8x128xf32>
      %c4_i32_207 = arith.constant 4 : i32
      %537 = arith.addi %506, %c4_i32_207 : i32
      %538 = arith.index_cast %537 : i32 to index
      %539 = memref.load %arg1[%538] : memref<504xi32, #tpu.memory_space<smem>>
      %540 = arith.index_cast %539 : i32 to index
      %c0_208 = arith.constant 0 : index
      %c0_209 = arith.constant 0 : index
      %541 = vector.load %arg2[%540, %c0_208, %c0_209] : memref<3000x8x128xf32, #tpu.memory_space<vmem>>, vector<1x8x128xf32>
      %542 = vector.shape_cast %541 : vector<1x8x128xf32> to vector<8x128xf32>
      %543 = arith.mulf %542, %9 : vector<8x128xf32>
      %544 = arith.addf %536, %543 : vector<8x128xf32>
      %c5_i32_210 = arith.constant 5 : i32
      %545 = arith.addi %506, %c5_i32_210 : i32
      %546 = arith.index_cast %545 : i32 to index
      %547 = memref.load %arg1[%546] : memref<504xi32, #tpu.memory_space<smem>>
      %548 = arith.index_cast %547 : i32 to index
      %c0_211 = arith.constant 0 : index
      %c0_212 = arith.constant 0 : index
      %549 = vector.load %arg2[%548, %c0_211, %c0_212] : memref<3000x8x128xf32, #tpu.memory_space<vmem>>, vector<1x8x128xf32>
      %550 = vector.shape_cast %549 : vector<1x8x128xf32> to vector<8x128xf32>
      %551 = arith.mulf %550, %11 : vector<8x128xf32>
      %552 = arith.addf %544, %551 : vector<8x128xf32>
      %c6_i32_213 = arith.constant 6 : i32
      %553 = arith.addi %506, %c6_i32_213 : i32
      %554 = arith.index_cast %553 : i32 to index
      %555 = memref.load %arg1[%554] : memref<504xi32, #tpu.memory_space<smem>>
      %556 = arith.index_cast %555 : i32 to index
      %c0_214 = arith.constant 0 : index
      %c0_215 = arith.constant 0 : index
      %557 = vector.load %arg3[%556, %c0_214, %c0_215] : memref<200x8x128xf32, #tpu.memory_space<vmem>>, vector<1x8x128xf32>
      %558 = vector.shape_cast %557 : vector<1x8x128xf32> to vector<8x128xf32>
      %559 = arith.mulf %558, %13 : vector<8x128xf32>
      %560 = arith.addf %552, %559 : vector<8x128xf32>
      %561 = arith.cmpf ogt, %560, %14 : vector<8x128xf32>
      %562 = arith.extui %561 : vector<8x128xi1> to vector<8x128xi32>
      %563 = arith.sitofp %562 : vector<8x128xi32> to vector<8x128xf32>
      %564 = arith.addf %504, %563 : vector<8x128xf32>
      %c9_i32 = arith.constant 9 : i32
      %565 = arith.addf %564, %564 : vector<8x128xf32>
      %566 = vector.broadcast %cst_19 : f32 to vector<8x128xf32>
      %567 = arith.cmpf ogt, %565, %566 : vector<8x128xf32>
      %568 = arith.extui %567 : vector<8x128xi1> to vector<8x128xi32>
      %569 = arith.sitofp %568 : vector<8x128xi32> to vector<8x128xf32>
      %570 = arith.mulf %569, %15 : vector<8x128xf32>
      %cst_216 = arith.constant dense<0.000000e+00> : vector<8xf32>
      %571 = vector.multi_reduction <add>, %570, %cst_216 [1] : vector<8x128xf32> to vector<8xf32>
      %572 = vector.shape_cast %571 : vector<8xf32> to vector<8x1xf32>
      %cst_217 = arith.constant dense<0.000000e+00> : vector<1xf32>
      %573 = vector.multi_reduction <add>, %572, %cst_217 [0] : vector<8x1xf32> to vector<1xf32>
      %574 = vector.shape_cast %573 : vector<1xf32> to vector<1x1xf32>
      %575 = vector.broadcast %arg8 : i32 to vector<1x8xi32>
      %576 = arith.cmpi eq, %17, %575 : vector<1x8xi32>
      %577 = vector.shape_cast %574 : vector<1x1xf32> to vector<1x1xf32>
      %578 = vector.broadcast %577 : vector<1x1xf32> to vector<1x8xf32>
      %579 = arith.select %576, %578, %arg9 : vector<1x8xi1>, vector<1x8xf32>
      scf.yield %579 : vector<1x8xf32>
    }
    %c8_i32_20 = arith.constant 8 : i32
    %c0_21 = arith.constant 0 : index
    %c0_22 = arith.constant 0 : index
    %21 = vector.load %arg7[%c0_21, %c0_22] : memref<1x8xf32, #tpu.memory_space<vmem>>, vector<1x8xf32>
    tpu.vector_store %arg7[%c0_21, %c0_22], %20 {strides = array<i32>} : memref<1x8xf32, #tpu.memory_space<vmem>>, vector<1x8xf32>,
    return
  }
  func.func @transform_0(%arg0: i32, %arg1: memref<504xi32, #tpu.memory_space<smem>>) -> (i32, i32, i32) {
    %c0_i32 = arith.constant 0 : i32
    %c0_i32_0 = arith.constant 0 : i32
    %c0_i32_1 = arith.constant 0 : i32
    %c0_i32_2 = arith.constant 0 : i32
    return %c0_i32, %c0_i32_0, %c0_i32_1 : i32, i32, i32
  }
  func.func @transform_1(%arg0: i32, %arg1: memref<504xi32, #tpu.memory_space<smem>>) -> (i32, i32, i32) {
    %c0_i32 = arith.constant 0 : i32
    %c0_i32_0 = arith.constant 0 : i32
    %c0_i32_1 = arith.constant 0 : i32
    %c0_i32_2 = arith.constant 0 : i32
    return %c0_i32, %c0_i32_0, %c0_i32_1 : i32, i32, i32
  }
  func.func @transform_2(%arg0: i32, %arg1: memref<504xi32, #tpu.memory_space<smem>>) -> (i32, i32, i32) {
    %c0_i32 = arith.constant 0 : i32
    %c0_i32_0 = arith.constant 0 : i32
    %c0_i32_1 = arith.constant 0 : i32
    %c0_i32_2 = arith.constant 0 : i32
    return %c0_i32, %c0_i32_0, %c0_i32_1 : i32, i32, i32
  }
  func.func @transform_3(%arg0: i32, %arg1: memref<504xi32, #tpu.memory_space<smem>>) -> (i32, i32) {
    %c0_i32 = arith.constant 0 : i32
    %c0_i32_0 = arith.constant 0 : i32
    %c0_i32_1 = arith.constant 0 : i32
    return %c0_i32, %c0_i32_0 : i32, i32
  }
  func.func @transform_4(%arg0: i32, %arg1: memref<504xi32, #tpu.memory_space<smem>>) -> (i32, i32) {
    %c0_i32 = arith.constant 0 : i32
    %c0_i32_0 = arith.constant 0 : i32
    %c0_i32_1 = arith.constant 0 : i32
    return %c0_i32, %c0_i32_0 : i32, i32
  }
  func.func @transform_5(%arg0: i32, %arg1: memref<504xi32, #tpu.memory_space<smem>>) -> (i32, i32) {
    %c0_i32 = arith.constant 0 : i32
    %c0_i32_0 = arith.constant 0 : i32
    return %arg0, %c0_i32 : i32, i32
  }
}

module attributes {stable_mosaic.version = 11 : i64} {
  func.func @_hdc_kernel(%arg0: i32, %arg1: memref<504xi32, #tpu.memory_space<smem>>, %arg2: memref<3000x8x128xf32, #tpu.memory_space<vmem>>, %arg3: memref<200x8x128xf32, #tpu.memory_space<vmem>>, %arg4: memref<7x8x128xf32, #tpu.memory_space<vmem>>, %arg5: memref<8x128xf32, #tpu.memory_space<vmem>>, %arg6: memref<8x128xf32, #tpu.memory_space<vmem>>, %arg7: memref<1x8xf32, #tpu.memory_space<vmem>>) attributes {dimension_semantics = [#tpu.dimension_semantics<parallel>], iteration_bounds = array<i64: 1>, scalar_prefetch = 1 : i64, scratch_operands = 0 : i64, tpu.core_type = #tpu.core_type<tc>, window_params = [{pipeline_mode = #tpu.pipeline_mode<synchronous>, transform_indices = @transform_0, window_bounds = array<i64: 3000, 8, 128>}, {pipeline_mode = #tpu.pipeline_mode<synchronous>, transform_indices = @transform_1, window_bounds = array<i64: 200, 8, 128>}, {pipeline_mode = #tpu.pipeline_mode<synchronous>, transform_indices = @transform_2, window_bounds = array<i64: 7, 8, 128>}, {pipeline_mode = #tpu.pipeline_mode<synchronous>, transform_indices = @transform_3, window_bounds = array<i64: 8, 128>}, {pipeline_mode = #tpu.pipeline_mode<synchronous>, transform_indices = @transform_4, window_bounds = array<i64: 8, 128>}, {transform_indices = @transform_5, window_bounds = array<i64: 1, 8>}]} {
    %c0 = arith.constant 0 : index
    %c0_0 = arith.constant 0 : index
    %c0_1 = arith.constant 0 : index
    %0 = vector.load %arg4[%c0, %c0_0, %c0_1] : memref<7x8x128xf32, #tpu.memory_space<vmem>>, vector<1x8x128xf32>
    %1 = vector.shape_cast %0 : vector<1x8x128xf32> to vector<8x128xf32>
    %c1 = arith.constant 1 : index
    %c0_2 = arith.constant 0 : index
    %c0_3 = arith.constant 0 : index
    %2 = vector.load %arg4[%c1, %c0_2, %c0_3] : memref<7x8x128xf32, #tpu.memory_space<vmem>>, vector<1x8x128xf32>
    %3 = vector.shape_cast %2 : vector<1x8x128xf32> to vector<8x128xf32>
    %c2 = arith.constant 2 : index
    %c0_4 = arith.constant 0 : index
    %c0_5 = arith.constant 0 : index
    %4 = vector.load %arg4[%c2, %c0_4, %c0_5] : memref<7x8x128xf32, #tpu.memory_space<vmem>>, vector<1x8x128xf32>
    %5 = vector.shape_cast %4 : vector<1x8x128xf32> to vector<8x128xf32>
    %c3 = arith.constant 3 : index
    %c0_6 = arith.constant 0 : index
    %c0_7 = arith.constant 0 : index
    %6 = vector.load %arg4[%c3, %c0_6, %c0_7] : memref<7x8x128xf32, #tpu.memory_space<vmem>>, vector<1x8x128xf32>
    %7 = vector.shape_cast %6 : vector<1x8x128xf32> to vector<8x128xf32>
    %c4 = arith.constant 4 : index
    %c0_8 = arith.constant 0 : index
    %c0_9 = arith.constant 0 : index
    %8 = vector.load %arg4[%c4, %c0_8, %c0_9] : memref<7x8x128xf32, #tpu.memory_space<vmem>>, vector<1x8x128xf32>
    %9 = vector.shape_cast %8 : vector<1x8x128xf32> to vector<8x128xf32>
    %c5 = arith.constant 5 : index
    %c0_10 = arith.constant 0 : index
    %c0_11 = arith.constant 0 : index
    %10 = vector.load %arg4[%c5, %c0_10, %c0_11] : memref<7x8x128xf32, #tpu.memory_space<vmem>>, vector<1x8x128xf32>
    %11 = vector.shape_cast %10 : vector<1x8x128xf32> to vector<8x128xf32>
    %c6 = arith.constant 6 : index
    %c0_12 = arith.constant 0 : index
    %c0_13 = arith.constant 0 : index
    %12 = vector.load %arg4[%c6, %c0_12, %c0_13] : memref<7x8x128xf32, #tpu.memory_space<vmem>>, vector<1x8x128xf32>
    %13 = vector.shape_cast %12 : vector<1x8x128xf32> to vector<8x128xf32>
    %c0_14 = arith.constant 0 : index
    %c0_15 = arith.constant 0 : index
    %14 = vector.load %arg5[%c0_14, %c0_15] : memref<8x128xf32, #tpu.memory_space<vmem>>, vector<8x128xf32>
    %c0_16 = arith.constant 0 : index
    %c0_17 = arith.constant 0 : index
    %15 = vector.load %arg6[%c0_16, %c0_17] : memref<8x128xf32, #tpu.memory_space<vmem>>, vector<8x128xf32>
    %cst = arith.constant 0.000000e+00 : f32
    %16 = vector.broadcast %cst : f32 to vector<8x128xf32>
    %17 = tpu.iota {dimensions = array<i32: 1>} : vector<1x8xi32>
    %cst_18 = arith.constant 0.000000e+00 : f32
    %18 = vector.broadcast %cst_18 : f32 to vector<1x8xf32>
    %cst_19 = arith.constant 9.000000e+00 : f32
    %c0_i32 = arith.constant 0 : i32
    %c8_i32 = arith.constant 8 : i32
    %19 = arith.addi %c0_i32, %c8_i32 : i32
    %c1_i32 = arith.constant 1 : i32
    %20 = scf.for %arg8 = %c0_i32 to %19 step %c1_i32 iter_args(%arg9 = %18) -> (vector<1x8xf32>)  : i32 {
      %c8_i32_23 = arith.constant 8 : i32
      %22 = arith.muli %arg0, %c8_i32_23 : i32
      %23 = arith.addi %22, %arg8 : i32
      %c63_i32 = arith.constant 63 : i32
      %24 = arith.muli %23, %c63_i32 : i32
      %c0_i32_24 = arith.constant 0 : i32
      %c7_i32 = arith.constant 7 : i32
      %25 = arith.muli %c0_i32_24, %c7_i32 : i32
      %26 = arith.addi %24, %25 : i32
      %27 = arith.index_cast %26 : i32 to index
      %28 = memref.load %arg1[%27] : memref<504xi32, #tpu.memory_space<smem>>
      %29 = arith.index_cast %28 : i32 to index
      %c0_25 = arith.constant 0 : index
      %c0_26 = arith.constant 0 : index
      %30 = vector.load %arg2[%29, %c0_25, %c0_26] : memref<3000x8x128xf32, #tpu.memory_space<vmem>>, vector<1x8x128xf32>
      %31 = vector.shape_cast %30 : vector<1x8x128xf32> to vector<8x128xf32>
      %32 = arith.mulf %31, %1 : vector<8x128xf32>
      %c1_i32_27 = arith.constant 1 : i32
      %33 = arith.addi %26, %c1_i32_27 : i32
      %34 = arith.index_cast %33 : i32 to index
      %35 = memref.load %arg1[%34] : memref<504xi32, #tpu.memory_space<smem>>
      %36 = arith.index_cast %35 : i32 to index
      %c0_28 = arith.constant 0 : index
      %c0_29 = arith.constant 0 : index
      %37 = vector.load %arg2[%36, %c0_28, %c0_29] : memref<3000x8x128xf32, #tpu.memory_space<vmem>>, vector<1x8x128xf32>
      %38 = vector.shape_cast %37 : vector<1x8x128xf32> to vector<8x128xf32>
      %39 = arith.mulf %38, %3 : vector<8x128xf32>
      %40 = arith.addf %32, %39 : vector<8x128xf32>
      %c2_i32 = arith.constant 2 : i32
      %41 = arith.addi %26, %c2_i32 : i32
      %42 = arith.index_cast %41 : i32 to index
      %43 = memref.load %arg1[%42] : memref<504xi32, #tpu.memory_space<smem>>
      %44 = arith.index_cast %43 : i32 to index
      %c0_30 = arith.constant 0 : index
      %c0_31 = arith.constant 0 : index
      %45 = vector.load %arg2[%44, %c0_30, %c0_31] : memref<3000x8x128xf32, #tpu.memory_space<vmem>>, vector<1x8x128xf32>
      %46 = vector.shape_cast %45 : vector<1x8x128xf32> to vector<8x128xf32>
      %47 = arith.mulf %46, %5 : vector<8x128xf32>
      %48 = arith.addf %40, %47 : vector<8x128xf32>
      %c3_i32 = arith.constant 3 : i32
      %49 = arith.addi %26, %c3_i32 : i32
      %50 = arith.index_cast %49 : i32 to index
      %51 = memref.load %arg1[%50] : memref<504xi32, #tpu.memory_space<smem>>
      %52 = arith.index_cast %51 : i32 to index
      %c0_32 = arith.constant 0 : index
      %c0_33 = arith.constant 0 : index
      %53 = vector.load %arg2[%52, %c0_32, %c0_33] : memref<3000x8x128xf32, #tpu.memory_space<vmem>>, vector<1x8x128xf32>
      %54 = vector.shape_cast %53 : vector<1x8x128xf32> to vector<8x128xf32>
      %55 = arith.mulf %54, %7 : vector<8x128xf32>
      %56 = arith.addf %48, %55 : vector<8x128xf32>
      %c4_i32 = arith.constant 4 : i32
      %57 = arith.addi %26, %c4_i32 : i32
      %58 = arith.index_cast %57 : i32 to index
      %59 = memref.load %arg1[%58] : memref<504xi32, #tpu.memory_space<smem>>
      %60 = arith.index_cast %59 : i32 to index
      %c0_34 = arith.constant 0 : index
      %c0_35 = arith.constant 0 : index
      %61 = vector.load %arg2[%60, %c0_34, %c0_35] : memref<3000x8x128xf32, #tpu.memory_space<vmem>>, vector<1x8x128xf32>
      %62 = vector.shape_cast %61 : vector<1x8x128xf32> to vector<8x128xf32>
      %63 = arith.mulf %62, %9 : vector<8x128xf32>
      %64 = arith.addf %56, %63 : vector<8x128xf32>
      %c5_i32 = arith.constant 5 : i32
      %65 = arith.addi %26, %c5_i32 : i32
      %66 = arith.index_cast %65 : i32 to index
      %67 = memref.load %arg1[%66] : memref<504xi32, #tpu.memory_space<smem>>
      %68 = arith.index_cast %67 : i32 to index
      %c0_36 = arith.constant 0 : index
      %c0_37 = arith.constant 0 : index
      %69 = vector.load %arg2[%68, %c0_36, %c0_37] : memref<3000x8x128xf32, #tpu.memory_space<vmem>>, vector<1x8x128xf32>
      %70 = vector.shape_cast %69 : vector<1x8x128xf32> to vector<8x128xf32>
      %71 = arith.mulf %70, %11 : vector<8x128xf32>
      %72 = arith.addf %64, %71 : vector<8x128xf32>
      %c6_i32 = arith.constant 6 : i32
      %73 = arith.addi %26, %c6_i32 : i32
      %74 = arith.index_cast %73 : i32 to index
      %75 = memref.load %arg1[%74] : memref<504xi32, #tpu.memory_space<smem>>
      %76 = arith.index_cast %75 : i32 to index
      %c0_38 = arith.constant 0 : index
      %c0_39 = arith.constant 0 : index
      %77 = vector.load %arg3[%76, %c0_38, %c0_39] : memref<200x8x128xf32, #tpu.memory_space<vmem>>, vector<1x8x128xf32>
      %78 = vector.shape_cast %77 : vector<1x8x128xf32> to vector<8x128xf32>
      %79 = arith.mulf %78, %13 : vector<8x128xf32>
      %80 = arith.addf %72, %79 : vector<8x128xf32>
      %81 = arith.cmpf ogt, %80, %14 : vector<8x128xf32>
      %82 = arith.extui %81 : vector<8x128xi1> to vector<8x128xi32>
      %83 = arith.sitofp %82 : vector<8x128xi32> to vector<8x128xf32>
      %84 = arith.addf %16, %83 : vector<8x128xf32>
      %c1_i32_40 = arith.constant 1 : i32
      %c7_i32_41 = arith.constant 7 : i32
      %85 = arith.muli %c1_i32_40, %c7_i32_41 : i32
      %86 = arith.addi %24, %85 : i32
      %87 = arith.index_cast %86 : i32 to index
      %88 = memref.load %arg1[%87] : memref<504xi32, #tpu.memory_space<smem>>
      %89 = arith.index_cast %88 : i32 to index
      %c0_42 = arith.constant 0 : index
      %c0_43 = arith.constant 0 : index
      %90 = vector.load %arg2[%89, %c0_42, %c0_43] : memref<3000x8x128xf32, #tpu.memory_space<vmem>>, vector<1x8x128xf32>
      %91 = vector.shape_cast %90 : vector<1x8x128xf32> to vector<8x128xf32>
      %92 = arith.mulf %91, %1 : vector<8x128xf32>
      %c1_i32_44 = arith.constant 1 : i32
      %93 = arith.addi %86, %c1_i32_44 : i32
      %94 = arith.index_cast %93 : i32 to index
      %95 = memref.load %arg1[%94] : memref<504xi32, #tpu.memory_space<smem>>
      %96 = arith.index_cast %95 : i32 to index
      %c0_45 = arith.constant 0 : index
      %c0_46 = arith.constant 0 : index
      %97 = vector.load %arg2[%96, %c0_45, %c0_46] : memref<3000x8x128xf32, #tpu.memory_space<vmem>>, vector<1x8x128xf32>
      %98 = vector.shape_cast %97 : vector<1x8x128xf32> to vector<8x128xf32>
      %99 = arith.mulf %98, %3 : vector<8x128xf32>
      %100 = arith.addf %92, %99 : vector<8x128xf32>
      %c2_i32_47 = arith.constant 2 : i32
      %101 = arith.addi %86, %c2_i32_47 : i32
      %102 = arith.index_cast %101 : i32 to index
      %103 = memref.load %arg1[%102] : memref<504xi32, #tpu.memory_space<smem>>
      %104 = arith.index_cast %103 : i32 to index
      %c0_48 = arith.constant 0 : index
      %c0_49 = arith.constant 0 : index
      %105 = vector.load %arg2[%104, %c0_48, %c0_49] : memref<3000x8x128xf32, #tpu.memory_space<vmem>>, vector<1x8x128xf32>
      %106 = vector.shape_cast %105 : vector<1x8x128xf32> to vector<8x128xf32>
      %107 = arith.mulf %106, %5 : vector<8x128xf32>
      %108 = arith.addf %100, %107 : vector<8x128xf32>
      %c3_i32_50 = arith.constant 3 : i32
      %109 = arith.addi %86, %c3_i32_50 : i32
      %110 = arith.index_cast %109 : i32 to index
      %111 = memref.load %arg1[%110] : memref<504xi32, #tpu.memory_space<smem>>
      %112 = arith.index_cast %111 : i32 to index
      %c0_51 = arith.constant 0 : index
      %c0_52 = arith.constant 0 : index
      %113 = vector.load %arg2[%112, %c0_51, %c0_52] : memref<3000x8x128xf32, #tpu.memory_space<vmem>>, vector<1x8x128xf32>
      %114 = vector.shape_cast %113 : vector<1x8x128xf32> to vector<8x128xf32>
      %115 = arith.mulf %114, %7 : vector<8x128xf32>
      %116 = arith.addf %108, %115 : vector<8x128xf32>
      %c4_i32_53 = arith.constant 4 : i32
      %117 = arith.addi %86, %c4_i32_53 : i32
      %118 = arith.index_cast %117 : i32 to index
      %119 = memref.load %arg1[%118] : memref<504xi32, #tpu.memory_space<smem>>
      %120 = arith.index_cast %119 : i32 to index
      %c0_54 = arith.constant 0 : index
      %c0_55 = arith.constant 0 : index
      %121 = vector.load %arg2[%120, %c0_54, %c0_55] : memref<3000x8x128xf32, #tpu.memory_space<vmem>>, vector<1x8x128xf32>
      %122 = vector.shape_cast %121 : vector<1x8x128xf32> to vector<8x128xf32>
      %123 = arith.mulf %122, %9 : vector<8x128xf32>
      %124 = arith.addf %116, %123 : vector<8x128xf32>
      %c5_i32_56 = arith.constant 5 : i32
      %125 = arith.addi %86, %c5_i32_56 : i32
      %126 = arith.index_cast %125 : i32 to index
      %127 = memref.load %arg1[%126] : memref<504xi32, #tpu.memory_space<smem>>
      %128 = arith.index_cast %127 : i32 to index
      %c0_57 = arith.constant 0 : index
      %c0_58 = arith.constant 0 : index
      %129 = vector.load %arg2[%128, %c0_57, %c0_58] : memref<3000x8x128xf32, #tpu.memory_space<vmem>>, vector<1x8x128xf32>
      %130 = vector.shape_cast %129 : vector<1x8x128xf32> to vector<8x128xf32>
      %131 = arith.mulf %130, %11 : vector<8x128xf32>
      %132 = arith.addf %124, %131 : vector<8x128xf32>
      %c6_i32_59 = arith.constant 6 : i32
      %133 = arith.addi %86, %c6_i32_59 : i32
      %134 = arith.index_cast %133 : i32 to index
      %135 = memref.load %arg1[%134] : memref<504xi32, #tpu.memory_space<smem>>
      %136 = arith.index_cast %135 : i32 to index
      %c0_60 = arith.constant 0 : index
      %c0_61 = arith.constant 0 : index
      %137 = vector.load %arg3[%136, %c0_60, %c0_61] : memref<200x8x128xf32, #tpu.memory_space<vmem>>, vector<1x8x128xf32>
      %138 = vector.shape_cast %137 : vector<1x8x128xf32> to vector<8x128xf32>
      %139 = arith.mulf %138, %13 : vector<8x128xf32>
      %140 = arith.addf %132, %139 : vector<8x128xf32>
      %141 = arith.cmpf ogt, %140, %14 : vector<8x128xf32>
      %142 = arith.extui %141 : vector<8x128xi1> to vector<8x128xi32>
      %143 = arith.sitofp %142 : vector<8x128xi32> to vector<8x128xf32>
      %144 = arith.addf %84, %143 : vector<8x128xf32>
      %c2_i32_62 = arith.constant 2 : i32
      %c7_i32_63 = arith.constant 7 : i32
      %145 = arith.muli %c2_i32_62, %c7_i32_63 : i32
      %146 = arith.addi %24, %145 : i32
      %147 = arith.index_cast %146 : i32 to index
      %148 = memref.load %arg1[%147] : memref<504xi32, #tpu.memory_space<smem>>
      %149 = arith.index_cast %148 : i32 to index
      %c0_64 = arith.constant 0 : index
      %c0_65 = arith.constant 0 : index
      %150 = vector.load %arg2[%149, %c0_64, %c0_65] : memref<3000x8x128xf32, #tpu.memory_space<vmem>>, vector<1x8x128xf32>
      %151 = vector.shape_cast %150 : vector<1x8x128xf32> to vector<8x128xf32>
      %152 = arith.mulf %151, %1 : vector<8x128xf32>
      %c1_i32_66 = arith.constant 1 : i32
      %153 = arith.addi %146, %c1_i32_66 : i32
      %154 = arith.index_cast %153 : i32 to index
      %155 = memref.load %arg1[%154] : memref<504xi32, #tpu.memory_space<smem>>
      %156 = arith.index_cast %155 : i32 to index
      %c0_67 = arith.constant 0 : index
      %c0_68 = arith.constant 0 : index
      %157 = vector.load %arg2[%156, %c0_67, %c0_68] : memref<3000x8x128xf32, #tpu.memory_space<vmem>>, vector<1x8x128xf32>
      %158 = vector.shape_cast %157 : vector<1x8x128xf32> to vector<8x128xf32>
      %159 = arith.mulf %158, %3 : vector<8x128xf32>
      %160 = arith.addf %152, %159 : vector<8x128xf32>
      %c2_i32_69 = arith.constant 2 : i32
      %161 = arith.addi %146, %c2_i32_69 : i32
      %162 = arith.index_cast %161 : i32 to index
      %163 = memref.load %arg1[%162] : memref<504xi32, #tpu.memory_space<smem>>
      %164 = arith.index_cast %163 : i32 to index
      %c0_70 = arith.constant 0 : index
      %c0_71 = arith.constant 0 : index
      %165 = vector.load %arg2[%164, %c0_70, %c0_71] : memref<3000x8x128xf32, #tpu.memory_space<vmem>>, vector<1x8x128xf32>
      %166 = vector.shape_cast %165 : vector<1x8x128xf32> to vector<8x128xf32>
      %167 = arith.mulf %166, %5 : vector<8x128xf32>
      %168 = arith.addf %160, %167 : vector<8x128xf32>
      %c3_i32_72 = arith.constant 3 : i32
      %169 = arith.addi %146, %c3_i32_72 : i32
      %170 = arith.index_cast %169 : i32 to index
      %171 = memref.load %arg1[%170] : memref<504xi32, #tpu.memory_space<smem>>
      %172 = arith.index_cast %171 : i32 to index
      %c0_73 = arith.constant 0 : index
      %c0_74 = arith.constant 0 : index
      %173 = vector.load %arg2[%172, %c0_73, %c0_74] : memref<3000x8x128xf32, #tpu.memory_space<vmem>>, vector<1x8x128xf32>
      %174 = vector.shape_cast %173 : vector<1x8x128xf32> to vector<8x128xf32>
      %175 = arith.mulf %174, %7 : vector<8x128xf32>
      %176 = arith.addf %168, %175 : vector<8x128xf32>
      %c4_i32_75 = arith.constant 4 : i32
      %177 = arith.addi %146, %c4_i32_75 : i32
      %178 = arith.index_cast %177 : i32 to index
      %179 = memref.load %arg1[%178] : memref<504xi32, #tpu.memory_space<smem>>
      %180 = arith.index_cast %179 : i32 to index
      %c0_76 = arith.constant 0 : index
      %c0_77 = arith.constant 0 : index
      %181 = vector.load %arg2[%180, %c0_76, %c0_77] : memref<3000x8x128xf32, #tpu.memory_space<vmem>>, vector<1x8x128xf32>
      %182 = vector.shape_cast %181 : vector<1x8x128xf32> to vector<8x128xf32>
      %183 = arith.mulf %182, %9 : vector<8x128xf32>
      %184 = arith.addf %176, %183 : vector<8x128xf32>
      %c5_i32_78 = arith.constant 5 : i32
      %185 = arith.addi %146, %c5_i32_78 : i32
      %186 = arith.index_cast %185 : i32 to index
      %187 = memref.load %arg1[%186] : memref<504xi32, #tpu.memory_space<smem>>
      %188 = arith.index_cast %187 : i32 to index
      %c0_79 = arith.constant 0 : index
      %c0_80 = arith.constant 0 : index
      %189 = vector.load %arg2[%188, %c0_79, %c0_80] : memref<3000x8x128xf32, #tpu.memory_space<vmem>>, vector<1x8x128xf32>
      %190 = vector.shape_cast %189 : vector<1x8x128xf32> to vector<8x128xf32>
      %191 = arith.mulf %190, %11 : vector<8x128xf32>
      %192 = arith.addf %184, %191 : vector<8x128xf32>
      %c6_i32_81 = arith.constant 6 : i32
      %193 = arith.addi %146, %c6_i32_81 : i32
      %194 = arith.index_cast %193 : i32 to index
      %195 = memref.load %arg1[%194] : memref<504xi32, #tpu.memory_space<smem>>
      %196 = arith.index_cast %195 : i32 to index
      %c0_82 = arith.constant 0 : index
      %c0_83 = arith.constant 0 : index
      %197 = vector.load %arg3[%196, %c0_82, %c0_83] : memref<200x8x128xf32, #tpu.memory_space<vmem>>, vector<1x8x128xf32>
      %198 = vector.shape_cast %197 : vector<1x8x128xf32> to vector<8x128xf32>
      %199 = arith.mulf %198, %13 : vector<8x128xf32>
      %200 = arith.addf %192, %199 : vector<8x128xf32>
      %201 = arith.cmpf ogt, %200, %14 : vector<8x128xf32>
      %202 = arith.extui %201 : vector<8x128xi1> to vector<8x128xi32>
      %203 = arith.sitofp %202 : vector<8x128xi32> to vector<8x128xf32>
      %204 = arith.addf %144, %203 : vector<8x128xf32>
      %c3_i32_84 = arith.constant 3 : i32
      %c7_i32_85 = arith.constant 7 : i32
      %205 = arith.muli %c3_i32_84, %c7_i32_85 : i32
      %206 = arith.addi %24, %205 : i32
      %207 = arith.index_cast %206 : i32 to index
      %208 = memref.load %arg1[%207] : memref<504xi32, #tpu.memory_space<smem>>
      %209 = arith.index_cast %208 : i32 to index
      %c0_86 = arith.constant 0 : index
      %c0_87 = arith.constant 0 : index
      %210 = vector.load %arg2[%209, %c0_86, %c0_87] : memref<3000x8x128xf32, #tpu.memory_space<vmem>>, vector<1x8x128xf32>
      %211 = vector.shape_cast %210 : vector<1x8x128xf32> to vector<8x128xf32>
      %212 = arith.mulf %211, %1 : vector<8x128xf32>
      %c1_i32_88 = arith.constant 1 : i32
      %213 = arith.addi %206, %c1_i32_88 : i32
      %214 = arith.index_cast %213 : i32 to index
      %215 = memref.load %arg1[%214] : memref<504xi32, #tpu.memory_space<smem>>
      %216 = arith.index_cast %215 : i32 to index
      %c0_89 = arith.constant 0 : index
      %c0_90 = arith.constant 0 : index
      %217 = vector.load %arg2[%216, %c0_89, %c0_90] : memref<3000x8x128xf32, #tpu.memory_space<vmem>>, vector<1x8x128xf32>
      %218 = vector.shape_cast %217 : vector<1x8x128xf32> to vector<8x128xf32>
      %219 = arith.mulf %218, %3 : vector<8x128xf32>
      %220 = arith.addf %212, %219 : vector<8x128xf32>
      %c2_i32_91 = arith.constant 2 : i32
      %221 = arith.addi %206, %c2_i32_91 : i32
      %222 = arith.index_cast %221 : i32 to index
      %223 = memref.load %arg1[%222] : memref<504xi32, #tpu.memory_space<smem>>
      %224 = arith.index_cast %223 : i32 to index
      %c0_92 = arith.constant 0 : index
      %c0_93 = arith.constant 0 : index
      %225 = vector.load %arg2[%224, %c0_92, %c0_93] : memref<3000x8x128xf32, #tpu.memory_space<vmem>>, vector<1x8x128xf32>
      %226 = vector.shape_cast %225 : vector<1x8x128xf32> to vector<8x128xf32>
      %227 = arith.mulf %226, %5 : vector<8x128xf32>
      %228 = arith.addf %220, %227 : vector<8x128xf32>
      %c3_i32_94 = arith.constant 3 : i32
      %229 = arith.addi %206, %c3_i32_94 : i32
      %230 = arith.index_cast %229 : i32 to index
      %231 = memref.load %arg1[%230] : memref<504xi32, #tpu.memory_space<smem>>
      %232 = arith.index_cast %231 : i32 to index
      %c0_95 = arith.constant 0 : index
      %c0_96 = arith.constant 0 : index
      %233 = vector.load %arg2[%232, %c0_95, %c0_96] : memref<3000x8x128xf32, #tpu.memory_space<vmem>>, vector<1x8x128xf32>
      %234 = vector.shape_cast %233 : vector<1x8x128xf32> to vector<8x128xf32>
      %235 = arith.mulf %234, %7 : vector<8x128xf32>
      %236 = arith.addf %228, %235 : vector<8x128xf32>
      %c4_i32_97 = arith.constant 4 : i32
      %237 = arith.addi %206, %c4_i32_97 : i32
      %238 = arith.index_cast %237 : i32 to index
      %239 = memref.load %arg1[%238] : memref<504xi32, #tpu.memory_space<smem>>
      %240 = arith.index_cast %239 : i32 to index
      %c0_98 = arith.constant 0 : index
      %c0_99 = arith.constant 0 : index
      %241 = vector.load %arg2[%240, %c0_98, %c0_99] : memref<3000x8x128xf32, #tpu.memory_space<vmem>>, vector<1x8x128xf32>
      %242 = vector.shape_cast %241 : vector<1x8x128xf32> to vector<8x128xf32>
      %243 = arith.mulf %242, %9 : vector<8x128xf32>
      %244 = arith.addf %236, %243 : vector<8x128xf32>
      %c5_i32_100 = arith.constant 5 : i32
      %245 = arith.addi %206, %c5_i32_100 : i32
      %246 = arith.index_cast %245 : i32 to index
      %247 = memref.load %arg1[%246] : memref<504xi32, #tpu.memory_space<smem>>
      %248 = arith.index_cast %247 : i32 to index
      %c0_101 = arith.constant 0 : index
      %c0_102 = arith.constant 0 : index
      %249 = vector.load %arg2[%248, %c0_101, %c0_102] : memref<3000x8x128xf32, #tpu.memory_space<vmem>>, vector<1x8x128xf32>
      %250 = vector.shape_cast %249 : vector<1x8x128xf32> to vector<8x128xf32>
      %251 = arith.mulf %250, %11 : vector<8x128xf32>
      %252 = arith.addf %244, %251 : vector<8x128xf32>
      %c6_i32_103 = arith.constant 6 : i32
      %253 = arith.addi %206, %c6_i32_103 : i32
      %254 = arith.index_cast %253 : i32 to index
      %255 = memref.load %arg1[%254] : memref<504xi32, #tpu.memory_space<smem>>
      %256 = arith.index_cast %255 : i32 to index
      %c0_104 = arith.constant 0 : index
      %c0_105 = arith.constant 0 : index
      %257 = vector.load %arg3[%256, %c0_104, %c0_105] : memref<200x8x128xf32, #tpu.memory_space<vmem>>, vector<1x8x128xf32>
      %258 = vector.shape_cast %257 : vector<1x8x128xf32> to vector<8x128xf32>
      %259 = arith.mulf %258, %13 : vector<8x128xf32>
      %260 = arith.addf %252, %259 : vector<8x128xf32>
      %261 = arith.cmpf ogt, %260, %14 : vector<8x128xf32>
      %262 = arith.extui %261 : vector<8x128xi1> to vector<8x128xi32>
      %263 = arith.sitofp %262 : vector<8x128xi32> to vector<8x128xf32>
      %264 = arith.addf %204, %263 : vector<8x128xf32>
      %c4_i32_106 = arith.constant 4 : i32
      %c7_i32_107 = arith.constant 7 : i32
      %265 = arith.muli %c4_i32_106, %c7_i32_107 : i32
      %266 = arith.addi %24, %265 : i32
      %267 = arith.index_cast %266 : i32 to index
      %268 = memref.load %arg1[%267] : memref<504xi32, #tpu.memory_space<smem>>
      %269 = arith.index_cast %268 : i32 to index
      %c0_108 = arith.constant 0 : index
      %c0_109 = arith.constant 0 : index
      %270 = vector.load %arg2[%269, %c0_108, %c0_109] : memref<3000x8x128xf32, #tpu.memory_space<vmem>>, vector<1x8x128xf32>
      %271 = vector.shape_cast %270 : vector<1x8x128xf32> to vector<8x128xf32>
      %272 = arith.mulf %271, %1 : vector<8x128xf32>
      %c1_i32_110 = arith.constant 1 : i32
      %273 = arith.addi %266, %c1_i32_110 : i32
      %274 = arith.index_cast %273 : i32 to index
      %275 = memref.load %arg1[%274] : memref<504xi32, #tpu.memory_space<smem>>
      %276 = arith.index_cast %275 : i32 to index
      %c0_111 = arith.constant 0 : index
      %c0_112 = arith.constant 0 : index
      %277 = vector.load %arg2[%276, %c0_111, %c0_112] : memref<3000x8x128xf32, #tpu.memory_space<vmem>>, vector<1x8x128xf32>
      %278 = vector.shape_cast %277 : vector<1x8x128xf32> to vector<8x128xf32>
      %279 = arith.mulf %278, %3 : vector<8x128xf32>
      %280 = arith.addf %272, %279 : vector<8x128xf32>
      %c2_i32_113 = arith.constant 2 : i32
      %281 = arith.addi %266, %c2_i32_113 : i32
      %282 = arith.index_cast %281 : i32 to index
      %283 = memref.load %arg1[%282] : memref<504xi32, #tpu.memory_space<smem>>
      %284 = arith.index_cast %283 : i32 to index
      %c0_114 = arith.constant 0 : index
      %c0_115 = arith.constant 0 : index
      %285 = vector.load %arg2[%284, %c0_114, %c0_115] : memref<3000x8x128xf32, #tpu.memory_space<vmem>>, vector<1x8x128xf32>
      %286 = vector.shape_cast %285 : vector<1x8x128xf32> to vector<8x128xf32>
      %287 = arith.mulf %286, %5 : vector<8x128xf32>
      %288 = arith.addf %280, %287 : vector<8x128xf32>
      %c3_i32_116 = arith.constant 3 : i32
      %289 = arith.addi %266, %c3_i32_116 : i32
      %290 = arith.index_cast %289 : i32 to index
      %291 = memref.load %arg1[%290] : memref<504xi32, #tpu.memory_space<smem>>
      %292 = arith.index_cast %291 : i32 to index
      %c0_117 = arith.constant 0 : index
      %c0_118 = arith.constant 0 : index
      %293 = vector.load %arg2[%292, %c0_117, %c0_118] : memref<3000x8x128xf32, #tpu.memory_space<vmem>>, vector<1x8x128xf32>
      %294 = vector.shape_cast %293 : vector<1x8x128xf32> to vector<8x128xf32>
      %295 = arith.mulf %294, %7 : vector<8x128xf32>
      %296 = arith.addf %288, %295 : vector<8x128xf32>
      %c4_i32_119 = arith.constant 4 : i32
      %297 = arith.addi %266, %c4_i32_119 : i32
      %298 = arith.index_cast %297 : i32 to index
      %299 = memref.load %arg1[%298] : memref<504xi32, #tpu.memory_space<smem>>
      %300 = arith.index_cast %299 : i32 to index
      %c0_120 = arith.constant 0 : index
      %c0_121 = arith.constant 0 : index
      %301 = vector.load %arg2[%300, %c0_120, %c0_121] : memref<3000x8x128xf32, #tpu.memory_space<vmem>>, vector<1x8x128xf32>
      %302 = vector.shape_cast %301 : vector<1x8x128xf32> to vector<8x128xf32>
      %303 = arith.mulf %302, %9 : vector<8x128xf32>
      %304 = arith.addf %296, %303 : vector<8x128xf32>
      %c5_i32_122 = arith.constant 5 : i32
      %305 = arith.addi %266, %c5_i32_122 : i32
      %306 = arith.index_cast %305 : i32 to index
      %307 = memref.load %arg1[%306] : memref<504xi32, #tpu.memory_space<smem>>
      %308 = arith.index_cast %307 : i32 to index
      %c0_123 = arith.constant 0 : index
      %c0_124 = arith.constant 0 : index
      %309 = vector.load %arg2[%308, %c0_123, %c0_124] : memref<3000x8x128xf32, #tpu.memory_space<vmem>>, vector<1x8x128xf32>
      %310 = vector.shape_cast %309 : vector<1x8x128xf32> to vector<8x128xf32>
      %311 = arith.mulf %310, %11 : vector<8x128xf32>
      %312 = arith.addf %304, %311 : vector<8x128xf32>
      %c6_i32_125 = arith.constant 6 : i32
      %313 = arith.addi %266, %c6_i32_125 : i32
      %314 = arith.index_cast %313 : i32 to index
      %315 = memref.load %arg1[%314] : memref<504xi32, #tpu.memory_space<smem>>
      %316 = arith.index_cast %315 : i32 to index
      %c0_126 = arith.constant 0 : index
      %c0_127 = arith.constant 0 : index
      %317 = vector.load %arg3[%316, %c0_126, %c0_127] : memref<200x8x128xf32, #tpu.memory_space<vmem>>, vector<1x8x128xf32>
      %318 = vector.shape_cast %317 : vector<1x8x128xf32> to vector<8x128xf32>
      %319 = arith.mulf %318, %13 : vector<8x128xf32>
      %320 = arith.addf %312, %319 : vector<8x128xf32>
      %321 = arith.cmpf ogt, %320, %14 : vector<8x128xf32>
      %322 = arith.extui %321 : vector<8x128xi1> to vector<8x128xi32>
      %323 = arith.sitofp %322 : vector<8x128xi32> to vector<8x128xf32>
      %324 = arith.addf %264, %323 : vector<8x128xf32>
      %c5_i32_128 = arith.constant 5 : i32
      %c7_i32_129 = arith.constant 7 : i32
      %325 = arith.muli %c5_i32_128, %c7_i32_129 : i32
      %326 = arith.addi %24, %325 : i32
      %327 = arith.index_cast %326 : i32 to index
      %328 = memref.load %arg1[%327] : memref<504xi32, #tpu.memory_space<smem>>
      %329 = arith.index_cast %328 : i32 to index
      %c0_130 = arith.constant 0 : index
      %c0_131 = arith.constant 0 : index
      %330 = vector.load %arg2[%329, %c0_130, %c0_131] : memref<3000x8x128xf32, #tpu.memory_space<vmem>>, vector<1x8x128xf32>
      %331 = vector.shape_cast %330 : vector<1x8x128xf32> to vector<8x128xf32>
      %332 = arith.mulf %331, %1 : vector<8x128xf32>
      %c1_i32_132 = arith.constant 1 : i32
      %333 = arith.addi %326, %c1_i32_132 : i32
      %334 = arith.index_cast %333 : i32 to index
      %335 = memref.load %arg1[%334] : memref<504xi32, #tpu.memory_space<smem>>
      %336 = arith.index_cast %335 : i32 to index
      %c0_133 = arith.constant 0 : index
      %c0_134 = arith.constant 0 : index
      %337 = vector.load %arg2[%336, %c0_133, %c0_134] : memref<3000x8x128xf32, #tpu.memory_space<vmem>>, vector<1x8x128xf32>
      %338 = vector.shape_cast %337 : vector<1x8x128xf32> to vector<8x128xf32>
      %339 = arith.mulf %338, %3 : vector<8x128xf32>
      %340 = arith.addf %332, %339 : vector<8x128xf32>
      %c2_i32_135 = arith.constant 2 : i32
      %341 = arith.addi %326, %c2_i32_135 : i32
      %342 = arith.index_cast %341 : i32 to index
      %343 = memref.load %arg1[%342] : memref<504xi32, #tpu.memory_space<smem>>
      %344 = arith.index_cast %343 : i32 to index
      %c0_136 = arith.constant 0 : index
      %c0_137 = arith.constant 0 : index
      %345 = vector.load %arg2[%344, %c0_136, %c0_137] : memref<3000x8x128xf32, #tpu.memory_space<vmem>>, vector<1x8x128xf32>
      %346 = vector.shape_cast %345 : vector<1x8x128xf32> to vector<8x128xf32>
      %347 = arith.mulf %346, %5 : vector<8x128xf32>
      %348 = arith.addf %340, %347 : vector<8x128xf32>
      %c3_i32_138 = arith.constant 3 : i32
      %349 = arith.addi %326, %c3_i32_138 : i32
      %350 = arith.index_cast %349 : i32 to index
      %351 = memref.load %arg1[%350] : memref<504xi32, #tpu.memory_space<smem>>
      %352 = arith.index_cast %351 : i32 to index
      %c0_139 = arith.constant 0 : index
      %c0_140 = arith.constant 0 : index
      %353 = vector.load %arg2[%352, %c0_139, %c0_140] : memref<3000x8x128xf32, #tpu.memory_space<vmem>>, vector<1x8x128xf32>
      %354 = vector.shape_cast %353 : vector<1x8x128xf32> to vector<8x128xf32>
      %355 = arith.mulf %354, %7 : vector<8x128xf32>
      %356 = arith.addf %348, %355 : vector<8x128xf32>
      %c4_i32_141 = arith.constant 4 : i32
      %357 = arith.addi %326, %c4_i32_141 : i32
      %358 = arith.index_cast %357 : i32 to index
      %359 = memref.load %arg1[%358] : memref<504xi32, #tpu.memory_space<smem>>
      %360 = arith.index_cast %359 : i32 to index
      %c0_142 = arith.constant 0 : index
      %c0_143 = arith.constant 0 : index
      %361 = vector.load %arg2[%360, %c0_142, %c0_143] : memref<3000x8x128xf32, #tpu.memory_space<vmem>>, vector<1x8x128xf32>
      %362 = vector.shape_cast %361 : vector<1x8x128xf32> to vector<8x128xf32>
      %363 = arith.mulf %362, %9 : vector<8x128xf32>
      %364 = arith.addf %356, %363 : vector<8x128xf32>
      %c5_i32_144 = arith.constant 5 : i32
      %365 = arith.addi %326, %c5_i32_144 : i32
      %366 = arith.index_cast %365 : i32 to index
      %367 = memref.load %arg1[%366] : memref<504xi32, #tpu.memory_space<smem>>
      %368 = arith.index_cast %367 : i32 to index
      %c0_145 = arith.constant 0 : index
      %c0_146 = arith.constant 0 : index
      %369 = vector.load %arg2[%368, %c0_145, %c0_146] : memref<3000x8x128xf32, #tpu.memory_space<vmem>>, vector<1x8x128xf32>
      %370 = vector.shape_cast %369 : vector<1x8x128xf32> to vector<8x128xf32>
      %371 = arith.mulf %370, %11 : vector<8x128xf32>
      %372 = arith.addf %364, %371 : vector<8x128xf32>
      %c6_i32_147 = arith.constant 6 : i32
      %373 = arith.addi %326, %c6_i32_147 : i32
      %374 = arith.index_cast %373 : i32 to index
      %375 = memref.load %arg1[%374] : memref<504xi32, #tpu.memory_space<smem>>
      %376 = arith.index_cast %375 : i32 to index
      %c0_148 = arith.constant 0 : index
      %c0_149 = arith.constant 0 : index
      %377 = vector.load %arg3[%376, %c0_148, %c0_149] : memref<200x8x128xf32, #tpu.memory_space<vmem>>, vector<1x8x128xf32>
      %378 = vector.shape_cast %377 : vector<1x8x128xf32> to vector<8x128xf32>
      %379 = arith.mulf %378, %13 : vector<8x128xf32>
      %380 = arith.addf %372, %379 : vector<8x128xf32>
      %381 = arith.cmpf ogt, %380, %14 : vector<8x128xf32>
      %382 = arith.extui %381 : vector<8x128xi1> to vector<8x128xi32>
      %383 = arith.sitofp %382 : vector<8x128xi32> to vector<8x128xf32>
      %384 = arith.addf %324, %383 : vector<8x128xf32>
      %c6_i32_150 = arith.constant 6 : i32
      %c7_i32_151 = arith.constant 7 : i32
      %385 = arith.muli %c6_i32_150, %c7_i32_151 : i32
      %386 = arith.addi %24, %385 : i32
      %387 = arith.index_cast %386 : i32 to index
      %388 = memref.load %arg1[%387] : memref<504xi32, #tpu.memory_space<smem>>
      %389 = arith.index_cast %388 : i32 to index
      %c0_152 = arith.constant 0 : index
      %c0_153 = arith.constant 0 : index
      %390 = vector.load %arg2[%389, %c0_152, %c0_153] : memref<3000x8x128xf32, #tpu.memory_space<vmem>>, vector<1x8x128xf32>
      %391 = vector.shape_cast %390 : vector<1x8x128xf32> to vector<8x128xf32>
      %392 = arith.mulf %391, %1 : vector<8x128xf32>
      %c1_i32_154 = arith.constant 1 : i32
      %393 = arith.addi %386, %c1_i32_154 : i32
      %394 = arith.index_cast %393 : i32 to index
      %395 = memref.load %arg1[%394] : memref<504xi32, #tpu.memory_space<smem>>
      %396 = arith.index_cast %395 : i32 to index
      %c0_155 = arith.constant 0 : index
      %c0_156 = arith.constant 0 : index
      %397 = vector.load %arg2[%396, %c0_155, %c0_156] : memref<3000x8x128xf32, #tpu.memory_space<vmem>>, vector<1x8x128xf32>
      %398 = vector.shape_cast %397 : vector<1x8x128xf32> to vector<8x128xf32>
      %399 = arith.mulf %398, %3 : vector<8x128xf32>
      %400 = arith.addf %392, %399 : vector<8x128xf32>
      %c2_i32_157 = arith.constant 2 : i32
      %401 = arith.addi %386, %c2_i32_157 : i32
      %402 = arith.index_cast %401 : i32 to index
      %403 = memref.load %arg1[%402] : memref<504xi32, #tpu.memory_space<smem>>
      %404 = arith.index_cast %403 : i32 to index
      %c0_158 = arith.constant 0 : index
      %c0_159 = arith.constant 0 : index
      %405 = vector.load %arg2[%404, %c0_158, %c0_159] : memref<3000x8x128xf32, #tpu.memory_space<vmem>>, vector<1x8x128xf32>
      %406 = vector.shape_cast %405 : vector<1x8x128xf32> to vector<8x128xf32>
      %407 = arith.mulf %406, %5 : vector<8x128xf32>
      %408 = arith.addf %400, %407 : vector<8x128xf32>
      %c3_i32_160 = arith.constant 3 : i32
      %409 = arith.addi %386, %c3_i32_160 : i32
      %410 = arith.index_cast %409 : i32 to index
      %411 = memref.load %arg1[%410] : memref<504xi32, #tpu.memory_space<smem>>
      %412 = arith.index_cast %411 : i32 to index
      %c0_161 = arith.constant 0 : index
      %c0_162 = arith.constant 0 : index
      %413 = vector.load %arg2[%412, %c0_161, %c0_162] : memref<3000x8x128xf32, #tpu.memory_space<vmem>>, vector<1x8x128xf32>
      %414 = vector.shape_cast %413 : vector<1x8x128xf32> to vector<8x128xf32>
      %415 = arith.mulf %414, %7 : vector<8x128xf32>
      %416 = arith.addf %408, %415 : vector<8x128xf32>
      %c4_i32_163 = arith.constant 4 : i32
      %417 = arith.addi %386, %c4_i32_163 : i32
      %418 = arith.index_cast %417 : i32 to index
      %419 = memref.load %arg1[%418] : memref<504xi32, #tpu.memory_space<smem>>
      %420 = arith.index_cast %419 : i32 to index
      %c0_164 = arith.constant 0 : index
      %c0_165 = arith.constant 0 : index
      %421 = vector.load %arg2[%420, %c0_164, %c0_165] : memref<3000x8x128xf32, #tpu.memory_space<vmem>>, vector<1x8x128xf32>
      %422 = vector.shape_cast %421 : vector<1x8x128xf32> to vector<8x128xf32>
      %423 = arith.mulf %422, %9 : vector<8x128xf32>
      %424 = arith.addf %416, %423 : vector<8x128xf32>
      %c5_i32_166 = arith.constant 5 : i32
      %425 = arith.addi %386, %c5_i32_166 : i32
      %426 = arith.index_cast %425 : i32 to index
      %427 = memref.load %arg1[%426] : memref<504xi32, #tpu.memory_space<smem>>
      %428 = arith.index_cast %427 : i32 to index
      %c0_167 = arith.constant 0 : index
      %c0_168 = arith.constant 0 : index
      %429 = vector.load %arg2[%428, %c0_167, %c0_168] : memref<3000x8x128xf32, #tpu.memory_space<vmem>>, vector<1x8x128xf32>
      %430 = vector.shape_cast %429 : vector<1x8x128xf32> to vector<8x128xf32>
      %431 = arith.mulf %430, %11 : vector<8x128xf32>
      %432 = arith.addf %424, %431 : vector<8x128xf32>
      %c6_i32_169 = arith.constant 6 : i32
      %433 = arith.addi %386, %c6_i32_169 : i32
      %434 = arith.index_cast %433 : i32 to index
      %435 = memref.load %arg1[%434] : memref<504xi32, #tpu.memory_space<smem>>
      %436 = arith.index_cast %435 : i32 to index
      %c0_170 = arith.constant 0 : index
      %c0_171 = arith.constant 0 : index
      %437 = vector.load %arg3[%436, %c0_170, %c0_171] : memref<200x8x128xf32, #tpu.memory_space<vmem>>, vector<1x8x128xf32>
      %438 = vector.shape_cast %437 : vector<1x8x128xf32> to vector<8x128xf32>
      %439 = arith.mulf %438, %13 : vector<8x128xf32>
      %440 = arith.addf %432, %439 : vector<8x128xf32>
      %441 = arith.cmpf ogt, %440, %14 : vector<8x128xf32>
      %442 = arith.extui %441 : vector<8x128xi1> to vector<8x128xi32>
      %443 = arith.sitofp %442 : vector<8x128xi32> to vector<8x128xf32>
      %444 = arith.addf %384, %443 : vector<8x128xf32>
      %c7_i32_172 = arith.constant 7 : i32
      %c7_i32_173 = arith.constant 7 : i32
      %445 = arith.muli %c7_i32_172, %c7_i32_173 : i32
      %446 = arith.addi %24, %445 : i32
      %447 = arith.index_cast %446 : i32 to index
      %448 = memref.load %arg1[%447] : memref<504xi32, #tpu.memory_space<smem>>
      %449 = arith.index_cast %448 : i32 to index
      %c0_174 = arith.constant 0 : index
      %c0_175 = arith.constant 0 : index
      %450 = vector.load %arg2[%449, %c0_174, %c0_175] : memref<3000x8x128xf32, #tpu.memory_space<vmem>>, vector<1x8x128xf32>
      %451 = vector.shape_cast %450 : vector<1x8x128xf32> to vector<8x128xf32>
      %452 = arith.mulf %451, %1 : vector<8x128xf32>
      %c1_i32_176 = arith.constant 1 : i32
      %453 = arith.addi %446, %c1_i32_176 : i32
      %454 = arith.index_cast %453 : i32 to index
      %455 = memref.load %arg1[%454] : memref<504xi32, #tpu.memory_space<smem>>
      %456 = arith.index_cast %455 : i32 to index
      %c0_177 = arith.constant 0 : index
      %c0_178 = arith.constant 0 : index
      %457 = vector.load %arg2[%456, %c0_177, %c0_178] : memref<3000x8x128xf32, #tpu.memory_space<vmem>>, vector<1x8x128xf32>
      %458 = vector.shape_cast %457 : vector<1x8x128xf32> to vector<8x128xf32>
      %459 = arith.mulf %458, %3 : vector<8x128xf32>
      %460 = arith.addf %452, %459 : vector<8x128xf32>
      %c2_i32_179 = arith.constant 2 : i32
      %461 = arith.addi %446, %c2_i32_179 : i32
      %462 = arith.index_cast %461 : i32 to index
      %463 = memref.load %arg1[%462] : memref<504xi32, #tpu.memory_space<smem>>
      %464 = arith.index_cast %463 : i32 to index
      %c0_180 = arith.constant 0 : index
      %c0_181 = arith.constant 0 : index
      %465 = vector.load %arg2[%464, %c0_180, %c0_181] : memref<3000x8x128xf32, #tpu.memory_space<vmem>>, vector<1x8x128xf32>
      %466 = vector.shape_cast %465 : vector<1x8x128xf32> to vector<8x128xf32>
      %467 = arith.mulf %466, %5 : vector<8x128xf32>
      %468 = arith.addf %460, %467 : vector<8x128xf32>
      %c3_i32_182 = arith.constant 3 : i32
      %469 = arith.addi %446, %c3_i32_182 : i32
      %470 = arith.index_cast %469 : i32 to index
      %471 = memref.load %arg1[%470] : memref<504xi32, #tpu.memory_space<smem>>
      %472 = arith.index_cast %471 : i32 to index
      %c0_183 = arith.constant 0 : index
      %c0_184 = arith.constant 0 : index
      %473 = vector.load %arg2[%472, %c0_183, %c0_184] : memref<3000x8x128xf32, #tpu.memory_space<vmem>>, vector<1x8x128xf32>
      %474 = vector.shape_cast %473 : vector<1x8x128xf32> to vector<8x128xf32>
      %475 = arith.mulf %474, %7 : vector<8x128xf32>
      %476 = arith.addf %468, %475 : vector<8x128xf32>
      %c4_i32_185 = arith.constant 4 : i32
      %477 = arith.addi %446, %c4_i32_185 : i32
      %478 = arith.index_cast %477 : i32 to index
      %479 = memref.load %arg1[%478] : memref<504xi32, #tpu.memory_space<smem>>
      %480 = arith.index_cast %479 : i32 to index
      %c0_186 = arith.constant 0 : index
      %c0_187 = arith.constant 0 : index
      %481 = vector.load %arg2[%480, %c0_186, %c0_187] : memref<3000x8x128xf32, #tpu.memory_space<vmem>>, vector<1x8x128xf32>
      %482 = vector.shape_cast %481 : vector<1x8x128xf32> to vector<8x128xf32>
      %483 = arith.mulf %482, %9 : vector<8x128xf32>
      %484 = arith.addf %476, %483 : vector<8x128xf32>
      %c5_i32_188 = arith.constant 5 : i32
      %485 = arith.addi %446, %c5_i32_188 : i32
      %486 = arith.index_cast %485 : i32 to index
      %487 = memref.load %arg1[%486] : memref<504xi32, #tpu.memory_space<smem>>
      %488 = arith.index_cast %487 : i32 to index
      %c0_189 = arith.constant 0 : index
      %c0_190 = arith.constant 0 : index
      %489 = vector.load %arg2[%488, %c0_189, %c0_190] : memref<3000x8x128xf32, #tpu.memory_space<vmem>>, vector<1x8x128xf32>
      %490 = vector.shape_cast %489 : vector<1x8x128xf32> to vector<8x128xf32>
      %491 = arith.mulf %490, %11 : vector<8x128xf32>
      %492 = arith.addf %484, %491 : vector<8x128xf32>
      %c6_i32_191 = arith.constant 6 : i32
      %493 = arith.addi %446, %c6_i32_191 : i32
      %494 = arith.index_cast %493 : i32 to index
      %495 = memref.load %arg1[%494] : memref<504xi32, #tpu.memory_space<smem>>
      %496 = arith.index_cast %495 : i32 to index
      %c0_192 = arith.constant 0 : index
      %c0_193 = arith.constant 0 : index
      %497 = vector.load %arg3[%496, %c0_192, %c0_193] : memref<200x8x128xf32, #tpu.memory_space<vmem>>, vector<1x8x128xf32>
      %498 = vector.shape_cast %497 : vector<1x8x128xf32> to vector<8x128xf32>
      %499 = arith.mulf %498, %13 : vector<8x128xf32>
      %500 = arith.addf %492, %499 : vector<8x128xf32>
      %501 = arith.cmpf ogt, %500, %14 : vector<8x128xf32>
      %502 = arith.extui %501 : vector<8x128xi1> to vector<8x128xi32>
      %503 = arith.sitofp %502 : vector<8x128xi32> to vector<8x128xf32>
      %504 = arith.addf %444, %503 : vector<8x128xf32>
      %c8_i32_194 = arith.constant 8 : i32
      %c7_i32_195 = arith.constant 7 : i32
      %505 = arith.muli %c8_i32_194, %c7_i32_195 : i32
      %506 = arith.addi %24, %505 : i32
      %507 = arith.index_cast %506 : i32 to index
      %508 = memref.load %arg1[%507] : memref<504xi32, #tpu.memory_space<smem>>
      %509 = arith.index_cast %508 : i32 to index
      %c0_196 = arith.constant 0 : index
      %c0_197 = arith.constant 0 : index
      %510 = vector.load %arg2[%509, %c0_196, %c0_197] : memref<3000x8x128xf32, #tpu.memory_space<vmem>>, vector<1x8x128xf32>
      %511 = vector.shape_cast %510 : vector<1x8x128xf32> to vector<8x128xf32>
      %512 = arith.mulf %511, %1 : vector<8x128xf32>
      %c1_i32_198 = arith.constant 1 : i32
      %513 = arith.addi %506, %c1_i32_198 : i32
      %514 = arith.index_cast %513 : i32 to index
      %515 = memref.load %arg1[%514] : memref<504xi32, #tpu.memory_space<smem>>
      %516 = arith.index_cast %515 : i32 to index
      %c0_199 = arith.constant 0 : index
      %c0_200 = arith.constant 0 : index
      %517 = vector.load %arg2[%516, %c0_199, %c0_200] : memref<3000x8x128xf32, #tpu.memory_space<vmem>>, vector<1x8x128xf32>
      %518 = vector.shape_cast %517 : vector<1x8x128xf32> to vector<8x128xf32>
      %519 = arith.mulf %518, %3 : vector<8x128xf32>
      %520 = arith.addf %512, %519 : vector<8x128xf32>
      %c2_i32_201 = arith.constant 2 : i32
      %521 = arith.addi %506, %c2_i32_201 : i32
      %522 = arith.index_cast %521 : i32 to index
      %523 = memref.load %arg1[%522] : memref<504xi32, #tpu.memory_space<smem>>
      %524 = arith.index_cast %523 : i32 to index
      %c0_202 = arith.constant 0 : index
      %c0_203 = arith.constant 0 : index
      %525 = vector.load %arg2[%524, %c0_202, %c0_203] : memref<3000x8x128xf32, #tpu.memory_space<vmem>>, vector<1x8x128xf32>
      %526 = vector.shape_cast %525 : vector<1x8x128xf32> to vector<8x128xf32>
      %527 = arith.mulf %526, %5 : vector<8x128xf32>
      %528 = arith.addf %520, %527 : vector<8x128xf32>
      %c3_i32_204 = arith.constant 3 : i32
      %529 = arith.addi %506, %c3_i32_204 : i32
      %530 = arith.index_cast %529 : i32 to index
      %531 = memref.load %arg1[%530] : memref<504xi32, #tpu.memory_space<smem>>
      %532 = arith.index_cast %531 : i32 to index
      %c0_205 = arith.constant 0 : index
      %c0_206 = arith.constant 0 : index
      %533 = vector.load %arg2[%532, %c0_205, %c0_206] : memref<3000x8x128xf32, #tpu.memory_space<vmem>>, vector<1x8x128xf32>
      %534 = vector.shape_cast %533 : vector<1x8x128xf32> to vector<8x128xf32>
      %535 = arith.mulf %534, %7 : vector<8x128xf32>
      %536 = arith.addf %528, %535 : vector<8x128xf32>
      %c4_i32_207 = arith.constant 4 : i32
      %537 = arith.addi %506, %c4_i32_207 : i32
      %538 = arith.index_cast %537 : i32 to index
      %539 = memref.load %arg1[%538] : memref<504xi32, #tpu.memory_space<smem>>
      %540 = arith.index_cast %539 : i32 to index
      %c0_208 = arith.constant 0 : index
      %c0_209 = arith.constant 0 : index
      %541 = vector.load %arg2[%540, %c0_208, %c0_209] : memref<3000x8x128xf32, #tpu.memory_space<vmem>>, vector<1x8x128xf32>
      %542 = vector.shape_cast %541 : vector<1x8x128xf32> to vector<8x128xf32>
      %543 = arith.mulf %542, %9 : vector<8x128xf32>
      %544 = arith.addf %536, %543 : vector<8x128xf32>
      %c5_i32_210 = arith.constant 5 : i32
      %545 = arith.addi %506, %c5_i32_210 : i32
      %546 = arith.index_cast %545 : i32 to index
      %547 = memref.load %arg1[%546] : memref<504xi32, #tpu.memory_space<smem>>
      %548 = arith.index_cast %547 : i32 to index
      %c0_211 = arith.constant 0 : index
      %c0_212 = arith.constant 0 : index
      %549 = vector.load %arg2[%548, %c0_211, %c0_212] : memref<3000x8x128xf32, #tpu.memory_space<vmem>>, vector<1x8x128xf32>
      %550 = vector.shape_cast %549 : vector<1x8x128xf32> to vector<8x128xf32>
      %551 = arith.mulf %550, %11 : vector<8x128xf32>
      %552 = arith.addf %544, %551 : vector<8x128xf32>
      %c6_i32_213 = arith.constant 6 : i32
      %553 = arith.addi %506, %c6_i32_213 : i32
      %554 = arith.index_cast %553 : i32 to index
      %555 = memref.load %arg1[%554] : memref<504xi32, #tpu.memory_space<smem>>
      %556 = arith.index_cast %555 : i32 to index
      %c0_214 = arith.constant 0 : index
      %c0_215 = arith.constant 0 : index
      %557 = vector.load %arg3[%556, %c0_214, %c0_215] : memref<200x8x128xf32, #tpu.memory_space<vmem>>, vector<1x8x128xf32>
      %558 = vector.shape_cast %557 : vector<1x8x128xf32> to vector<8x128xf32>
      %559 = arith.mulf %558, %13 : vector<8x128xf32>
      %560 = arith.addf %552, %559 : vector<8x128xf32>
      %561 = arith.cmpf ogt, %560, %14 : vector<8x128xf32>
      %562 = arith.extui %561 : vector<8x128xi1> to vector<8x128xi32>
      %563 = arith.sitofp %562 : vector<8x128xi32> to vector<8x128xf32>
      %564 = arith.addf %504, %563 : vector<8x128xf32>
      %c9_i32 = arith.constant 9 : i32
      %565 = arith.addf %564, %564 : vector<8x128xf32>
      %566 = vector.broadcast %cst_19 : f32 to vector<8x128xf32>
      %567 = arith.cmpf ogt, %565, %566 : vector<8x128xf32>
      %568 = arith.extui %567 : vector<8x128xi1> to vector<8x128xi32>
      %569 = arith.sitofp %568 : vector<8x128xi32> to vector<8x128xf32>
      %570 = arith.mulf %569, %15 : vector<8x128xf32>
      %cst_216 = arith.constant dense<0.000000e+00> : vector<8xf32>
      %571 = vector.multi_reduction <add>, %570, %cst_216 [1] : vector<8x128xf32> to vector<8xf32>
      %572 = vector.shape_cast %571 : vector<8xf32> to vector<8x1xf32>
      %cst_217 = arith.constant dense<0.000000e+00> : vector<1xf32>
      %573 = vector.multi_reduction <add>, %572, %cst_217 [0] : vector<8x1xf32> to vector<1xf32>
      %574 = vector.shape_cast %573 : vector<1xf32> to vector<1x1xf32>
      %575 = vector.broadcast %arg8 : i32 to vector<1x8xi32>
      %576 = arith.cmpi eq, %17, %575 : vector<1x8xi32>
      %577 = vector.shape_cast %574 : vector<1x1xf32> to vector<1x1xf32>
      %578 = vector.broadcast %577 : vector<1x1xf32> to vector<1x8xf32>
      %579 = arith.select %576, %578, %arg9 : vector<1x8xi1>, vector<1x8xf32>
      scf.yield %579 : vector<1x8xf32>
    }
    %c8_i32_20 = arith.constant 8 : i32
    %c0_21 = arith.constant 0 : index
    %c0_22 = arith.constant 0 : index
    %21 = vector.load %arg7[%c0_21, %c0_22] : memref<1x8xf32, #tpu.memory_space<vmem>>, vector<1x8xf32>
    tpu.vector_store %arg7[%c0_21, %c0_22], %20 {strides = array<i32>} : memref<1x8xf32, #tpu.memory_space<vmem>>, vector<1x8xf32>,
    return
  }
  func.func @transform_0(%arg0: i32, %arg1: memref<504xi32, #tpu.memory_space<smem>>) -> (i32, i32, i32) {
    %c0_i32 = arith.constant 0 : i32
    %c0_i32_0 = arith.constant 0 : i32
    %c0_i32_1 = arith.constant 0 : i32
    %c0_i32_2 = arith.constant 0 : i32
    return %c0_i32, %c0_i32_0, %c0_i32_1 : i32, i32, i32
  }
  func.func @transform_1(%arg0: i32, %arg1: memref<504xi32, #tpu.memory_space<smem>>) -> (i32, i32, i32) {
    %c0_i32 = arith.constant 0 : i32
    %c0_i32_0 = arith.constant 0 : i32
    %c0_i32_1 = arith.constant 0 : i32
    %c0_i32_2 = arith.constant 0 : i32
    return %c0_i32, %c0_i32_0, %c0_i32_1 : i32, i32, i32
  }
  func.func @transform_2(%arg0: i32, %arg1: memref<504xi32, #tpu.memory_space<smem>>) -> (i32, i32, i32) {
    %c0_i32 = arith.constant 0 : i32
    %c0_i32_0 = arith.constant 0 : i32
    %c0_i32_1 = arith.constant 0 : i32
    %c0_i32_2 = arith.constant 0 : i32
    return %c0_i32, %c0_i32_0, %c0_i32_1 : i32, i32, i32
  }
  func.func @transform_3(%arg0: i32, %arg1: memref<504xi32, #tpu.memory_space<smem>>) -> (i32, i32) {
    %c0_i32 = arith.constant 0 : i32
    %c0_i32_0 = arith.constant 0 : i32
    %c0_i32_1 = arith.constant 0 : i32
    return %c0_i32, %c0_i32_0 : i32, i32
  }
  func.func @transform_4(%arg0: i32, %arg1: memref<504xi32, #tpu.memory_space<smem>>) -> (i32, i32) {
    %c0_i32 = arith.constant 0 : i32
    %c0_i32_0 = arith.constant 0 : i32
    %c0_i32_1 = arith.constant 0 : i32
    return %c0_i32, %c0_i32_0 : i32, i32
  }
  func.func @transform_5(%arg0: i32, %arg1: memref<504xi32, #tpu.memory_space<smem>>) -> (i32, i32) {
    %c0_i32 = arith.constant 0 : i32
    %c0_i32_0 = arith.constant 0 : i32
    return %arg0, %c0_i32 : i32, i32
  }
}

</mosaic_0001>

<llo_original>
// kernel: tpu_custom_call.1
$region0: #{tpu_custom_call.1}
  #allocation0 [shape = 'u32[]', space=smem, size = 0x4, offset = 0x4, fixed_abs, tag = 'smem constant byte address 0x4 - core index']
  #allocation1 [shape = 'u32[144,128]{1,0:T(1,128)}', space=vmem, size = 0x12000, scoped, tag = 'internal scratch']
  #allocation2 [shape = 's32[1]{0}', space=sflag, size = 0x4, scoped, tag = 'scoped memory for tpu_custom_call.1']
  #allocation3 [shape = 'u8[2048]{0}', space=smem, size = 0x800, scoped, tag = 'prefetched SMEM operand 0']
  %s0 = inlined_call_operand.hbm [shape: s32[504], index: 0, kind: input, shape index: {}]
  %s1 = inlined_call_operand.hbm [shape: f32[3000,8,128], index: 1, kind: input, shape index: {}]
  %s2 = inlined_call_operand.hbm [shape: f32[200,8,128], index: 2, kind: input, shape index: {}]
  %s3 = inlined_call_operand.hbm [shape: f32[7,8,128], index: 3, kind: input, shape index: {}]
  %s4 = inlined_call_operand.hbm [shape: f32[8,128], index: 4, kind: input, shape index: {}]
  %s5 = inlined_call_operand.hbm [shape: f32[8,128], index: 5, kind: input, shape index: {}]
  %s6 = inlined_call_operand.hbm [shape: f32[1,8], index: 6, kind: output, shape index: {}]
  %s7 = sld [smem:[#allocation0]]
  $region57: #{tpu_custom_call.1} parent=0
    _
  %s9 = ssub.s32 1, %s7
  %s10 = scalar_select 0, %s9, %s7
  %12 = dma.hbm_to_smem %s0, 64, [#allocation3], [#allocation2]
  %13 = dma.done [#allocation2], 64
  %14 = sfence
  $region1: #{tpu_custom_call.1} parent=0
    #allocation4 [shape = 'u8[12288000]{0}', space=vmem, size = 0xbb8000, scoped, tag = 'input window, operand 1, single buffered']
    #allocation5 [shape = 's32[1]{0}', space=sflag, size = 0x4, scoped, tag = 'scoped memory for tpu_custom_call.1']
    #allocation6 [shape = 's32[1]{0}', space=sflag, size = 0x4, scoped, tag = 'scoped memory for tpu_custom_call.1']
    #allocation7 [shape = 'u8[819200]{0}', space=vmem, size = 0xc8000, scoped, tag = 'input window, operand 2, single buffered']
    #allocation8 [shape = 's32[1]{0}', space=sflag, size = 0x4, scoped, tag = 'scoped memory for tpu_custom_call.1']
    #allocation9 [shape = 'u8[28672]{0}', space=vmem, size = 0x7000, scoped, tag = 'input window, operand 3, single buffered']
    #allocation10 [shape = 'u8[4096]{0}', space=vmem, size = 0x1000, scoped, tag = 'input window, operand 4, single buffered']
    #allocation11 [shape = 's32[1]{0}', space=sflag, size = 0x4, scoped, tag = 'scoped memory for tpu_custom_call.1']
    #allocation12 [shape = 'u8[4096]{0}', space=vmem, size = 0x1000, scoped, tag = 'input window, operand 5, single buffered']
    #allocation13 [shape = 'u8[512]{0}', space=vmem, size = 0x400, scoped, tag = 'output window, operand 0, single buffered']
    %15 = vsyncpa [#allocation5], 0
    %16 = vsyncpa [#allocation8], 0
    %17 = vsyncpa [#allocation11], 0
    %18 = vsyncpa [#allocation6], 0
    // Predicated region
    $region2: #{tpu_custom_call.1} parent=1 // pred_check
      _
    $region3: #{tpu_custom_call.1} parent=1 // pred_check_branch
      %20 = sbr.rel (0) target = $region5
    $region4: #{tpu_custom_call.1} parent=1 // pred_region
      %s22 = ssub.s32 384000, 384000
      %23 = vsyncadd [#allocation5], %s22
      %s24 = sshll.u32 [#allocation4], 4
      %s25 = int_to_ptr.vmem [resolvable:$true] %s24
      %30 = dma.hbm_to_vmem [thread:$0]  %s1, 384000, %s25, [#allocation5], 128, 128, 8
    $region5: #{tpu_custom_call.1} parent=1 // pred_fallthru
      _
    // Predicated region
    $region6: #{tpu_custom_call.1} parent=1 // pred_check
      _
    $region7: #{tpu_custom_call.1} parent=1 // pred_check_branch
      %32 = sbr.rel (0) target = $region9
    $region8: #{tpu_custom_call.1} parent=1 // pred_region
      %s34 = ssub.s32 25600, 25600
      %35 = vsyncadd [#allocation8], %s34
      %s36 = sshll.u32 [#allocation7], 4
      %s37 = int_to_ptr.vmem [resolvable:$true] %s36
      %42 = dma.hbm_to_vmem [thread:$0]  %s2, 25600, %s37, [#allocation8], 128, 128, 8
    $region9: #{tpu_custom_call.1} parent=1 // pred_fallthru
      _
    // Predicated region
    $region10: #{tpu_custom_call.1} parent=1 // pred_check
      _
    $region11: #{tpu_custom_call.1} parent=1 // pred_check_branch
      %44 = sbr.rel (0) target = $region13
    $region12: #{tpu_custom_call.1} parent=1 // pred_region
      %s46 = ssub.s32 896, 896
      %47 = vsyncadd [#allocation8], %s46
      %s48 = sshll.u32 [#allocation9], 4
      %s49 = int_to_ptr.vmem [resolvable:$true] %s48
      %54 = dma.hbm_to_vmem [thread:$0]  %s3, 896, %s49, [#allocation8], 128, 128, 8
    $region13: #{tpu_custom_call.1} parent=1 // pred_fallthru
      _
    // Predicated region
    $region14: #{tpu_custom_call.1} parent=1 // pred_check
      _
    $region15: #{tpu_custom_call.1} parent=1 // pred_check_branch
      %56 = sbr.rel (0) target = $region17
    $region16: #{tpu_custom_call.1} parent=1 // pred_region
      %s58 = ssub.s32 128, 128
      %59 = vsyncadd [#allocation11], %s58
      %s61 = sshll.u32 [#allocation10], 4
      %s62 = int_to_ptr.vmem [resolvable:$true] %s61
      %64 = dma.hbm_to_vmem [thread:$0]  %s4, 128, %s62, [#allocation11]
    $region17: #{tpu_custom_call.1} parent=1 // pred_fallthru
      _
    // Predicated region
    $region18: #{tpu_custom_call.1} parent=1 // pred_check
      _
    $region19: #{tpu_custom_call.1} parent=1 // pred_check_branch
      %66 = sbr.rel (0) target = $region21
    $region20: #{tpu_custom_call.1} parent=1 // pred_region
      %s68 = ssub.s32 128, 128
      %69 = vsyncadd [#allocation11], %s68
      %s71 = sshll.u32 [#allocation12], 4
      %s72 = int_to_ptr.vmem [resolvable:$true] %s71
      %74 = dma.hbm_to_vmem [thread:$0]  %s5, 128, %s72, [#allocation11]
    $region21: #{tpu_custom_call.1} parent=1 // pred_fallthru
      _
    // Predicated region
    $region22: #{tpu_custom_call.1} parent=1 // pred_check
      _
    $region23: #{tpu_custom_call.1} parent=1 // pred_check_branch
      %76 = sbr.rel (0) target = $region25
    $region24: #{tpu_custom_call.1} parent=1 // pred_region
      %77 = dma.done [#allocation5], 384000
    $region25: #{tpu_custom_call.1} parent=1 // pred_fallthru
      _
    // Predicated region
    $region26: #{tpu_custom_call.1} parent=1 // pred_check
      _
    $region27: #{tpu_custom_call.1} parent=1 // pred_check_branch
      %79 = sbr.rel (0) target = $region29
    $region28: #{tpu_custom_call.1} parent=1 // pred_region
      %80 = dma.done [#allocation8], 25600
    $region29: #{tpu_custom_call.1} parent=1 // pred_fallthru
      _
    // Predicated region
    $region30: #{tpu_custom_call.1} parent=1 // pred_check
      _
    $region31: #{tpu_custom_call.1} parent=1 // pred_check_branch
      %82 = sbr.rel (0) target = $region33
    $region32: #{tpu_custom_call.1} parent=1 // pred_region
      %83 = dma.done [#allocation8], 896
    $region33: #{tpu_custom_call.1} parent=1 // pred_fallthru
      _
    // Predicated region
    $region34: #{tpu_custom_call.1} parent=1 // pred_check
      _
    $region35: #{tpu_custom_call.1} parent=1 // pred_check_branch
      %85 = sbr.rel (0) target = $region37
    $region36: #{tpu_custom_call.1} parent=1 // pred_region
      %86 = dma.done [#allocation11], 128
    $region37: #{tpu_custom_call.1} parent=1 // pred_fallthru
      _
    // Predicated region
    $region38: #{tpu_custom_call.1} parent=1 // pred_check
      _
    $region39: #{tpu_custom_call.1} parent=1 // pred_check_branch
      %88 = sbr.rel (0) target = $region41
    $region40: #{tpu_custom_call.1} parent=1 // pred_region
      %89 = dma.done [#allocation11], 128
    $region41: #{tpu_custom_call.1} parent=1 // pred_fallthru
      _
    %v90 = vld [vmem:[#allocation9] sm:$0xff]
    %s91 = scalar_lea.vmem [#allocation9], 8
    %v92 = vld [vmem:[%s91] sm:$0xff]
    %s93 = scalar_lea.vmem [#allocation9], 16
    %v94 = vld [vmem:[%s93] sm:$0xff]
    %s95 = scalar_lea.vmem [#allocation9], 24
    %v96 = vld [vmem:[%s95] sm:$0xff]
    %s97 = scalar_lea.vmem [#allocation9], 32
    %v98 = vld [vmem:[%s97] sm:$0xff]
    %s99 = scalar_lea.vmem [#allocation9], 40
    %v100 = vld [vmem:[%s99] sm:$0xff]
    %s101 = scalar_lea.vmem [#allocation9], 48
    %v102 = vld [vmem:[%s101] sm:$0xff]
    %v103 = vld [vmem:[#allocation10] sm:$0xff]
    %v104 = vld [vmem:[#allocation12] sm:$0xff]
    %v105 = vlaneseq
    %v106 = vand.u32 %v105, 127
    loop: start=0, step=1, limit=8
    $region42: #{tpu_custom_call.1} parent=1 // loop_pre_header
      _
    $region43: #{tpu_custom_call.1} parent=1 // loop_header
      %s108 = sphi 0, %s112
      %p109 = scmp.ge.s32.totalorder %s108, 8
      %v113 = vphi 0.0, %v599
    $region44: #{tpu_custom_call.1} parent=1 // loop_header_branch
      %111 = sbr.rel (%p109) target = $region48
    $region45: #{tpu_custom_call.1} parent=1 // loop_body
      %s114 = smul.u32 0, 8
      %s115 = sadd.s32 %s114, %s108
      %s116 = smul.u32 %s115, 63
      %s117 = sld [smem:[#allocation3 + %s116]]
      %s118 = smul.u32 %s117, 8
      %s119 = scalar_lea.vmem [#allocation4], %s118
      %v120 = vld [vmem:[%s119] sm:$0xff]
      %v121 = vmul.f32 %v120, %v90
      %s122 = sadd.s32 %s116, 1
      %s123 = sld [smem:[#allocation3 + %s122]]
      %s124 = smul.u32 %s123, 8
      %s125 = scalar_lea.vmem [#allocation4], %s124
      %v126 = vld [vmem:[%s125] sm:$0xff]
      %v127 = vmul.f32 %v126, %v92
      %v128 = vadd.f32 %v121, %v127
      %s129 = sadd.s32 %s116, 2
      %s130 = sld [smem:[#allocation3 + %s129]]
      %s131 = smul.u32 %s130, 8
      %s132 = scalar_lea.vmem [#allocation4], %s131
      %v133 = vld [vmem:[%s132] sm:$0xff]
      %v134 = vmul.f32 %v133, %v94
      %v135 = vadd.f32 %v128, %v134
      %s136 = sadd.s32 %s116, 3
      %s137 = sld [smem:[#allocation3 + %s136]]
      %s138 = smul.u32 %s137, 8
      %s139 = scalar_lea.vmem [#allocation4], %s138
      %v140 = vld [vmem:[%s139] sm:$0xff]
      %v141 = vmul.f32 %v140, %v96
      %v142 = vadd.f32 %v135, %v141
      %s143 = sadd.s32 %s116, 4
      %s144 = sld [smem:[#allocation3 + %s143]]
      %s145 = smul.u32 %s144, 8
      %s146 = scalar_lea.vmem [#allocation4], %s145
      %v147 = vld [vmem:[%s146] sm:$0xff]
      %v148 = vmul.f32 %v147, %v98
      %v149 = vadd.f32 %v142, %v148
      %s150 = sadd.s32 %s116, 5
      %s151 = sld [smem:[#allocation3 + %s150]]
      %s152 = smul.u32 %s151, 8
      %s153 = scalar_lea.vmem [#allocation4], %s152
      %v154 = vld [vmem:[%s153] sm:$0xff]
      %v155 = vmul.f32 %v154, %v100
      %v156 = vadd.f32 %v149, %v155
      %s157 = sadd.s32 %s116, 6
      %s158 = sld [smem:[#allocation3 + %s157]]
      %s159 = smul.u32 %s158, 8
      %s160 = scalar_lea.vmem [#allocation7], %s159
      %v161 = vld [vmem:[%s160] sm:$0xff]
      %v162 = vmul.f32 %v161, %v102
      %v163 = vadd.f32 %v156, %v162
      %vm164 = vcmp.gt.f32.partialorder %v163, %v103
      %v165 = vsel %vm164, 1, 0
      %v166 = vcvt.s32.f32 %v165
      %v167 = vadd.f32 %v166, 0.0
      %s168 = sadd.s32 %s116, 7
      %s169 = sld [smem:[#allocation3 + %s168]]
      %s170 = smul.u32 %s169, 8
      %s171 = scalar_lea.vmem [#allocation4], %s170
      %v172 = vld [vmem:[%s171] sm:$0xff]
      %v173 = vmul.f32 %v172, %v90
      %s174 = sadd.s32 %s116, 8
      %s175 = sld [smem:[#allocation3 + %s174]]
      %s176 = smul.u32 %s175, 8
      %s177 = scalar_lea.vmem [#allocation4], %s176
      %v178 = vld [vmem:[%s177] sm:$0xff]
      %v179 = vmul.f32 %v178, %v92
      %v180 = vadd.f32 %v173, %v179
      %s181 = sadd.s32 %s116, 9
      %s182 = sld [smem:[#allocation3 + %s181]]
      %s183 = smul.u32 %s182, 8
      %s184 = scalar_lea.vmem [#allocation4], %s183
      %v185 = vld [vmem:[%s184] sm:$0xff]
      %v186 = vmul.f32 %v185, %v94
      %v187 = vadd.f32 %v180, %v186
      %s188 = sadd.s32 %s116, 10
      %s189 = sld [smem:[#allocation3 + %s188]]
      %s190 = smul.u32 %s189, 8
      %s191 = scalar_lea.vmem [#allocation4], %s190
      %v192 = vld [vmem:[%s191] sm:$0xff]
      %v193 = vmul.f32 %v192, %v96
      %v194 = vadd.f32 %v187, %v193
      %s195 = sadd.s32 %s116, 11
      %s196 = sld [smem:[#allocation3 + %s195]]
      %s197 = smul.u32 %s196, 8
      %s198 = scalar_lea.vmem [#allocation4], %s197
      %v199 = vld [vmem:[%s198] sm:$0xff]
      %v200 = vmul.f32 %v199, %v98
      %v201 = vadd.f32 %v194, %v200
      %s202 = sadd.s32 %s116, 12
      %s203 = sld [smem:[#allocation3 + %s202]]
      %s204 = smul.u32 %s203, 8
      %s205 = scalar_lea.vmem [#allocation4], %s204
      %v206 = vld [vmem:[%s205] sm:$0xff]
      %v207 = vmul.f32 %v206, %v100
      %v208 = vadd.f32 %v201, %v207
      %s209 = sadd.s32 %s116, 13
      %s210 = sld [smem:[#allocation3 + %s209]]
      %s211 = smul.u32 %s210, 8
      %s212 = scalar_lea.vmem [#allocation7], %s211
      %v213 = vld [vmem:[%s212] sm:$0xff]
      %v214 = vmul.f32 %v213, %v102
      %v215 = vadd.f32 %v208, %v214
      %vm216 = vcmp.gt.f32.partialorder %v215, %v103
      %v217 = vsel %vm216, 1, 0
      %v218 = vcvt.s32.f32 %v217
      %v219 = vadd.f32 %v167, %v218
      %s220 = sadd.s32 %s116, 14
      %s221 = sld [smem:[#allocation3 + %s220]]
      %s222 = smul.u32 %s221, 8
      %s223 = scalar_lea.vmem [#allocation4], %s222
      %v224 = vld [vmem:[%s223] sm:$0xff]
      %v225 = vmul.f32 %v224, %v90
      %s226 = sadd.s32 %s116, 15
      %s227 = sld [smem:[#allocation3 + %s226]]
      %s228 = smul.u32 %s227, 8
      %s229 = scalar_lea.vmem [#allocation4], %s228
      %v230 = vld [vmem:[%s229] sm:$0xff]
      %v231 = vmul.f32 %v230, %v92
      %v232 = vadd.f32 %v225, %v231
      %s233 = sadd.s32 %s116, 16
      %s234 = sld [smem:[#allocation3 + %s233]]
      %s235 = smul.u32 %s234, 8
      %s236 = scalar_lea.vmem [#allocation4], %s235
      %v237 = vld [vmem:[%s236] sm:$0xff]
      %v238 = vmul.f32 %v237, %v94
      %v239 = vadd.f32 %v232, %v238
      %s240 = sadd.s32 %s116, 17
      %s241 = sld [smem:[#allocation3 + %s240]]
      %s242 = smul.u32 %s241, 8
      %s243 = scalar_lea.vmem [#allocation4], %s242
      %v244 = vld [vmem:[%s243] sm:$0xff]
      %v245 = vmul.f32 %v244, %v96
      %v246 = vadd.f32 %v239, %v245
      %s247 = sadd.s32 %s116, 18
      %s248 = sld [smem:[#allocation3 + %s247]]
      %s249 = smul.u32 %s248, 8
      %s250 = scalar_lea.vmem [#allocation4], %s249
      %v251 = vld [vmem:[%s250] sm:$0xff]
      %v252 = vmul.f32 %v251, %v98
      %v253 = vadd.f32 %v246, %v252
      %s254 = sadd.s32 %s116, 19
      %s255 = sld [smem:[#allocation3 + %s254]]
      %s256 = smul.u32 %s255, 8
      %s257 = scalar_lea.vmem [#allocation4], %s256
      %v258 = vld [vmem:[%s257] sm:$0xff]
      %v259 = vmul.f32 %v258, %v100
      %v260 = vadd.f32 %v253, %v259
      %s261 = sadd.s32 %s116, 20
      %s262 = sld [smem:[#allocation3 + %s261]]
      %s263 = smul.u32 %s262, 8
      %s264 = scalar_lea.vmem [#allocation7], %s263
      %v265 = vld [vmem:[%s264] sm:$0xff]
      %v266 = vmul.f32 %v265, %v102
      %v267 = vadd.f32 %v260, %v266
      %vm268 = vcmp.gt.f32.partialorder %v267, %v103
      %v269 = vsel %vm268, 1, 0
      %v270 = vcvt.s32.f32 %v269
      %v271 = vadd.f32 %v219, %v270
      %s272 = sadd.s32 %s116, 21
      %s273 = sld [smem:[#allocation3 + %s272]]
      %s274 = smul.u32 %s273, 8
      %s275 = scalar_lea.vmem [#allocation4], %s274
      %v276 = vld [vmem:[%s275] sm:$0xff]
      %v277 = vmul.f32 %v276, %v90
      %s278 = sadd.s32 %s116, 22
      %s279 = sld [smem:[#allocation3 + %s278]]
      %s280 = smul.u32 %s279, 8
      %s281 = scalar_lea.vmem [#allocation4], %s280
      %v282 = vld [vmem:[%s281] sm:$0xff]
      %v283 = vmul.f32 %v282, %v92
      %v284 = vadd.f32 %v277, %v283
      %s285 = sadd.s32 %s116, 23
      %s286 = sld [smem:[#allocation3 + %s285]]
      %s287 = smul.u32 %s286, 8
      %s288 = scalar_lea.vmem [#allocation4], %s287
      %v289 = vld [vmem:[%s288] sm:$0xff]
      %v290 = vmul.f32 %v289, %v94
      %v291 = vadd.f32 %v284, %v290
      %s292 = sadd.s32 %s116, 24
      %s293 = sld [smem:[#allocation3 + %s292]]
      %s294 = smul.u32 %s293, 8
      %s295 = scalar_lea.vmem [#allocation4], %s294
      %v296 = vld [vmem:[%s295] sm:$0xff]
      %v297 = vmul.f32 %v296, %v96
      %v298 = vadd.f32 %v291, %v297
      %s299 = sadd.s32 %s116, 25
      %s300 = sld [smem:[#allocation3 + %s299]]
      %s301 = smul.u32 %s300, 8
      %s302 = scalar_lea.vmem [#allocation4], %s301
      %v303 = vld [vmem:[%s302] sm:$0xff]
      %v304 = vmul.f32 %v303, %v98
      %v305 = vadd.f32 %v298, %v304
      %s306 = sadd.s32 %s116, 26
      %s307 = sld [smem:[#allocation3 + %s306]]
      %s308 = smul.u32 %s307, 8
      %s309 = scalar_lea.vmem [#allocation4], %s308
      %v310 = vld [vmem:[%s309] sm:$0xff]
      %v311 = vmul.f32 %v310, %v100
      %v312 = vadd.f32 %v305, %v311
      %s313 = sadd.s32 %s116, 27
      %s314 = sld [smem:[#allocation3 + %s313]]
      %s315 = smul.u32 %s314, 8
      %s316 = scalar_lea.vmem [#allocation7], %s315
      %v317 = vld [vmem:[%s316] sm:$0xff]
      %v318 = vmul.f32 %v317, %v102
      %v319 = vadd.f32 %v312, %v318
      %vm320 = vcmp.gt.f32.partialorder %v319, %v103
      %v321 = vsel %vm320, 1, 0
      %v322 = vcvt.s32.f32 %v321
      %v323 = vadd.f32 %v271, %v322
      %s324 = sadd.s32 %s116, 28
      %s325 = sld [smem:[#allocation3 + %s324]]
      %s326 = smul.u32 %s325, 8
      %s327 = scalar_lea.vmem [#allocation4], %s326
      %v328 = vld [vmem:[%s327] sm:$0xff]
      %v329 = vmul.f32 %v328, %v90
      %s330 = sadd.s32 %s116, 29
      %s331 = sld [smem:[#allocation3 + %s330]]
      %s332 = smul.u32 %s331, 8
      %s333 = scalar_lea.vmem [#allocation4], %s332
      %v334 = vld [vmem:[%s333] sm:$0xff]
      %v335 = vmul.f32 %v334, %v92
      %v336 = vadd.f32 %v329, %v335
      %s337 = sadd.s32 %s116, 30
      %s338 = sld [smem:[#allocation3 + %s337]]
      %s339 = smul.u32 %s338, 8
      %s340 = scalar_lea.vmem [#allocation4], %s339
      %v341 = vld [vmem:[%s340] sm:$0xff]
      %v342 = vmul.f32 %v341, %v94
      %v343 = vadd.f32 %v336, %v342
      %s344 = sadd.s32 %s116, 31
      %s345 = sld [smem:[#allocation3 + %s344]]
      %s346 = smul.u32 %s345, 8
      %s347 = scalar_lea.vmem [#allocation4], %s346
      %v348 = vld [vmem:[%s347] sm:$0xff]
      %v349 = vmul.f32 %v348, %v96
      %v350 = vadd.f32 %v343, %v349
      %s351 = sadd.s32 %s116, 32
      %s352 = sld [smem:[#allocation3 + %s351]]
      %s353 = smul.u32 %s352, 8
      %s354 = scalar_lea.vmem [#allocation4], %s353
      %v355 = vld [vmem:[%s354] sm:$0xff]
      %v356 = vmul.f32 %v355, %v98
      %v357 = vadd.f32 %v350, %v356
      %s358 = sadd.s32 %s116, 33
      %s359 = sld [smem:[#allocation3 + %s358]]
      %s360 = smul.u32 %s359, 8
      %s361 = scalar_lea.vmem [#allocation4], %s360
      %v362 = vld [vmem:[%s361] sm:$0xff]
      %v363 = vmul.f32 %v362, %v100
      %v364 = vadd.f32 %v357, %v363
      %s365 = sadd.s32 %s116, 34
      %s366 = sld [smem:[#allocation3 + %s365]]
      %s367 = smul.u32 %s366, 8
      %s368 = scalar_lea.vmem [#allocation7], %s367
      %v369 = vld [vmem:[%s368] sm:$0xff]
      %v370 = vmul.f32 %v369, %v102
      %v371 = vadd.f32 %v364, %v370
      %vm372 = vcmp.gt.f32.partialorder %v371, %v103
      %v373 = vsel %vm372, 1, 0
      %v374 = vcvt.s32.f32 %v373
      %v375 = vadd.f32 %v323, %v374
      %s376 = sadd.s32 %s116, 35
      %s377 = sld [smem:[#allocation3 + %s376]]
      %s378 = smul.u32 %s377, 8
      %s379 = scalar_lea.vmem [#allocation4], %s378
      %v380 = vld [vmem:[%s379] sm:$0xff]
      %v381 = vmul.f32 %v380, %v90
      %s382 = sadd.s32 %s116, 36
      %s383 = sld [smem:[#allocation3 + %s382]]
      %s384 = smul.u32 %s383, 8
      %s385 = scalar_lea.vmem [#allocation4], %s384
      %v386 = vld [vmem:[%s385] sm:$0xff]
      %v387 = vmul.f32 %v386, %v92
      %v388 = vadd.f32 %v381, %v387
      %s389 = sadd.s32 %s116, 37
      %s390 = sld [smem:[#allocation3 + %s389]]
      %s391 = smul.u32 %s390, 8
      %s392 = scalar_lea.vmem [#allocation4], %s391
      %v393 = vld [vmem:[%s392] sm:$0xff]
      %v394 = vmul.f32 %v393, %v94
      %v395 = vadd.f32 %v388, %v394
      %s396 = sadd.s32 %s116, 38
      %s397 = sld [smem:[#allocation3 + %s396]]
      %s398 = smul.u32 %s397, 8
      %s399 = scalar_lea.vmem [#allocation4], %s398
      %v400 = vld [vmem:[%s399] sm:$0xff]
      %v401 = vmul.f32 %v400, %v96
      %v402 = vadd.f32 %v395, %v401
      %s403 = sadd.s32 %s116, 39
      %s404 = sld [smem:[#allocation3 + %s403]]
      %s405 = smul.u32 %s404, 8
      %s406 = scalar_lea.vmem [#allocation4], %s405
      %v407 = vld [vmem:[%s406] sm:$0xff]
      %v408 = vmul.f32 %v407, %v98
      %v409 = vadd.f32 %v402, %v408
      %s410 = sadd.s32 %s116, 40
      %s411 = sld [smem:[#allocation3 + %s410]]
      %s412 = smul.u32 %s411, 8
      %s413 = scalar_lea.vmem [#allocation4], %s412
      %v414 = vld [vmem:[%s413] sm:$0xff]
      %v415 = vmul.f32 %v414, %v100
      %v416 = vadd.f32 %v409, %v415
      %s417 = sadd.s32 %s116, 41
      %s418 = sld [smem:[#allocation3 + %s417]]
      %s419 = smul.u32 %s418, 8
      %s420 = scalar_lea.vmem [#allocation7], %s419
      %v421 = vld [vmem:[%s420] sm:$0xff]
      %v422 = vmul.f32 %v421, %v102
      %v423 = vadd.f32 %v416, %v422
      %vm424 = vcmp.gt.f32.partialorder %v423, %v103
      %v425 = vsel %vm424, 1, 0
      %v426 = vcvt.s32.f32 %v425
      %v427 = vadd.f32 %v375, %v426
      %s428 = sadd.s32 %s116, 42
      %s429 = sld [smem:[#allocation3 + %s428]]
      %s430 = smul.u32 %s429, 8
      %s431 = scalar_lea.vmem [#allocation4], %s430
      %v432 = vld [vmem:[%s431] sm:$0xff]
      %v433 = vmul.f32 %v432, %v90
      %s434 = sadd.s32 %s116, 43
      %s435 = sld [smem:[#allocation3 + %s434]]
      %s436 = smul.u32 %s435, 8
      %s437 = scalar_lea.vmem [#allocation4], %s436
      %v438 = vld [vmem:[%s437] sm:$0xff]
      %v439 = vmul.f32 %v438, %v92
      %v440 = vadd.f32 %v433, %v439
      %s441 = sadd.s32 %s116, 44
      %s442 = sld [smem:[#allocation3 + %s441]]
      %s443 = smul.u32 %s442, 8
      %s444 = scalar_lea.vmem [#allocation4], %s443
      %v445 = vld [vmem:[%s444] sm:$0xff]
      %v446 = vmul.f32 %v445, %v94
      %v447 = vadd.f32 %v440, %v446
      %s448 = sadd.s32 %s116, 45
      %s449 = sld [smem:[#allocation3 + %s448]]
      %s450 = smul.u32 %s449, 8
      %s451 = scalar_lea.vmem [#allocation4], %s450
      %v452 = vld [vmem:[%s451] sm:$0xff]
      %v453 = vmul.f32 %v452, %v96
      %v454 = vadd.f32 %v447, %v453
      %s455 = sadd.s32 %s116, 46
      %s456 = sld [smem:[#allocation3 + %s455]]
      %s457 = smul.u32 %s456, 8
      %s458 = scalar_lea.vmem [#allocation4], %s457
      %v459 = vld [vmem:[%s458] sm:$0xff]
      %v460 = vmul.f32 %v459, %v98
      %v461 = vadd.f32 %v454, %v460
      %s462 = sadd.s32 %s116, 47
      %s463 = sld [smem:[#allocation3 + %s462]]
      %s464 = smul.u32 %s463, 8
      %s465 = scalar_lea.vmem [#allocation4], %s464
      %v466 = vld [vmem:[%s465] sm:$0xff]
      %v467 = vmul.f32 %v466, %v100
      %v468 = vadd.f32 %v461, %v467
      %s469 = sadd.s32 %s116, 48
      %s470 = sld [smem:[#allocation3 + %s469]]
      %s471 = smul.u32 %s470, 8
      %s472 = scalar_lea.vmem [#allocation7], %s471
      %v473 = vld [vmem:[%s472] sm:$0xff]
      %v474 = vmul.f32 %v473, %v102
      %v475 = vadd.f32 %v468, %v474
      %vm476 = vcmp.gt.f32.partialorder %v475, %v103
      %v477 = vsel %vm476, 1, 0
      %v478 = vcvt.s32.f32 %v477
      %v479 = vadd.f32 %v427, %v478
      %s480 = sadd.s32 %s116, 49
      %s481 = sld [smem:[#allocation3 + %s480]]
      %s482 = smul.u32 %s481, 8
      %s483 = scalar_lea.vmem [#allocation4], %s482
      %v484 = vld [vmem:[%s483] sm:$0xff]
      %v485 = vmul.f32 %v484, %v90
      %s486 = sadd.s32 %s116, 50
      %s487 = sld [smem:[#allocation3 + %s486]]
      %s488 = smul.u32 %s487, 8
      %s489 = scalar_lea.vmem [#allocation4], %s488
      %v490 = vld [vmem:[%s489] sm:$0xff]
      %v491 = vmul.f32 %v490, %v92
      %v492 = vadd.f32 %v485, %v491
      %s493 = sadd.s32 %s116, 51
      %s494 = sld [smem:[#allocation3 + %s493]]
      %s495 = smul.u32 %s494, 8
      %s496 = scalar_lea.vmem [#allocation4], %s495
      %v497 = vld [vmem:[%s496] sm:$0xff]
      %v498 = vmul.f32 %v497, %v94
      %v499 = vadd.f32 %v492, %v498
      %s500 = sadd.s32 %s116, 52
      %s501 = sld [smem:[#allocation3 + %s500]]
      %s502 = smul.u32 %s501, 8
      %s503 = scalar_lea.vmem [#allocation4], %s502
      %v504 = vld [vmem:[%s503] sm:$0xff]
      %v505 = vmul.f32 %v504, %v96
      %v506 = vadd.f32 %v499, %v505
      %s507 = sadd.s32 %s116, 53
      %s508 = sld [smem:[#allocation3 + %s507]]
      %s509 = smul.u32 %s508, 8
      %s510 = scalar_lea.vmem [#allocation4], %s509
      %v511 = vld [vmem:[%s510] sm:$0xff]
      %v512 = vmul.f32 %v511, %v98
      %v513 = vadd.f32 %v506, %v512
      %s514 = sadd.s32 %s116, 54
      %s515 = sld [smem:[#allocation3 + %s514]]
      %s516 = smul.u32 %s515, 8
      %s517 = scalar_lea.vmem [#allocation4], %s516
      %v518 = vld [vmem:[%s517] sm:$0xff]
      %v519 = vmul.f32 %v518, %v100
      %v520 = vadd.f32 %v513, %v519
      %s521 = sadd.s32 %s116, 55
      %s522 = sld [smem:[#allocation3 + %s521]]
      %s523 = smul.u32 %s522, 8
      %s524 = scalar_lea.vmem [#allocation7], %s523
      %v525 = vld [vmem:[%s524] sm:$0xff]
      %v526 = vmul.f32 %v525, %v102
      %v527 = vadd.f32 %v520, %v526
      %vm528 = vcmp.gt.f32.partialorder %v527, %v103
      %v529 = vsel %vm528, 1, 0
      %v530 = vcvt.s32.f32 %v529
      %v531 = vadd.f32 %v479, %v530
      %s532 = sadd.s32 %s116, 56
      %s533 = sld [smem:[#allocation3 + %s532]]
      %s534 = smul.u32 %s533, 8
      %s535 = scalar_lea.vmem [#allocation4], %s534
      %v536 = vld [vmem:[%s535] sm:$0xff]
      %v537 = vmul.f32 %v536, %v90
      %s538 = sadd.s32 %s116, 57
      %s539 = sld [smem:[#allocation3 + %s538]]
      %s540 = smul.u32 %s539, 8
      %s541 = scalar_lea.vmem [#allocation4], %s540
      %v542 = vld [vmem:[%s541] sm:$0xff]
      %v543 = vmul.f32 %v542, %v92
      %v544 = vadd.f32 %v537, %v543
      %s545 = sadd.s32 %s116, 58
      %s546 = sld [smem:[#allocation3 + %s545]]
      %s547 = smul.u32 %s546, 8
      %s548 = scalar_lea.vmem [#allocation4], %s547
      %v549 = vld [vmem:[%s548] sm:$0xff]
      %v550 = vmul.f32 %v549, %v94
      %v551 = vadd.f32 %v544, %v550
      %s552 = sadd.s32 %s116, 59
      %s553 = sld [smem:[#allocation3 + %s552]]
      %s554 = smul.u32 %s553, 8
      %s555 = scalar_lea.vmem [#allocation4], %s554
      %v556 = vld [vmem:[%s555] sm:$0xff]
      %v557 = vmul.f32 %v556, %v96
      %v558 = vadd.f32 %v551, %v557
      %s559 = sadd.s32 %s116, 60
      %s560 = sld [smem:[#allocation3 + %s559]]
      %s561 = smul.u32 %s560, 8
      %s562 = scalar_lea.vmem [#allocation4], %s561
      %v563 = vld [vmem:[%s562] sm:$0xff]
      %v564 = vmul.f32 %v563, %v98
      %v565 = vadd.f32 %v558, %v564
      %s566 = sadd.s32 %s116, 61
      %s567 = sld [smem:[#allocation3 + %s566]]
      %s568 = smul.u32 %s567, 8
      %s569 = scalar_lea.vmem [#allocation4], %s568
      %v570 = vld [vmem:[%s569] sm:$0xff]
      %v571 = vmul.f32 %v570, %v100
      %v572 = vadd.f32 %v565, %v571
      %s573 = sadd.s32 %s116, 62
      %s574 = sld [smem:[#allocation3 + %s573]]
      %s575 = smul.u32 %s574, 8
      %s576 = scalar_lea.vmem [#allocation7], %s575
      %v577 = vld [vmem:[%s576] sm:$0xff]
      %v578 = vmul.f32 %v577, %v102
      %v579 = vadd.f32 %v572, %v578
      %vm580 = vcmp.gt.f32.partialorder %v579, %v103
      %v581 = vsel %vm580, 1, 0
      %v582 = vcvt.s32.f32 %v581
      %v583 = vadd.f32 %v531, %v582
      %v584 = vadd.f32 %v583, %v583
      %vm585 = vcmp.gt.f32.partialorder %v584, 9.0
      %v586 = vsel %vm585, 1, 0
      %v587 = vcvt.s32.f32 %v586
      %v588 = vmul.f32 %v587, %v104
      %589 = vadd.xlane.f32.xlu0 %v588
      %v590 = vpop.xlane.xlu0 %589
      %v591 = vrot.slane %v590, 4
      %v592 = vadd.f32 %v590, %v591
      %v593 = vrot.slane %v592, 2
      %v594 = vadd.f32 %v592, %v593
      %v595 = vrot.slane %v594, 1
      %v596 = vadd.f32 %v594, %v595
      %v597 = vstv %s108
      %vm598 = vcmp.eq.s32.totalorder %v106, %v597
      %v599 = vsel %vm598, %v596, %v113
    $region46: #{tpu_custom_call.1} parent=1 // loop_footer
      %s112 = sadd.s32 1, %s108
    $region47: #{tpu_custom_call.1} parent=1 // loop_footer_branch
      %107 = sbr.rel target = $region43
    $region48: #{tpu_custom_call.1} parent=1 // loop_exit
      _
    %vm600 = vcmask 57344
    %601 = vst.msk [vmem:[#allocation13] sm:$0x1] %vm600, %v113
    // Predicated region
    $region49: #{tpu_custom_call.1} parent=1 // pred_check
      _
    $region50: #{tpu_custom_call.1} parent=1 // pred_check_branch
      %603 = sbr.rel (0) target = $region52
    $region51: #{tpu_custom_call.1} parent=1 // pred_region
      %s605 = ssub.s32 16, 16
      %606 = vsyncadd [#allocation6], %s605
      %s608 = sshll.u32 [#allocation13], 4
      %s609 = int_to_ptr.vmem [resolvable:$true] %s608
      %611 = dma.vmem_to_hbm [thread:$0]  %s609, 16, %s6, [#allocation6]
    $region52: #{tpu_custom_call.1} parent=1 // pred_fallthru
      _
    // Predicated region
    $region53: #{tpu_custom_call.1} parent=1 // pred_check
      _
    $region54: #{tpu_custom_call.1} parent=1 // pred_check_branch
      %613 = sbr.rel (0) target = $region56
    $region55: #{tpu_custom_call.1} parent=1 // pred_region
      %614 = dma.done [#allocation6], 16
    $region56: #{tpu_custom_call.1} parent=1 // pred_fallthru
      _
    %615 = vsyncpa [#allocation5], 1
    %616 = vsyncpa [#allocation8], 1
    %617 = vsyncpa [#allocation11], 1
    %618 = vsyncpa [#allocation6], 1

// kernel: tpu_custom_call.1
$region0: #{tpu_custom_call.1}
  #allocation0 [shape = 'u32[]', space=smem, size = 0x4, offset = 0x4, fixed_abs, tag = 'smem constant byte address 0x4 - core index']
  #allocation1 [shape = 'u32[144,128]{1,0:T(1,128)}', space=vmem, size = 0x12000, scoped, tag = 'internal scratch']
  #allocation2 [shape = 's32[1]{0}', space=sflag, size = 0x4, scoped, tag = 'scoped memory for tpu_custom_call.1']
  #allocation3 [shape = 'u8[2048]{0}', space=smem, size = 0x800, scoped, tag = 'prefetched SMEM operand 0']
  %s0 = inlined_call_operand.hbm [shape: s32[504], index: 0, kind: input, shape index: {}]
  %s1 = inlined_call_operand.hbm [shape: f32[3000,8,128], index: 1, kind: input, shape index: {}]
  %s2 = inlined_call_operand.hbm [shape: f32[200,8,128], index: 2, kind: input, shape index: {}]
  %s3 = inlined_call_operand.hbm [shape: f32[7,8,128], index: 3, kind: input, shape index: {}]
  %s4 = inlined_call_operand.hbm [shape: f32[8,128], index: 4, kind: input, shape index: {}]
  %s5 = inlined_call_operand.hbm [shape: f32[8,128], index: 5, kind: input, shape index: {}]
  %s6 = inlined_call_operand.hbm [shape: f32[1,8], index: 6, kind: output, shape index: {}]
  %s7 = sld [smem:[#allocation0]]
  $region57: #{tpu_custom_call.1} parent=0
    _
  %s9 = ssub.s32 1, %s7
  %s10 = scalar_select 0, %s9, %s7
  %12 = dma.hbm_to_smem %s0, 64, [#allocation3], [#allocation2]
  %13 = dma.done [#allocation2], 64
  %14 = sfence
  $region1: #{tpu_custom_call.1} parent=0
    #allocation4 [shape = 'u8[12288000]{0}', space=vmem, size = 0xbb8000, scoped, tag = 'input window, operand 1, single buffered']
    #allocation5 [shape = 's32[1]{0}', space=sflag, size = 0x4, scoped, tag = 'scoped memory for tpu_custom_call.1']
    #allocation6 [shape = 's32[1]{0}', space=sflag, size = 0x4, scoped, tag = 'scoped memory for tpu_custom_call.1']
    #allocation7 [shape = 'u8[819200]{0}', space=vmem, size = 0xc8000, scoped, tag = 'input window, operand 2, single buffered']
    #allocation8 [shape = 's32[1]{0}', space=sflag, size = 0x4, scoped, tag = 'scoped memory for tpu_custom_call.1']
    #allocation9 [shape = 'u8[28672]{0}', space=vmem, size = 0x7000, scoped, tag = 'input window, operand 3, single buffered']
    #allocation10 [shape = 'u8[4096]{0}', space=vmem, size = 0x1000, scoped, tag = 'input window, operand 4, single buffered']
    #allocation11 [shape = 's32[1]{0}', space=sflag, size = 0x4, scoped, tag = 'scoped memory for tpu_custom_call.1']
    #allocation12 [shape = 'u8[4096]{0}', space=vmem, size = 0x1000, scoped, tag = 'input window, operand 5, single buffered']
    #allocation13 [shape = 'u8[512]{0}', space=vmem, size = 0x400, scoped, tag = 'output window, operand 0, single buffered']
    %15 = vsyncpa [#allocation5], 0
    %16 = vsyncpa [#allocation8], 0
    %17 = vsyncpa [#allocation11], 0
    %18 = vsyncpa [#allocation6], 0
    // Predicated region
    $region2: #{tpu_custom_call.1} parent=1 // pred_check
      _
    $region3: #{tpu_custom_call.1} parent=1 // pred_check_branch
      %20 = sbr.rel (0) target = $region5
    $region4: #{tpu_custom_call.1} parent=1 // pred_region
      %s22 = ssub.s32 384000, 384000
      %23 = vsyncadd [#allocation5], %s22
      %s24 = sshll.u32 [#allocation4], 4
      %s25 = int_to_ptr.vmem [resolvable:$true] %s24
      %30 = dma.hbm_to_vmem [thread:$0]  %s1, 384000, %s25, [#allocation5], 128, 128, 8
    $region5: #{tpu_custom_call.1} parent=1 // pred_fallthru
      _
    // Predicated region
    $region6: #{tpu_custom_call.1} parent=1 // pred_check
      _
    $region7: #{tpu_custom_call.1} parent=1 // pred_check_branch
      %32 = sbr.rel (0) target = $region9
    $region8: #{tpu_custom_call.1} parent=1 // pred_region
      %s34 = ssub.s32 25600, 25600
      %35 = vsyncadd [#allocation8], %s34
      %s36 = sshll.u32 [#allocation7], 4
      %s37 = int_to_ptr.vmem [resolvable:$true] %s36
      %42 = dma.hbm_to_vmem [thread:$0]  %s2, 25600, %s37, [#allocation8], 128, 128, 8
    $region9: #{tpu_custom_call.1} parent=1 // pred_fallthru
      _
    // Predicated region
    $region10: #{tpu_custom_call.1} parent=1 // pred_check
      _
    $region11: #{tpu_custom_call.1} parent=1 // pred_check_branch
      %44 = sbr.rel (0) target = $region13
    $region12: #{tpu_custom_call.1} parent=1 // pred_region
      %s46 = ssub.s32 896, 896
      %47 = vsyncadd [#allocation8], %s46
      %s48 = sshll.u32 [#allocation9], 4
      %s49 = int_to_ptr.vmem [resolvable:$true] %s48
      %54 = dma.hbm_to_vmem [thread:$0]  %s3, 896, %s49, [#allocation8], 128, 128, 8
    $region13: #{tpu_custom_call.1} parent=1 // pred_fallthru
      _
    // Predicated region
    $region14: #{tpu_custom_call.1} parent=1 // pred_check
      _
    $region15: #{tpu_custom_call.1} parent=1 // pred_check_branch
      %56 = sbr.rel (0) target = $region17
    $region16: #{tpu_custom_call.1} parent=1 // pred_region
      %s58 = ssub.s32 128, 128
      %59 = vsyncadd [#allocation11], %s58
      %s61 = sshll.u32 [#allocation10], 4
      %s62 = int_to_ptr.vmem [resolvable:$true] %s61
      %64 = dma.hbm_to_vmem [thread:$0]  %s4, 128, %s62, [#allocation11]
    $region17: #{tpu_custom_call.1} parent=1 // pred_fallthru
      _
    // Predicated region
    $region18: #{tpu_custom_call.1} parent=1 // pred_check
      _
    $region19: #{tpu_custom_call.1} parent=1 // pred_check_branch
      %66 = sbr.rel (0) target = $region21
    $region20: #{tpu_custom_call.1} parent=1 // pred_region
      %s68 = ssub.s32 128, 128
      %69 = vsyncadd [#allocation11], %s68
      %s71 = sshll.u32 [#allocation12], 4
      %s72 = int_to_ptr.vmem [resolvable:$true] %s71
      %74 = dma.hbm_to_vmem [thread:$0]  %s5, 128, %s72, [#allocation11]
    $region21: #{tpu_custom_call.1} parent=1 // pred_fallthru
      _
    // Predicated region
    $region22: #{tpu_custom_call.1} parent=1 // pred_check
      _
    $region23: #{tpu_custom_call.1} parent=1 // pred_check_branch
      %76 = sbr.rel (0) target = $region25
    $region24: #{tpu_custom_call.1} parent=1 // pred_region
      %77 = dma.done [#allocation5], 384000
    $region25: #{tpu_custom_call.1} parent=1 // pred_fallthru
      _
    // Predicated region
    $region26: #{tpu_custom_call.1} parent=1 // pred_check
      _
    $region27: #{tpu_custom_call.1} parent=1 // pred_check_branch
      %79 = sbr.rel (0) target = $region29
    $region28: #{tpu_custom_call.1} parent=1 // pred_region
      %80 = dma.done [#allocation8], 25600
    $region29: #{tpu_custom_call.1} parent=1 // pred_fallthru
      _
    // Predicated region
    $region30: #{tpu_custom_call.1} parent=1 // pred_check
      _
    $region31: #{tpu_custom_call.1} parent=1 // pred_check_branch
      %82 = sbr.rel (0) target = $region33
    $region32: #{tpu_custom_call.1} parent=1 // pred_region
      %83 = dma.done [#allocation8], 896
    $region33: #{tpu_custom_call.1} parent=1 // pred_fallthru
      _
    // Predicated region
    $region34: #{tpu_custom_call.1} parent=1 // pred_check
      _
    $region35: #{tpu_custom_call.1} parent=1 // pred_check_branch
      %85 = sbr.rel (0) target = $region37
    $region36: #{tpu_custom_call.1} parent=1 // pred_region
      %86 = dma.done [#allocation11], 128
    $region37: #{tpu_custom_call.1} parent=1 // pred_fallthru
      _
    // Predicated region
    $region38: #{tpu_custom_call.1} parent=1 // pred_check
      _
    $region39: #{tpu_custom_call.1} parent=1 // pred_check_branch
      %88 = sbr.rel (0) target = $region41
    $region40: #{tpu_custom_call.1} parent=1 // pred_region
      %89 = dma.done [#allocation11], 128
    $region41: #{tpu_custom_call.1} parent=1 // pred_fallthru
      _
    %v90 = vld [vmem:[#allocation9] sm:$0xff]
    %s91 = scalar_lea.vmem [#allocation9], 8
    %v92 = vld [vmem:[%s91] sm:$0xff]
    %s93 = scalar_lea.vmem [#allocation9], 16
    %v94 = vld [vmem:[%s93] sm:$0xff]
    %s95 = scalar_lea.vmem [#allocation9], 24
    %v96 = vld [vmem:[%s95] sm:$0xff]
    %s97 = scalar_lea.vmem [#allocation9], 32
    %v98 = vld [vmem:[%s97] sm:$0xff]
    %s99 = scalar_lea.vmem [#allocation9], 40
    %v100 = vld [vmem:[%s99] sm:$0xff]
    %s101 = scalar_lea.vmem [#allocation9], 48
    %v102 = vld [vmem:[%s101] sm:$0xff]
    %v103 = vld [vmem:[#allocation10] sm:$0xff]
    %v104 = vld [vmem:[#allocation12] sm:$0xff]
    %v105 = vlaneseq
    %v106 = vand.u32 %v105, 127
    loop: start=0, step=1, limit=8
    $region42: #{tpu_custom_call.1} parent=1 // loop_pre_header
      _
    $region43: #{tpu_custom_call.1} parent=1 // loop_header
      %s108 = sphi 0, %s112
      %p109 = scmp.ge.s32.totalorder %s108, 8
      %v113 = vphi 0.0, %v599
    $region44: #{tpu_custom_call.1} parent=1 // loop_header_branch
      %111 = sbr.rel (%p109) target = $region48
    $region45: #{tpu_custom_call.1} parent=1 // loop_body
      %s114 = smul.u32 0, 8
      %s115 = sadd.s32 %s114, %s108
      %s116 = smul.u32 %s115, 63
      %s117 = sld [smem:[#allocation3 + %s116]]
      %s118 = smul.u32 %s117, 8
      %s119 = scalar_lea.vmem [#allocation4], %s118
      %v120 = vld [vmem:[%s119] sm:$0xff]
      %v121 = vmul.f32 %v120, %v90
      %s122 = sadd.s32 %s116, 1
      %s123 = sld [smem:[#allocation3 + %s122]]
      %s124 = smul.u32 %s123, 8
      %s125 = scalar_lea.vmem [#allocation4], %s124
      %v126 = vld [vmem:[%s125] sm:$0xff]
      %v127 = vmul.f32 %v126, %v92
      %v128 = vadd.f32 %v121, %v127
      %s129 = sadd.s32 %s116, 2
      %s130 = sld [smem:[#allocation3 + %s129]]
      %s131 = smul.u32 %s130, 8
      %s132 = scalar_lea.vmem [#allocation4], %s131
      %v133 = vld [vmem:[%s132] sm:$0xff]
      %v134 = vmul.f32 %v133, %v94
      %v135 = vadd.f32 %v128, %v134
      %s136 = sadd.s32 %s116, 3
      %s137 = sld [smem:[#allocation3 + %s136]]
      %s138 = smul.u32 %s137, 8
      %s139 = scalar_lea.vmem [#allocation4], %s138
      %v140 = vld [vmem:[%s139] sm:$0xff]
      %v141 = vmul.f32 %v140, %v96
      %v142 = vadd.f32 %v135, %v141
      %s143 = sadd.s32 %s116, 4
      %s144 = sld [smem:[#allocation3 + %s143]]
      %s145 = smul.u32 %s144, 8
      %s146 = scalar_lea.vmem [#allocation4], %s145
      %v147 = vld [vmem:[%s146] sm:$0xff]
      %v148 = vmul.f32 %v147, %v98
      %v149 = vadd.f32 %v142, %v148
      %s150 = sadd.s32 %s116, 5
      %s151 = sld [smem:[#allocation3 + %s150]]
      %s152 = smul.u32 %s151, 8
      %s153 = scalar_lea.vmem [#allocation4], %s152
      %v154 = vld [vmem:[%s153] sm:$0xff]
      %v155 = vmul.f32 %v154, %v100
      %v156 = vadd.f32 %v149, %v155
      %s157 = sadd.s32 %s116, 6
      %s158 = sld [smem:[#allocation3 + %s157]]
      %s159 = smul.u32 %s158, 8
      %s160 = scalar_lea.vmem [#allocation7], %s159
      %v161 = vld [vmem:[%s160] sm:$0xff]
      %v162 = vmul.f32 %v161, %v102
      %v163 = vadd.f32 %v156, %v162
      %vm164 = vcmp.gt.f32.partialorder %v163, %v103
      %v165 = vsel %vm164, 1, 0
      %v166 = vcvt.s32.f32 %v165
      %v167 = vadd.f32 %v166, 0.0
      %s168 = sadd.s32 %s116, 7
      %s169 = sld [smem:[#allocation3 + %s168]]
      %s170 = smul.u32 %s169, 8
      %s171 = scalar_lea.vmem [#allocation4], %s170
      %v172 = vld [vmem:[%s171] sm:$0xff]
      %v173 = vmul.f32 %v172, %v90
      %s174 = sadd.s32 %s116, 8
      %s175 = sld [smem:[#allocation3 + %s174]]
      %s176 = smul.u32 %s175, 8
      %s177 = scalar_lea.vmem [#allocation4], %s176
      %v178 = vld [vmem:[%s177] sm:$0xff]
      %v179 = vmul.f32 %v178, %v92
      %v180 = vadd.f32 %v173, %v179
      %s181 = sadd.s32 %s116, 9
      %s182 = sld [smem:[#allocation3 + %s181]]
      %s183 = smul.u32 %s182, 8
      %s184 = scalar_lea.vmem [#allocation4], %s183
      %v185 = vld [vmem:[%s184] sm:$0xff]
      %v186 = vmul.f32 %v185, %v94
      %v187 = vadd.f32 %v180, %v186
      %s188 = sadd.s32 %s116, 10
      %s189 = sld [smem:[#allocation3 + %s188]]
      %s190 = smul.u32 %s189, 8
      %s191 = scalar_lea.vmem [#allocation4], %s190
      %v192 = vld [vmem:[%s191] sm:$0xff]
      %v193 = vmul.f32 %v192, %v96
      %v194 = vadd.f32 %v187, %v193
      %s195 = sadd.s32 %s116, 11
      %s196 = sld [smem:[#allocation3 + %s195]]
      %s197 = smul.u32 %s196, 8
      %s198 = scalar_lea.vmem [#allocation4], %s197
      %v199 = vld [vmem:[%s198] sm:$0xff]
      %v200 = vmul.f32 %v199, %v98
      %v201 = vadd.f32 %v194, %v200
      %s202 = sadd.s32 %s116, 12
      %s203 = sld [smem:[#allocation3 + %s202]]
      %s204 = smul.u32 %s203, 8
      %s205 = scalar_lea.vmem [#allocation4], %s204
      %v206 = vld [vmem:[%s205] sm:$0xff]
      %v207 = vmul.f32 %v206, %v100
      %v208 = vadd.f32 %v201, %v207
      %s209 = sadd.s32 %s116, 13
      %s210 = sld [smem:[#allocation3 + %s209]]
      %s211 = smul.u32 %s210, 8
      %s212 = scalar_lea.vmem [#allocation7], %s211
      %v213 = vld [vmem:[%s212] sm:$0xff]
      %v214 = vmul.f32 %v213, %v102
      %v215 = vadd.f32 %v208, %v214
      %vm216 = vcmp.gt.f32.partialorder %v215, %v103
      %v217 = vsel %vm216, 1, 0
      %v218 = vcvt.s32.f32 %v217
      %v219 = vadd.f32 %v167, %v218
      %s220 = sadd.s32 %s116, 14
      %s221 = sld [smem:[#allocation3 + %s220]]
      %s222 = smul.u32 %s221, 8
      %s223 = scalar_lea.vmem [#allocation4], %s222
      %v224 = vld [vmem:[%s223] sm:$0xff]
      %v225 = vmul.f32 %v224, %v90
      %s226 = sadd.s32 %s116, 15
      %s227 = sld [smem:[#allocation3 + %s226]]
      %s228 = smul.u32 %s227, 8
      %s229 = scalar_lea.vmem [#allocation4], %s228
      %v230 = vld [vmem:[%s229] sm:$0xff]
      %v231 = vmul.f32 %v230, %v92
      %v232 = vadd.f32 %v225, %v231
      %s233 = sadd.s32 %s116, 16
      %s234 = sld [smem:[#allocation3 + %s233]]
      %s235 = smul.u32 %s234, 8
      %s236 = scalar_lea.vmem [#allocation4], %s235
      %v237 = vld [vmem:[%s236] sm:$0xff]
      %v238 = vmul.f32 %v237, %v94
      %v239 = vadd.f32 %v232, %v238
      %s240 = sadd.s32 %s116, 17
      %s241 = sld [smem:[#allocation3 + %s240]]
      %s242 = smul.u32 %s241, 8
      %s243 = scalar_lea.vmem [#allocation4], %s242
      %v244 = vld [vmem:[%s243] sm:$0xff]
      %v245 = vmul.f32 %v244, %v96
      %v246 = vadd.f32 %v239, %v245
      %s247 = sadd.s32 %s116, 18
      %s248 = sld [smem:[#allocation3 + %s247]]
      %s249 = smul.u32 %s248, 8
      %s250 = scalar_lea.vmem [#allocation4], %s249
      %v251 = vld [vmem:[%s250] sm:$0xff]
      %v252 = vmul.f32 %v251, %v98
      %v253 = vadd.f32 %v246, %v252
      %s254 = sadd.s32 %s116, 19
      %s255 = sld [smem:[#allocation3 + %s254]]
      %s256 = smul.u32 %s255, 8
      %s257 = scalar_lea.vmem [#allocation4], %s256
      %v258 = vld [vmem:[%s257] sm:$0xff]
      %v259 = vmul.f32 %v258, %v100
      %v260 = vadd.f32 %v253, %v259
      %s261 = sadd.s32 %s116, 20
      %s262 = sld [smem:[#allocation3 + %s261]]
      %s263 = smul.u32 %s262, 8
      %s264 = scalar_lea.vmem [#allocation7], %s263
      %v265 = vld [vmem:[%s264] sm:$0xff]
      %v266 = vmul.f32 %v265, %v102
      %v267 = vadd.f32 %v260, %v266
      %vm268 = vcmp.gt.f32.partialorder %v267, %v103
      %v269 = vsel %vm268, 1, 0
      %v270 = vcvt.s32.f32 %v269
      %v271 = vadd.f32 %v219, %v270
      %s272 = sadd.s32 %s116, 21
      %s273 = sld [smem:[#allocation3 + %s272]]
      %s274 = smul.u32 %s273, 8
      %s275 = scalar_lea.vmem [#allocation4], %s274
      %v276 = vld [vmem:[%s275] sm:$0xff]
      %v277 = vmul.f32 %v276, %v90
      %s278 = sadd.s32 %s116, 22
      %s279 = sld [smem:[#allocation3 + %s278]]
      %s280 = smul.u32 %s279, 8
      %s281 = scalar_lea.vmem [#allocation4], %s280
      %v282 = vld [vmem:[%s281] sm:$0xff]
      %v283 = vmul.f32 %v282, %v92
      %v284 = vadd.f32 %v277, %v283
      %s285 = sadd.s32 %s116, 23
      %s286 = sld [smem:[#allocation3 + %s285]]
      %s287 = smul.u32 %s286, 8
      %s288 = scalar_lea.vmem [#allocation4], %s287
      %v289 = vld [vmem:[%s288] sm:$0xff]
      %v290 = vmul.f32 %v289, %v94
      %v291 = vadd.f32 %v284, %v290
      %s292 = sadd.s32 %s116, 24
      %s293 = sld [smem:[#allocation3 + %s292]]
      %s294 = smul.u32 %s293, 8
      %s295 = scalar_lea.vmem [#allocation4], %s294
      %v296 = vld [vmem:[%s295] sm:$0xff]
      %v297 = vmul.f32 %v296, %v96
      %v298 = vadd.f32 %v291, %v297
      %s299 = sadd.s32 %s116, 25
      %s300 = sld [smem:[#allocation3 + %s299]]
      %s301 = smul.u32 %s300, 8
      %s302 = scalar_lea.vmem [#allocation4], %s301
      %v303 = vld [vmem:[%s302] sm:$0xff]
      %v304 = vmul.f32 %v303, %v98
      %v305 = vadd.f32 %v298, %v304
      %s306 = sadd.s32 %s116, 26
      %s307 = sld [smem:[#allocation3 + %s306]]
      %s308 = smul.u32 %s307, 8
      %s309 = scalar_lea.vmem [#allocation4], %s308
      %v310 = vld [vmem:[%s309] sm:$0xff]
      %v311 = vmul.f32 %v310, %v100
      %v312 = vadd.f32 %v305, %v311
      %s313 = sadd.s32 %s116, 27
      %s314 = sld [smem:[#allocation3 + %s313]]
      %s315 = smul.u32 %s314, 8
      %s316 = scalar_lea.vmem [#allocation7], %s315
      %v317 = vld [vmem:[%s316] sm:$0xff]
      %v318 = vmul.f32 %v317, %v102
      %v319 = vadd.f32 %v312, %v318
      %vm320 = vcmp.gt.f32.partialorder %v319, %v103
      %v321 = vsel %vm320, 1, 0
      %v322 = vcvt.s32.f32 %v321
      %v323 = vadd.f32 %v271, %v322
      %s324 = sadd.s32 %s116, 28
      %s325 = sld [smem:[#allocation3 + %s324]]
      %s326 = smul.u32 %s325, 8
      %s327 = scalar_lea.vmem [#allocation4], %s326
      %v328 = vld [vmem:[%s327] sm:$0xff]
      %v329 = vmul.f32 %v328, %v90
      %s330 = sadd.s32 %s116, 29
      %s331 = sld [smem:[#allocation3 + %s330]]
      %s332 = smul.u32 %s331, 8
      %s333 = scalar_lea.vmem [#allocation4], %s332
      %v334 = vld [vmem:[%s333] sm:$0xff]
      %v335 = vmul.f32 %v334, %v92
      %v336 = vadd.f32 %v329, %v335
      %s337 = sadd.s32 %s116, 30
      %s338 = sld [smem:[#allocation3 + %s337]]
      %s339 = smul.u32 %s338, 8
      %s340 = scalar_lea.vmem [#allocation4], %s339
      %v341 = vld [vmem:[%s340] sm:$0xff]
      %v342 = vmul.f32 %v341, %v94
      %v343 = vadd.f32 %v336, %v342
      %s344 = sadd.s32 %s116, 31
      %s345 = sld [smem:[#allocation3 + %s344]]
      %s346 = smul.u32 %s345, 8
      %s347 = scalar_lea.vmem [#allocation4], %s346
      %v348 = vld [vmem:[%s347] sm:$0xff]
      %v349 = vmul.f32 %v348, %v96
      %v350 = vadd.f32 %v343, %v349
      %s351 = sadd.s32 %s116, 32
      %s352 = sld [smem:[#allocation3 + %s351]]
      %s353 = smul.u32 %s352, 8
      %s354 = scalar_lea.vmem [#allocation4], %s353
      %v355 = vld [vmem:[%s354] sm:$0xff]
      %v356 = vmul.f32 %v355, %v98
      %v357 = vadd.f32 %v350, %v356
      %s358 = sadd.s32 %s116, 33
      %s359 = sld [smem:[#allocation3 + %s358]]
      %s360 = smul.u32 %s359, 8
      %s361 = scalar_lea.vmem [#allocation4], %s360
      %v362 = vld [vmem:[%s361] sm:$0xff]
      %v363 = vmul.f32 %v362, %v100
      %v364 = vadd.f32 %v357, %v363
      %s365 = sadd.s32 %s116, 34
      %s366 = sld [smem:[#allocation3 + %s365]]
      %s367 = smul.u32 %s366, 8
      %s368 = scalar_lea.vmem [#allocation7], %s367
      %v369 = vld [vmem:[%s368] sm:$0xff]
      %v370 = vmul.f32 %v369, %v102
      %v371 = vadd.f32 %v364, %v370
      %vm372 = vcmp.gt.f32.partialorder %v371, %v103
      %v373 = vsel %vm372, 1, 0
      %v374 = vcvt.s32.f32 %v373
      %v375 = vadd.f32 %v323, %v374
      %s376 = sadd.s32 %s116, 35
      %s377 = sld [smem:[#allocation3 + %s376]]
      %s378 = smul.u32 %s377, 8
      %s379 = scalar_lea.vmem [#allocation4], %s378
      %v380 = vld [vmem:[%s379] sm:$0xff]
      %v381 = vmul.f32 %v380, %v90
      %s382 = sadd.s32 %s116, 36
      %s383 = sld [smem:[#allocation3 + %s382]]
      %s384 = smul.u32 %s383, 8
      %s385 = scalar_lea.vmem [#allocation4], %s384
      %v386 = vld [vmem:[%s385] sm:$0xff]
      %v387 = vmul.f32 %v386, %v92
      %v388 = vadd.f32 %v381, %v387
      %s389 = sadd.s32 %s116, 37
      %s390 = sld [smem:[#allocation3 + %s389]]
      %s391 = smul.u32 %s390, 8
      %s392 = scalar_lea.vmem [#allocation4], %s391
      %v393 = vld [vmem:[%s392] sm:$0xff]
      %v394 = vmul.f32 %v393, %v94
      %v395 = vadd.f32 %v388, %v394
      %s396 = sadd.s32 %s116, 38
      %s397 = sld [smem:[#allocation3 + %s396]]
      %s398 = smul.u32 %s397, 8
      %s399 = scalar_lea.vmem [#allocation4], %s398
      %v400 = vld [vmem:[%s399] sm:$0xff]
      %v401 = vmul.f32 %v400, %v96
      %v402 = vadd.f32 %v395, %v401
      %s403 = sadd.s32 %s116, 39
      %s404 = sld [smem:[#allocation3 + %s403]]
      %s405 = smul.u32 %s404, 8
      %s406 = scalar_lea.vmem [#allocation4], %s405
      %v407 = vld [vmem:[%s406] sm:$0xff]
      %v408 = vmul.f32 %v407, %v98
      %v409 = vadd.f32 %v402, %v408
      %s410 = sadd.s32 %s116, 40
      %s411 = sld [smem:[#allocation3 + %s410]]
      %s412 = smul.u32 %s411, 8
      %s413 = scalar_lea.vmem [#allocation4], %s412
      %v414 = vld [vmem:[%s413] sm:$0xff]
      %v415 = vmul.f32 %v414, %v100
      %v416 = vadd.f32 %v409, %v415
      %s417 = sadd.s32 %s116, 41
      %s418 = sld [smem:[#allocation3 + %s417]]
      %s419 = smul.u32 %s418, 8
      %s420 = scalar_lea.vmem [#allocation7], %s419
      %v421 = vld [vmem:[%s420] sm:$0xff]
      %v422 = vmul.f32 %v421, %v102
      %v423 = vadd.f32 %v416, %v422
      %vm424 = vcmp.gt.f32.partialorder %v423, %v103
      %v425 = vsel %vm424, 1, 0
      %v426 = vcvt.s32.f32 %v425
      %v427 = vadd.f32 %v375, %v426
      %s428 = sadd.s32 %s116, 42
      %s429 = sld [smem:[#allocation3 + %s428]]
      %s430 = smul.u32 %s429, 8
      %s431 = scalar_lea.vmem [#allocation4], %s430
      %v432 = vld [vmem:[%s431] sm:$0xff]
      %v433 = vmul.f32 %v432, %v90
      %s434 = sadd.s32 %s116, 43
      %s435 = sld [smem:[#allocation3 + %s434]]
      %s436 = smul.u32 %s435, 8
      %s437 = scalar_lea.vmem [#allocation4], %s436
      %v438 = vld [vmem:[%s437] sm:$0xff]
      %v439 = vmul.f32 %v438, %v92
      %v440 = vadd.f32 %v433, %v439
      %s441 = sadd.s32 %s116, 44
      %s442 = sld [smem:[#allocation3 + %s441]]
      %s443 = smul.u32 %s442, 8
      %s444 = scalar_lea.vmem [#allocation4], %s443
      %v445 = vld [vmem:[%s444] sm:$0xff]
      %v446 = vmul.f32 %v445, %v94
      %v447 = vadd.f32 %v440, %v446
      %s448 = sadd.s32 %s116, 45
      %s449 = sld [smem:[#allocation3 + %s448]]
      %s450 = smul.u32 %s449, 8
      %s451 = scalar_lea.vmem [#allocation4], %s450
      %v452 = vld [vmem:[%s451] sm:$0xff]
      %v453 = vmul.f32 %v452, %v96
      %v454 = vadd.f32 %v447, %v453
      %s455 = sadd.s32 %s116, 46
      %s456 = sld [smem:[#allocation3 + %s455]]
      %s457 = smul.u32 %s456, 8
      %s458 = scalar_lea.vmem [#allocation4], %s457
      %v459 = vld [vmem:[%s458] sm:$0xff]
      %v460 = vmul.f32 %v459, %v98
      %v461 = vadd.f32 %v454, %v460
      %s462 = sadd.s32 %s116, 47
      %s463 = sld [smem:[#allocation3 + %s462]]
      %s464 = smul.u32 %s463, 8
      %s465 = scalar_lea.vmem [#allocation4], %s464
      %v466 = vld [vmem:[%s465] sm:$0xff]
      %v467 = vmul.f32 %v466, %v100
      %v468 = vadd.f32 %v461, %v467
      %s469 = sadd.s32 %s116, 48
      %s470 = sld [smem:[#allocation3 + %s469]]
      %s471 = smul.u32 %s470, 8
      %s472 = scalar_lea.vmem [#allocation7], %s471
      %v473 = vld [vmem:[%s472] sm:$0xff]
      %v474 = vmul.f32 %v473, %v102
      %v475 = vadd.f32 %v468, %v474
      %vm476 = vcmp.gt.f32.partialorder %v475, %v103
      %v477 = vsel %vm476, 1, 0
      %v478 = vcvt.s32.f32 %v477
      %v479 = vadd.f32 %v427, %v478
      %s480 = sadd.s32 %s116, 49
      %s481 = sld [smem:[#allocation3 + %s480]]
      %s482 = smul.u32 %s481, 8
      %s483 = scalar_lea.vmem [#allocation4], %s482
      %v484 = vld [vmem:[%s483] sm:$0xff]
      %v485 = vmul.f32 %v484, %v90
      %s486 = sadd.s32 %s116, 50
      %s487 = sld [smem:[#allocation3 + %s486]]
      %s488 = smul.u32 %s487, 8
      %s489 = scalar_lea.vmem [#allocation4], %s488
      %v490 = vld [vmem:[%s489] sm:$0xff]
      %v491 = vmul.f32 %v490, %v92
      %v492 = vadd.f32 %v485, %v491
      %s493 = sadd.s32 %s116, 51
      %s494 = sld [smem:[#allocation3 + %s493]]
      %s495 = smul.u32 %s494, 8
      %s496 = scalar_lea.vmem [#allocation4], %s495
      %v497 = vld [vmem:[%s496] sm:$0xff]
      %v498 = vmul.f32 %v497, %v94
      %v499 = vadd.f32 %v492, %v498
      %s500 = sadd.s32 %s116, 52
      %s501 = sld [smem:[#allocation3 + %s500]]
      %s502 = smul.u32 %s501, 8
      %s503 = scalar_lea.vmem [#allocation4], %s502
      %v504 = vld [vmem:[%s503] sm:$0xff]
      %v505 = vmul.f32 %v504, %v96
      %v506 = vadd.f32 %v499, %v505
      %s507 = sadd.s32 %s116, 53
      %s508 = sld [smem:[#allocation3 + %s507]]
      %s509 = smul.u32 %s508, 8
      %s510 = scalar_lea.vmem [#allocation4], %s509
      %v511 = vld [vmem:[%s510] sm:$0xff]
      %v512 = vmul.f32 %v511, %v98
      %v513 = vadd.f32 %v506, %v512
      %s514 = sadd.s32 %s116, 54
      %s515 = sld [smem:[#allocation3 + %s514]]
      %s516 = smul.u32 %s515, 8
      %s517 = scalar_lea.vmem [#allocation4], %s516
      %v518 = vld [vmem:[%s517] sm:$0xff]
      %v519 = vmul.f32 %v518, %v100
      %v520 = vadd.f32 %v513, %v519
      %s521 = sadd.s32 %s116, 55
      %s522 = sld [smem:[#allocation3 + %s521]]
      %s523 = smul.u32 %s522, 8
      %s524 = scalar_lea.vmem [#allocation7], %s523
      %v525 = vld [vmem:[%s524] sm:$0xff]
      %v526 = vmul.f32 %v525, %v102
      %v527 = vadd.f32 %v520, %v526
      %vm528 = vcmp.gt.f32.partialorder %v527, %v103
      %v529 = vsel %vm528, 1, 0
      %v530 = vcvt.s32.f32 %v529
      %v531 = vadd.f32 %v479, %v530
      %s532 = sadd.s32 %s116, 56
      %s533 = sld [smem:[#allocation3 + %s532]]
      %s534 = smul.u32 %s533, 8
      %s535 = scalar_lea.vmem [#allocation4], %s534
      %v536 = vld [vmem:[%s535] sm:$0xff]
      %v537 = vmul.f32 %v536, %v90
      %s538 = sadd.s32 %s116, 57
      %s539 = sld [smem:[#allocation3 + %s538]]
      %s540 = smul.u32 %s539, 8
      %s541 = scalar_lea.vmem [#allocation4], %s540
      %v542 = vld [vmem:[%s541] sm:$0xff]
      %v543 = vmul.f32 %v542, %v92
      %v544 = vadd.f32 %v537, %v543
      %s545 = sadd.s32 %s116, 58
      %s546 = sld [smem:[#allocation3 + %s545]]
      %s547 = smul.u32 %s546, 8
      %s548 = scalar_lea.vmem [#allocation4], %s547
      %v549 = vld [vmem:[%s548] sm:$0xff]
      %v550 = vmul.f32 %v549, %v94
      %v551 = vadd.f32 %v544, %v550
      %s552 = sadd.s32 %s116, 59
      %s553 = sld [smem:[#allocation3 + %s552]]
      %s554 = smul.u32 %s553, 8
      %s555 = scalar_lea.vmem [#allocation4], %s554
      %v556 = vld [vmem:[%s555] sm:$0xff]
      %v557 = vmul.f32 %v556, %v96
      %v558 = vadd.f32 %v551, %v557
      %s559 = sadd.s32 %s116, 60
      %s560 = sld [smem:[#allocation3 + %s559]]
      %s561 = smul.u32 %s560, 8
      %s562 = scalar_lea.vmem [#allocation4], %s561
      %v563 = vld [vmem:[%s562] sm:$0xff]
      %v564 = vmul.f32 %v563, %v98
      %v565 = vadd.f32 %v558, %v564
      %s566 = sadd.s32 %s116, 61
      %s567 = sld [smem:[#allocation3 + %s566]]
      %s568 = smul.u32 %s567, 8
      %s569 = scalar_lea.vmem [#allocation4], %s568
      %v570 = vld [vmem:[%s569] sm:$0xff]
      %v571 = vmul.f32 %v570, %v100
      %v572 = vadd.f32 %v565, %v571
      %s573 = sadd.s32 %s116, 62
      %s574 = sld [smem:[#allocation3 + %s573]]
      %s575 = smul.u32 %s574, 8
      %s576 = scalar_lea.vmem [#allocation7], %s575
      %v577 = vld [vmem:[%s576] sm:$0xff]
      %v578 = vmul.f32 %v577, %v102
      %v579 = vadd.f32 %v572, %v578
      %vm580 = vcmp.gt.f32.partialorder %v579, %v103
      %v581 = vsel %vm580, 1, 0
      %v582 = vcvt.s32.f32 %v581
      %v583 = vadd.f32 %v531, %v582
      %v584 = vadd.f32 %v583, %v583
      %vm585 = vcmp.gt.f32.partialorder %v584, 9.0
      %v586 = vsel %vm585, 1, 0
      %v587 = vcvt.s32.f32 %v586
      %v588 = vmul.f32 %v587, %v104
      %589 = vadd.xlane.f32.xlu0 %v588
      %v590 = vpop.xlane.xlu0 %589
      %v591 = vrot.slane %v590, 4
      %v592 = vadd.f32 %v590, %v591
      %v593 = vrot.slane %v592, 2
      %v594 = vadd.f32 %v592, %v593
      %v595 = vrot.slane %v594, 1
      %v596 = vadd.f32 %v594, %v595
      %v597 = vstv %s108
      %vm598 = vcmp.eq.s32.totalorder %v106, %v597
      %v599 = vsel %vm598, %v596, %v113
    $region46: #{tpu_custom_call.1} parent=1 // loop_footer
      %s112 = sadd.s32 1, %s108
    $region47: #{tpu_custom_call.1} parent=1 // loop_footer_branch
      %107 = sbr.rel target = $region43
    $region48: #{tpu_custom_call.1} parent=1 // loop_exit
      _
    %vm600 = vcmask 57344
    %601 = vst.msk [vmem:[#allocation13] sm:$0x1] %vm600, %v113
    // Predicated region
    $region49: #{tpu_custom_call.1} parent=1 // pred_check
      _
    $region50: #{tpu_custom_call.1} parent=1 // pred_check_branch
      %603 = sbr.rel (0) target = $region52
    $region51: #{tpu_custom_call.1} parent=1 // pred_region
      %s605 = ssub.s32 16, 16
      %606 = vsyncadd [#allocation6], %s605
      %s608 = sshll.u32 [#allocation13], 4
      %s609 = int_to_ptr.vmem [resolvable:$true] %s608
      %611 = dma.vmem_to_hbm [thread:$0]  %s609, 16, %s6, [#allocation6]
    $region52: #{tpu_custom_call.1} parent=1 // pred_fallthru
      _
    // Predicated region
    $region53: #{tpu_custom_call.1} parent=1 // pred_check
      _
    $region54: #{tpu_custom_call.1} parent=1 // pred_check_branch
      %613 = sbr.rel (0) target = $region56
    $region55: #{tpu_custom_call.1} parent=1 // pred_region
      %614 = dma.done [#allocation6], 16
    $region56: #{tpu_custom_call.1} parent=1 // pred_fallthru
      _
    %615 = vsyncpa [#allocation5], 1
    %616 = vsyncpa [#allocation8], 1
    %617 = vsyncpa [#allocation11], 1
    %618 = vsyncpa [#allocation6], 1

</llo_original>
